<compile_context>
chip_gen: v6e
topology: v6e:2x2x1
jax: 0.10.0
libtpu: 0.0.40
codegen_flags: <defaults>
</compile_context>

<pallas_src>
import math
import numpy as np
import jax
import jax.numpy as jnp
from jax.experimental import pallas as pl
from jax.experimental.pallas import tpu as pltpu

F32 = jnp.float32
BF16 = jnp.bfloat16


# ----------------------------------------------------------------------------
# Deterministic parameter construction (shapes from the module __init__).
# Weights are stored pre-transposed as (in, out) so kernels compute x @ W.
# ----------------------------------------------------------------------------
def make_params(key, E, F):
    ks = jax.random.split(key, 10)

    def kaiming(k, fan_in, fan_out):
        return jax.random.normal(k, (fan_in, fan_out), F32) * np.sqrt(2.0 / fan_in)

    z = lambda n: jnp.zeros((1, n), F32)
    return dict(
        wq=kaiming(ks[0], E, E), bq=z(E),
        wk=kaiming(ks[1], E, E), bk=z(E),
        wv=kaiming(ks[2], E, E), bv=z(E),
        wdk=kaiming(ks[3], E, E), bdk=z(E),
        wdu=kaiming(ks[4], E, E), bdu=z(E),
        wdih=kaiming(ks[5], E, 2 * E),          # dihedral_proj (no bias)
        wea=kaiming(ks[6], E, E), bea=z(E),     # edge_attr_update
        wf1=kaiming(ks[7], E, F), bf1=z(F),     # ffn[0]
        wf2=kaiming(ks[8], F, E), bf2=z(E),     # ffn[3]
        ln1w=jnp.ones((1, E), F32), ln1b=z(E),  # attn_layer_norm
        ln2w=jnp.ones((1, E), F32), ln2b=z(E),  # final_layer_norm
    )


# ----------------------------------------------------------------------------
# Generation-aware tiling / dtype / VMEM defaults.
# ----------------------------------------------------------------------------
def _tpu_config():
    vmem_cap = 64 * 1024 * 1024          # conservative fallback (v7x-sized)
    kind = ""
    try:
        vmem_cap = int(pltpu.get_tpu_info().vmem_capacity_bytes)
    except Exception:
        pass
    try:
        kind = jax.devices()[0].device_kind.lower()
    except Exception:
        pass
    small_vmem = vmem_cap <= 64 * 1024 * 1024     # v7x-class (64 MiB per TC)
    vmem_limit = min(96 * 1024 * 1024, max(32 * 1024 * 1024, (vmem_cap * 3) // 4))
    return dict(
        vmem_limit_bytes=int(vmem_limit),
        node_tile=64 if small_vmem else 128,
        col_tile=128,
        edge_tile=64 if small_vmem else 128,
        # v4/v5e have no bf16 VALUs -> keep big elementwise chains in f32 there.
        compute_dtype=F32 if ("v5" in kind or "v4" in kind) else BF16,
    )


# ----------------------------------------------------------------------------
# Two-pass Pallas implementation.
# ----------------------------------------------------------------------------
def geoformer_attn_block(x, vec, dist, edge_attr, key_padding_mask, params, *,
                         num_heads, cutoff, node_tile=None, col_tile=None,
                         edge_tile=None, vmem_limit_bytes=None,
                         compute_dtype=None):
    B, N, E = x.shape
    assert E % num_heads == 0, "embedding_dim must be divisible by num_heads"
    D = E // num_heads

    cfg = _tpu_config()
    TI = min(node_tile or cfg["node_tile"], N)     # pass-1 row tile
    TJ = min(col_tile or cfg["col_tile"], N)       # pass-1 column tile
    TE = min(edge_tile or cfg["edge_tile"], N)     # pass-2 (i,j) tile
    vmem_limit_bytes = vmem_limit_bytes or cfg["vmem_limit_bytes"]
    ct = compute_dtype or cfg["compute_dtype"]

    assert N % TI == 0 and N % TJ == 0 and N % TE == 0, \
        "N must be divisible by all tile sizes"
    assert TI % 8 == 0 or TI == N
    # scale / vec tiles put TJ on the lane axis -> 128-multiple (or full N).
    assert TJ % 128 == 0 or TJ == N

    # ----------------- wrapper-side precompute (O(N) / O(N^2) only) ---------
    x32 = x.astype(F32)
    q = jnp.dot(x32, params["wq"]) + params["bq"]            # (B,N,E) f32
    k = jnp.dot(x32, params["wk"]) + params["bk"]
    v = jnp.dot(x32, params["wv"]) + params["bv"]

    notm = 1.0 - key_padding_mask.astype(F32)                 # (B,N,N)
    d32 = dist.astype(F32)
    cut = 0.5 * (jnp.cos(d32 * (math.pi / cutoff)) + 1.0) * (d32 < cutoff).astype(F32)
    scale = cut * notm                                         # (B,N,N) f32 (keep f32)
    vec_m = (jnp.transpose(vec.astype(F32), (0, 3, 1, 2))      # (B,3,N,N) bf16
             * notm[:, None]).astype(BF16)

    edge_bf = edge_attr.astype(BF16)                           # bf16 edge features

    head_id = jnp.arange(E, dtype=jnp.int32) // D
    seg = (head_id[:, None] == head_id[None, :]).astype(BF16)  # (E,E) head block-diag

    wdk, bdk = params["wdk"].astype(BF16), params["bdk"]
    wdu, bdu = params["wdu"].astype(BF16), params["bdu"]
    wdih = params["wdih"]
    wf1, bf1 = params["wf1"], params["bf1"]
    wf2, bf2 = params["wf2"], params["bf2"]
    ln1w, ln1b = params["ln1w"], params["ln1b"]
    ln2w, ln2b = params["ln2w"], params["ln2b"]
    wea, bea = params["wea"].astype(BF16), params["bea"]

    node_weights = [wdk, bdk, wdu, bdu, wdih, wf1, bf1, wf2, bf2,
                    ln1w, ln1b, ln2w, ln2b]

    # ------------------------------------------------------------------ pass 1
    def node_kernel(q_ref, k_ref, v_ref, xres_ref, edge_ref, scale_ref, vecm_ref,
                    seg_ref, wdk_ref, bdk_ref, wdu_ref, bdu_ref, wdih_ref,
                    wf1_ref, bf1_ref, wf2_ref, bf2_ref,
                    ln1w_ref, ln1b_ref, ln2w_ref, ln2b_ref,
                    xout_ref, ws_ref, wt_ref, attn_acc, du_acc):
        relu = lambda a: jnp.maximum(a, 0.0)
        j = pl.program_id(2)

        @pl.when(j == 0)
        def _():
            attn_acc[...] = jnp.zeros_like(attn_acc)
            du_acc[...] = jnp.zeros_like(du_acc)

        edge = edge_ref[0]                                        # (TI,TJ,E) bf16
        dk = relu(jnp.dot(edge.reshape(TI * TJ, E), wdk_ref[...],
                          preferred_element_type=F32) + bdk_ref[...])
        dk = dk.astype(ct).reshape(TI, TJ, E)

        qb = q_ref[0].astype(ct)                                  # (TI,E)
        kb = k_ref[0].astype(ct)                                  # (TJ,E)
        vb = v_ref[0].astype(ct)                                  # (TJ,E)

        t = (qb[:, None, :] * kb[None, :, :]) * dk                # (TI,TJ,E)
        # head-block-diagonal segment-sum matmul -> per-head logits broadcast
        # across that head's E lanes.
        aw = jnp.dot(t.reshape(TI * TJ, E), seg_ref[...],
                     preferred_element_type=F32).reshape(TI, TJ, E)

        sc = scale_ref[0]                                         # (TI,TJ) f32
        probs = (relu(aw) * sc[..., None]).astype(ct)
        apn = probs * vb[None, :, :]                              # attn_per_nodes

        attn_acc[...] += jnp.sum(apn, axis=1, dtype=F32)

        duu = jnp.dot(apn.reshape(TI * TJ, E), wdu_ref[...],
                      preferred_element_type=F32) + bdu_ref[...]
        duu = duu.astype(ct).reshape(TI, TJ, E)

        # key_padding_mask is already folded into the vec channels.
        du_acc[...] += jnp.stack(
            [jnp.sum(duu * vecm_ref[0, 0].astype(ct)[..., None], axis=1, dtype=F32),
             jnp.sum(duu * vecm_ref[0, 1].astype(ct)[..., None], axis=1, dtype=F32),
             jnp.sum(duu * vecm_ref[0, 2].astype(ct)[..., None], axis=1, dtype=F32)],
            axis=0)

        @pl.when(j == pl.num_programs(2) - 1)
        def _():
            attn = attn_acc[...]
            du0, du1, du2 = du_acc[0], du_acc[1], du_acc[2]

            # VecLayerNorm (trainable=False, norm_type="max_min") over 3-axis.
            dn = jnp.sqrt(du0 * du0 + du1 * du1 + du2 * du2)
            dn = jnp.maximum(dn, 1e-12)
            maxv = jnp.max(dn, axis=-1, keepdims=True)
            minv = jnp.min(dn, axis=-1, keepdims=True)
            delta = maxv - minv
            delta = jnp.where(delta == 0.0, 1.0, delta)
            smm = relu((dn - minv) / delta) / dn

            # dihedral_proj on all 3 channels in one (3*TI,E)x(E,2E) matmul
            dun = jnp.stack([du0 * smm, du1 * smm, du2 * smm], axis=0)   # (3,TI,E)
            proj = jnp.dot(dun.reshape(3 * TI, E), wdih_ref[...],
                           preferred_element_type=F32).reshape(3, TI, 2 * E)
            ws_ref[0] = proj[:, :, :E].astype(ws_ref.dtype)
            wt_ref[0] = proj[:, :, E:].astype(wt_ref.dtype)

            def layernorm(z, wr, br):
                mu = jnp.mean(z, axis=-1, keepdims=True)
                var = jnp.mean((z - mu) ** 2, axis=-1, keepdims=True)
                return (z - mu) * jax.lax.rsqrt(var + 1e-5) * wr[...] + br[...]

            # block glue: residual + LN + FFN + LN (dropout = identity, eval).
            x1 = layernorm(attn + xres_ref[0], ln1w_ref, ln1b_ref)
            h = relu(jnp.dot(x1, wf1_ref[...], preferred_element_type=F32)
                     + bf1_ref[...])
            x2 = jnp.dot(h, wf2_ref[...], preferred_element_type=F32) \
                 + bf2_ref[...] + x1
            xout_ref[0] = layernorm(x2, ln2w_ref, ln2b_ref)

    w_spec = lambda w: pl.BlockSpec(w.shape, lambda b, i, j: (0, 0))

    node_in_specs = [
        pl.BlockSpec((1, TI, E), lambda b, i, j: (b, i, 0)),          # q row tile
        pl.BlockSpec((1, TJ, E), lambda b, i, j: (b, j, 0)),          # k column tile
        pl.BlockSpec((1, TJ, E), lambda b, i, j: (b, j, 0)),          # v column tile
        pl.BlockSpec((1, TI, E), lambda b, i, j: (b, i, 0)),          # x row tile (residual)
        pl.BlockSpec((1, TI, TJ, E), lambda b, i, j: (b, i, j, 0)),   # edge tile (bf16)
        pl.BlockSpec((1, TI, TJ), lambda b, i, j: (b, i, j)),         # cutoff*(~mask) f32
        pl.BlockSpec((1, 3, TI, TJ), lambda b, i, j: (b, 0, i, j)),   # masked vec (bf16)
        pl.BlockSpec((E, E), lambda b, i, j: (0, 0)),                 # head segment matrix
    ] + [w_spec(w) for w in node_weights]

    node_out_specs = (
        pl.BlockSpec((1, TI, E), lambda b, i, j: (b, i, 0)),
        pl.BlockSpec((1, 3, TI, E), lambda b, i, j: (b, 0, i, 0)),
        pl.BlockSpec((1, 3, TI, E), lambda b, i, j: (b, 0, i, 0)),
    )
    node_out_shape = (
        jax.ShapeDtypeStruct((B, N, E), F32),        # x_out
        jax.ShapeDtypeStruct((B, 3, N, E), BF16),    # ws (bf16 for pass 2)
        jax.ShapeDtypeStruct((B, 3, N, E), BF16),    # wt (bf16 for pass 2)
    )
    node_cost = pl.CostEstimate(
        flops=int(6 * B * N * N * E * E + 10 * B * N * N * E),
        transcendentals=int(2 * B * N * E),
        bytes_accessed=int(2 * B * N * N * E + 10 * B * N * N + 32 * B * N * E))

    x_out, ws, wt = pl.pallas_call(
        node_kernel,
        grid=(B, N // TI, N // TJ),
        in_specs=node_in_specs,
        out_specs=node_out_specs,
        out_shape=node_out_shape,
        scratch_shapes=[pltpu.VMEM((TI, E), F32),          # attn accumulator
                        pltpu.VMEM((3, TI, E), F32)],      # du accumulator
        compiler_params=pltpu.CompilerParams(
            dimension_semantics=("parallel", "parallel", "arbitrary"),
            vmem_limit_bytes=vmem_limit_bytes),
        cost_estimate=node_cost,
    )(q, k, v, x32, edge_bf, scale, vec_m, seg, *node_weights)

    # ------------------------------------------------------------------ pass 2
    def edge_kernel(edge_ref, ws_ref, wt_ref, wea_ref, bea_ref, eout_ref):
        relu = lambda a: jnp.maximum(a, 0.0)
        edge = edge_ref[0]                                        # (TE,TE,E) bf16
        eupd = relu(jnp.dot(edge.reshape(TE * TE, E), wea_ref[...],
                            preferred_element_type=F32) + bea_ref[...])
        eupd = eupd.astype(BF16).reshape(TE, TE, E)
        # ipe accumulated in bf16; c = 0 initializes (no zero-fill).
        ipe = ws_ref[0, 0][:, None, :] * wt_ref[0, 0][None, :, :]
        ipe = ipe + ws_ref[0, 1][:, None, :] * wt_ref[0, 1][None, :, :]
        ipe = ipe + ws_ref[0, 2][:, None, :] * wt_ref[0, 2][None, :, :]
        eout_ref[0] = eupd * ipe + edge                            # bf16 residual add

    edge_in_specs = [
        pl.BlockSpec((1, TE, TE, E), lambda b, i, j: (b, i, j, 0)),   # edge (i,j) tile
        pl.BlockSpec((1, 3, TE, E), lambda b, i, j: (b, 0, i, 0)),    # ws rows i
        pl.BlockSpec((1, 3, TE, E), lambda b, i, j: (b, 0, j, 0)),    # wt rows j
        pl.BlockSpec((E, E), lambda b, i, j: (0, 0)),                 # wea (bf16)
        pl.BlockSpec((1, E), lambda b, i, j: (0, 0)),                 # bea
    ]
    edge_cost = pl.CostEstimate(
        flops=int(2 * B * N * N * E * E + 10 * B * N * N * E),
        transcendentals=0,
        bytes_accessed=int(4 * B * N * N * E + 12 * B * N * E))

    edge_out = pl.pallas_call(
        edge_kernel,
        grid=(B, N // TE, N // TE),
        in_specs=edge_in_specs,
        out_specs=pl.BlockSpec((1, TE, TE, E), lambda b, i, j: (b, i, j, 0)),
        out_shape=jax.ShapeDtypeStruct((B, N, N, E), BF16),
        compiler_params=pltpu.CompilerParams(
            dimension_semantics=("parallel", "parallel", "parallel"),
            vmem_limit_bytes=vmem_limit_bytes),
        cost_estimate=edge_cost,
    )(edge_bf, ws, wt, wea, bea)

    return x_out, edge_out


# ----------------------------------------------------------------------------
# Pure-JAX f32 reference mirroring the PyTorch forward (explicit head
# reshapes), used to validate the kernels.
# ----------------------------------------------------------------------------
def reference(x, vec, dist, edge_attr, kpm, p, *, num_heads, cutoff):
    B, N, E = x.shape
    H = num_heads
    Dh = E // H
    relu = lambda a: jnp.maximum(a, 0.0)
    lin = lambda z, w, b: jnp.dot(z, w) + b

    def to_heads(t):  # 'b n (h d) -> (b h) n d'
        return t.reshape(B, N, H, Dh).transpose(0, 2, 1, 3).reshape(B * H, N, Dh)

    q = to_heads(lin(x, p["wq"], p["bq"]))
    k = to_heads(lin(x, p["wk"], p["bk"]))
    v = to_heads(lin(x, p["wv"], p["bv"]))
    dk = relu(lin(edge_attr, p["wdk"], p["bdk"]))
    dk = dk.reshape(B, N, N, H, Dh).transpose(0, 3, 1, 2, 4).reshape(B * H, N, N, Dh)

    aw = (q[:, :, None, :] * k[:, None, :, :] * dk).sum(-1)           # (BH,N,N)
    aw = jnp.where(kpm[:, None, :, :], 0.0, aw.reshape(B, H, N, N)).reshape(B * H, N, N)
    cut = 0.5 * (jnp.cos(dist * math.pi / cutoff) + 1.0) * (dist < cutoff).astype(F32)
    scale = jnp.repeat(cut[:, None], H, axis=1).reshape(B * H, N, N)
    probs = relu(aw) * scale

    apn = probs[..., None] * v[:, None, :, :]                         # (BH,N,N,Dh)
    apn = apn.reshape(B, H, N, N, Dh).transpose(0, 2, 3, 1, 4).reshape(B, N, N, E)
    attn = apn.sum(axis=2)

    duu = lin(apn, p["wdu"], p["bdu"])
    duu = jnp.where(kpm[..., None], 0.0, duu)
    du = (duu[:, :, :, None, :] * vec[..., None]).sum(axis=2)         # (B,N,3,E)

    dn = jnp.sqrt((du ** 2).sum(axis=-2, keepdims=True))              # (B,N,1,E)
    dn = jnp.maximum(dn, 1e-12)
    direct = du / dn
    maxv = dn.max(axis=-1, keepdims=True)
    minv = dn.min(axis=-1, keepdims=True)
    delta = maxv - minv
    delta = jnp.where(delta == 0.0, 1.0, delta)
    du_n = relu((dn - minv) / delta) * direct

    proj = jnp.dot(du_n, p["wdih"])                                   # (B,N,3,2E)
    ws, wt = proj[..., :E], proj[..., E:]
    ipe = (wt[:, None, :, :, :] * ws[:, :, None, :, :]).sum(axis=-2)  # (B,N,N,E)
    ipe = relu(lin(edge_attr, p["wea"], p["bea"])) * ipe

    def layernorm(z, w, b):
        mu = z.mean(-1, keepdims=True)
        var = ((z - mu) ** 2).mean(-1, keepdims=True)
        return (z - mu) * jax.lax.rsqrt(var + 1e-5) * w + b

    x1 = layernorm(attn + x, p["ln1w"], p["ln1b"])
    edge_out = ipe + edge_attr
    h = relu(lin(x1, p["wf1"], p["bf1"]))
    x2 = lin(h, p["wf2"], p["bf2"]) + x1
    x_out = layernorm(x2, p["ln2w"], p["ln2b"])
    return x_out, edge_out


if __name__ == "__main__":
    CUTOFF = 5.0
    configs = [
        # single-tile smoke test (tiles clamp to N)
        dict(B=2, N=16, E=64, H=4, FFN=128, node_tile=16, col_tile=16, edge_tile=16),
        # multi-tile test: 4 row tiles x 2 column tiles (accumulator path) in
        # pass 1, 2x2 edge tiles in pass 2.
        dict(B=2, N=256, E=64, H=4, FFN=128, node_tile=64, col_tile=128, edge_tile=128),
    ]

    def rel_rms(a, b):
        a = np.asarray(a, np.float64).ravel()
        b = np.asarray(b, np.float64).ravel()
        return float(np.linalg.norm(a - b) / (np.linalg.norm(b) + 1e-12))

    for cfg in configs:
        B, N, E, H, FFN = cfg["B"], cfg["N"], cfg["E"], cfg["H"], cfg["FFN"]
        key = jax.random.PRNGKey(0)
        kx, kv, kd, ke, km, kp = jax.random.split(key, 6)
        x = jax.random.normal(kx, (B, N, E), F32)
        vec = jax.random.normal(kv, (B, N, N, 3), F32)
        dist = jax.random.uniform(kd, (B, N, N), F32, 0.0, 6.0)
        edge_attr = jax.random.normal(ke, (B, N, N, E), F32)
        key_padding_mask = jax.random.bernoulli(km, 0.2, (B, N, N))
        params = make_params(kp, E, FFN)

        x_out, edge_out = geoformer_attn_block(
            x, vec, dist, edge_attr, key_padding_mask, params,
            num_heads=H, cutoff=CUTOFF,
            node_tile=cfg["node_tile"], col_tile=cfg["col_tile"],
            edge_tile=cfg["edge_tile"])
        jax.block_until_ready((x_out, edge_out))

        x_ref, edge_ref = reference(
            x, vec, dist, edge_attr, key_padding_mask, params,
            num_heads=H, cutoff=CUTOFF)
        edge_out_f32 = edge_out.astype(F32)

        assert bool(jnp.all(jnp.isfinite(x_out)))
        assert bool(jnp.all(jnp.isfinite(edge_out_f32)))
        # bf16 edge features / bf16 MXU operands / bf16 elementwise chains with
        # f32 accumulation vs. a pure-f32 reference: validate with a tight
        # relative-RMS check (catches any tiling/index_map error, which would
        # be O(1)) plus a loose element-wise guard for localized blowups.
        assert rel_rms(x_out, x_ref) < 3e-2, rel_rms(x_out, x_ref)
        assert rel_rms(edge_out_f32, edge_ref) < 3e-2, rel_rms(edge_out_f32, edge_ref)
        np.testing.assert_allclose(np.asarray(x_out), np.asarray(x_ref),
                                   rtol=2.5e-1, atol=2.5e-1)
        np.testing.assert_allclose(np.asarray(edge_out_f32), np.asarray(edge_ref),
                                   rtol=2.5e-1, atol=2.5e-1)
    print("KERNEL_OK")
</pallas_src>

<mosaic_0001>
module attributes {stable_mosaic.version = 11 : i64} {
  func.func @node_kernel(%arg0: i32, %arg1: i32, %arg2: i32, %arg3: memref<1x16x64xf32, #tpu.memory_space<vmem>>, %arg4: memref<1x16x64xf32, #tpu.memory_space<vmem>>, %arg5: memref<1x16x64xf32, #tpu.memory_space<vmem>>, %arg6: memref<1x16x64xf32, #tpu.memory_space<vmem>>, %arg7: memref<1x16x16x64xbf16, #tpu.memory_space<vmem>>, %arg8: memref<1x16x16xf32, #tpu.memory_space<vmem>>, %arg9: memref<1x3x16x16xbf16, #tpu.memory_space<vmem>>, %arg10: memref<64x64xbf16, #tpu.memory_space<vmem>>, %arg11: memref<64x64xbf16, #tpu.memory_space<vmem>>, %arg12: memref<1x64xf32, #tpu.memory_space<vmem>>, %arg13: memref<64x64xbf16, #tpu.memory_space<vmem>>, %arg14: memref<1x64xf32, #tpu.memory_space<vmem>>, %arg15: memref<64x128xf32, #tpu.memory_space<vmem>>, %arg16: memref<64x128xf32, #tpu.memory_space<vmem>>, %arg17: memref<1x128xf32, #tpu.memory_space<vmem>>, %arg18: memref<128x64xf32, #tpu.memory_space<vmem>>, %arg19: memref<1x64xf32, #tpu.memory_space<vmem>>, %arg20: memref<1x64xf32, #tpu.memory_space<vmem>>, %arg21: memref<1x64xf32, #tpu.memory_space<vmem>>, %arg22: memref<1x64xf32, #tpu.memory_space<vmem>>, %arg23: memref<1x64xf32, #tpu.memory_space<vmem>>, %arg24: memref<1x16x64xf32, #tpu.memory_space<vmem>>, %arg25: memref<1x3x16x64xbf16, #tpu.memory_space<vmem>>, %arg26: memref<1x3x16x64xbf16, #tpu.memory_space<vmem>>, %arg27: memref<16x64xf32, #tpu.memory_space<vmem>>, %arg28: memref<3x16x64xf32, #tpu.memory_space<vmem>>) attributes {dimension_semantics = [#tpu.dimension_semantics<parallel>, #tpu.dimension_semantics<parallel>, #tpu.dimension_semantics<arbitrary>], iteration_bounds = array<i64: 2, 1, 1>, scalar_prefetch = 0 : i64, scratch_operands = 2 : i64, tpu.core_type = #tpu.core_type<tc>, window_params = [{transform_indices = @transform_0, window_bounds = array<i64: 1, 16, 64>}, {transform_indices = @transform_1, window_bounds = array<i64: 1, 16, 64>}, {transform_indices = @transform_2, window_bounds = array<i64: 1, 16, 64>}, {transform_indices = @transform_3, window_bounds = array<i64: 1, 16, 64>}, {transform_indices = @transform_4, window_bounds = array<i64: 1, 16, 16, 64>}, {transform_indices = @transform_5, window_bounds = array<i64: 1, 16, 16>}, {transform_indices = @transform_6, window_bounds = array<i64: 1, 3, 16, 16>}, {pipeline_mode = #tpu.pipeline_mode<synchronous>, transform_indices = @transform_7, window_bounds = array<i64: 64, 64>}, {pipeline_mode = #tpu.pipeline_mode<synchronous>, transform_indices = @transform_8, window_bounds = array<i64: 64, 64>}, {pipeline_mode = #tpu.pipeline_mode<synchronous>, transform_indices = @transform_9, window_bounds = array<i64: 1, 64>}, {pipeline_mode = #tpu.pipeline_mode<synchronous>, transform_indices = @transform_10, window_bounds = array<i64: 64, 64>}, {pipeline_mode = #tpu.pipeline_mode<synchronous>, transform_indices = @transform_11, window_bounds = array<i64: 1, 64>}, {pipeline_mode = #tpu.pipeline_mode<synchronous>, transform_indices = @transform_12, window_bounds = array<i64: 64, 128>}, {pipeline_mode = #tpu.pipeline_mode<synchronous>, transform_indices = @transform_13, window_bounds = array<i64: 64, 128>}, {pipeline_mode = #tpu.pipeline_mode<synchronous>, transform_indices = @transform_14, window_bounds = array<i64: 1, 128>}, {pipeline_mode = #tpu.pipeline_mode<synchronous>, transform_indices = @transform_15, window_bounds = array<i64: 128, 64>}, {pipeline_mode = #tpu.pipeline_mode<synchronous>, transform_indices = @transform_16, window_bounds = array<i64: 1, 64>}, {pipeline_mode = #tpu.pipeline_mode<synchronous>, transform_indices = @transform_17, window_bounds = array<i64: 1, 64>}, {pipeline_mode = #tpu.pipeline_mode<synchronous>, transform_indices = @transform_18, window_bounds = array<i64: 1, 64>}, {pipeline_mode = #tpu.pipeline_mode<synchronous>, transform_indices = @transform_19, window_bounds = array<i64: 1, 64>}, {pipeline_mode = #tpu.pipeline_mode<synchronous>, transform_indices = @transform_20, window_bounds = array<i64: 1, 64>}, {transform_indices = @transform_21, window_bounds = array<i64: 1, 16, 64>}, {transform_indices = @transform_22, window_bounds = array<i64: 1, 3, 16, 64>}, {transform_indices = @transform_23, window_bounds = array<i64: 1, 3, 16, 64>}]} {
    %c0_i32 = arith.constant 0 : i32
    %0 = arith.cmpi eq, %arg2, %c0_i32 : i32
    %1 = arith.extui %0 : i1 to i32
    %c0_i32_0 = arith.constant 0 : i32
    %2 = arith.cmpi ne, %1, %c0_i32_0 : i32
    scf.if %2 {
      %cst_56 = arith.constant 0.000000e+00 : f32
      %89 = vector.broadcast %cst_56 : f32 to vector<16x64xf32>
      %c0_57 = arith.constant 0 : index
      %c0_58 = arith.constant 0 : index
      %90 = vector.load %arg27[%c0_57, %c0_58] : memref<16x64xf32, #tpu.memory_space<vmem>>, vector<16x64xf32>
      tpu.vector_store %arg27[%c0_57, %c0_58], %89 {strides = array<i32>} : memref<16x64xf32, #tpu.memory_space<vmem>>, vector<16x64xf32>,
      %cst_59 = arith.constant 0.000000e+00 : f32
      %91 = vector.broadcast %cst_59 : f32 to vector<3x16x64xf32>
      %c0_60 = arith.constant 0 : index
      %c0_61 = arith.constant 0 : index
      %c0_62 = arith.constant 0 : index
      %92 = vector.load %arg28[%c0_60, %c0_61, %c0_62] : memref<3x16x64xf32, #tpu.memory_space<vmem>>, vector<3x16x64xf32>
      tpu.vector_store %arg28[%c0_60, %c0_61, %c0_62], %91 {strides = array<i32>} : memref<3x16x64xf32, #tpu.memory_space<vmem>>, vector<3x16x64xf32>,
    } else {
    }
    %c0 = arith.constant 0 : index
    %c0_1 = arith.constant 0 : index
    %c0_2 = arith.constant 0 : index
    %c0_3 = arith.constant 0 : index
    %3 = vector.load %arg7[%c0, %c0_1, %c0_2, %c0_3] : memref<1x16x16x64xbf16, #tpu.memory_space<vmem>>, vector<1x16x16x64xbf16>
    %4 = vector.shape_cast %3 : vector<1x16x16x64xbf16> to vector<16x16x64xbf16>
    %5 = vector.shape_cast %4 : vector<16x16x64xbf16> to vector<256x64xbf16>
    %c0_4 = arith.constant 0 : index
    %c0_5 = arith.constant 0 : index
    %6 = vector.load %arg11[%c0_4, %c0_5] : memref<64x64xbf16, #tpu.memory_space<vmem>>, vector<64x64xbf16>
    %cst = arith.constant dense<0.000000e+00> : vector<256x64xf32>
    %7 = tpu.matmul %5, %6, %cst {dimension_numbers = #tpu.dot_dimension_numbers<[1], [0], [0], [1], [0, 0, 1, 1], [], []>} : vector<256x64xbf16>, vector<64x64xbf16>, vector<256x64xf32> -> vector<256x64xf32>
    %c0_6 = arith.constant 0 : index
    %c0_7 = arith.constant 0 : index
    %8 = vector.load %arg12[%c0_6, %c0_7] : memref<1x64xf32, #tpu.memory_space<vmem>>, vector<1x64xf32>
    %9 = vector.broadcast %8 : vector<1x64xf32> to vector<256x64xf32>
    %10 = arith.addf %7, %9 : vector<256x64xf32>
    %cst_8 = arith.constant 0.000000e+00 : f32
    %11 = vector.broadcast %cst_8 : f32 to vector<256x64xf32>
    %12 = arith.maximumf %10, %11 : vector<256x64xf32>
    %13 = arith.truncf %12 : vector<256x64xf32> to vector<256x64xbf16>
    %14 = vector.shape_cast %13 : vector<256x64xbf16> to vector<16x16x64xbf16>
    %c0_9 = arith.constant 0 : index
    %c0_10 = arith.constant 0 : index
    %c0_11 = arith.constant 0 : index
    %15 = vector.load %arg3[%c0_9, %c0_10, %c0_11] : memref<1x16x64xf32, #tpu.memory_space<vmem>>, vector<1x16x64xf32>
    %16 = vector.shape_cast %15 : vector<1x16x64xf32> to vector<16x64xf32>
    %17 = arith.truncf %16 : vector<16x64xf32> to vector<16x64xbf16>
    %c0_12 = arith.constant 0 : index
    %c0_13 = arith.constant 0 : index
    %c0_14 = arith.constant 0 : index
    %18 = vector.load %arg4[%c0_12, %c0_13, %c0_14] : memref<1x16x64xf32, #tpu.memory_space<vmem>>, vector<1x16x64xf32>
    %19 = vector.shape_cast %18 : vector<1x16x64xf32> to vector<16x64xf32>
    %20 = arith.truncf %19 : vector<16x64xf32> to vector<16x64xbf16>
    %c0_15 = arith.constant 0 : index
    %c0_16 = arith.constant 0 : index
    %c0_17 = arith.constant 0 : index
    %21 = vector.load %arg5[%c0_15, %c0_16, %c0_17] : memref<1x16x64xf32, #tpu.memory_space<vmem>>, vector<1x16x64xf32>
    %22 = vector.shape_cast %21 : vector<1x16x64xf32> to vector<16x64xf32>
    %23 = arith.truncf %22 : vector<16x64xf32> to vector<16x64xbf16>
    %24 = vector.shape_cast %17 : vector<16x64xbf16> to vector<16x1x64xbf16>
    %25 = vector.shape_cast %20 : vector<16x64xbf16> to vector<1x16x64xbf16>
    %26 = vector.broadcast %24 : vector<16x1x64xbf16> to vector<16x16x64xbf16>
    %27 = vector.broadcast %25 : vector<1x16x64xbf16> to vector<16x16x64xbf16>
    %28 = arith.mulf %26, %27 : vector<16x16x64xbf16>
    %29 = arith.mulf %28, %14 : vector<16x16x64xbf16>
    %30 = vector.shape_cast %29 : vector<16x16x64xbf16> to vector<256x64xbf16>
    %c0_18 = arith.constant 0 : index
    %c0_19 = arith.constant 0 : index
    %31 = vector.load %arg10[%c0_18, %c0_19] : memref<64x64xbf16, #tpu.memory_space<vmem>>, vector<64x64xbf16>
    %cst_20 = arith.constant dense<0.000000e+00> : vector<256x64xf32>
    %32 = tpu.matmul %30, %31, %cst_20 {dimension_numbers = #tpu.dot_dimension_numbers<[1], [0], [0], [1], [0, 0, 1, 1], [], []>} : vector<256x64xbf16>, vector<64x64xbf16>, vector<256x64xf32> -> vector<256x64xf32>
    %33 = vector.shape_cast %32 : vector<256x64xf32> to vector<16x16x64xf32>
    %c0_21 = arith.constant 0 : index
    %c0_22 = arith.constant 0 : index
    %c0_23 = arith.constant 0 : index
    %34 = vector.load %arg8[%c0_21, %c0_22, %c0_23] : memref<1x16x16xf32, #tpu.memory_space<vmem>>, vector<1x16x16xf32>
    %35 = vector.shape_cast %34 : vector<1x16x16xf32> to vector<16x16xf32>
    %cst_24 = arith.constant 0.000000e+00 : f32
    %36 = vector.broadcast %cst_24 : f32 to vector<16x16x64xf32>
    %37 = arith.maximumf %33, %36 : vector<16x16x64xf32>
    %38 = vector.shape_cast %35 : vector<16x16xf32> to vector<16x16x1xf32>
    %39 = vector.broadcast %38 : vector<16x16x1xf32> to vector<16x16x64xf32>
    %40 = arith.mulf %37, %39 : vector<16x16x64xf32>
    %41 = arith.truncf %40 : vector<16x16x64xf32> to vector<16x16x64xbf16>
    %42 = vector.shape_cast %23 : vector<16x64xbf16> to vector<1x16x64xbf16>
    %43 = vector.broadcast %42 : vector<1x16x64xbf16> to vector<16x16x64xbf16>
    %44 = arith.mulf %41, %43 : vector<16x16x64xbf16>
    %c0_25 = arith.constant 0 : index
    %c0_26 = arith.constant 0 : index
    %45 = vector.load %arg27[%c0_25, %c0_26] : memref<16x64xf32, #tpu.memory_space<vmem>>, vector<16x64xf32>
    %46 = arith.extf %44 : vector<16x16x64xbf16> to vector<16x16x64xf32>
    %cst_27 = arith.constant dense<0.000000e+00> : vector<16x64xf32>
    %47 = vector.multi_reduction <add>, %46, %cst_27 [1] : vector<16x16x64xf32> to vector<16x64xf32>
    %48 = arith.addf %45, %47 : vector<16x64xf32>
    %c0_28 = arith.constant 0 : index
    %c0_29 = arith.constant 0 : index
    %49 = vector.load %arg27[%c0_28, %c0_29] : memref<16x64xf32, #tpu.memory_space<vmem>>, vector<16x64xf32>
    tpu.vector_store %arg27[%c0_28, %c0_29], %48 {strides = array<i32>} : memref<16x64xf32, #tpu.memory_space<vmem>>, vector<16x64xf32>,
    %50 = vector.shape_cast %44 : vector<16x16x64xbf16> to vector<256x64xbf16>
    %c0_30 = arith.constant 0 : index
    %c0_31 = arith.constant 0 : index
    %51 = vector.load %arg13[%c0_30, %c0_31] : memref<64x64xbf16, #tpu.memory_space<vmem>>, vector<64x64xbf16>
    %cst_32 = arith.constant dense<0.000000e+00> : vector<256x64xf32>
    %52 = tpu.matmul %50, %51, %cst_32 {dimension_numbers = #tpu.dot_dimension_numbers<[1], [0], [0], [1], [0, 0, 1, 1], [], []>} : vector<256x64xbf16>, vector<64x64xbf16>, vector<256x64xf32> -> vector<256x64xf32>
    %c0_33 = arith.constant 0 : index
    %c0_34 = arith.constant 0 : index
    %53 = vector.load %arg14[%c0_33, %c0_34] : memref<1x64xf32, #tpu.memory_space<vmem>>, vector<1x64xf32>
    %54 = vector.broadcast %53 : vector<1x64xf32> to vector<256x64xf32>
    %55 = arith.addf %52, %54 : vector<256x64xf32>
    %56 = arith.truncf %55 : vector<256x64xf32> to vector<256x64xbf16>
    %57 = vector.shape_cast %56 : vector<256x64xbf16> to vector<16x16x64xbf16>
    %c0_35 = arith.constant 0 : index
    %c0_36 = arith.constant 0 : index
    %c0_37 = arith.constant 0 : index
    %58 = vector.load %arg28[%c0_35, %c0_36, %c0_37] : memref<3x16x64xf32, #tpu.memory_space<vmem>>, vector<3x16x64xf32>
    %c0_38 = arith.constant 0 : index
    %c0_39 = arith.constant 0 : index
    %c0_40 = arith.constant 0 : index
    %c0_41 = arith.constant 0 : index
    %59 = vector.load %arg9[%c0_38, %c0_39, %c0_40, %c0_41] : memref<1x3x16x16xbf16, #tpu.memory_space<vmem>>, vector<1x1x16x16xbf16>
    %60 = vector.shape_cast %59 : vector<1x1x16x16xbf16> to vector<16x16xbf16>
    %61 = vector.shape_cast %60 : vector<16x16xbf16> to vector<16x16x1xbf16>
    %62 = vector.broadcast %61 : vector<16x16x1xbf16> to vector<16x16x64xbf16>
    %63 = arith.mulf %57, %62 : vector<16x16x64xbf16>
    %64 = arith.extf %63 : vector<16x16x64xbf16> to vector<16x16x64xf32>
    %cst_42 = arith.constant dense<0.000000e+00> : vector<16x64xf32>
    %65 = vector.multi_reduction <add>, %64, %cst_42 [1] : vector<16x16x64xf32> to vector<16x64xf32>
    %c0_43 = arith.constant 0 : index
    %c1 = arith.constant 1 : index
    %c0_44 = arith.constant 0 : index
    %c0_45 = arith.constant 0 : index
    %66 = vector.load %arg9[%c0_43, %c1, %c0_44, %c0_45] : memref<1x3x16x16xbf16, #tpu.memory_space<vmem>>, vector<1x1x16x16xbf16>
    %67 = vector.shape_cast %66 : vector<1x1x16x16xbf16> to vector<16x16xbf16>
    %68 = vector.shape_cast %67 : vector<16x16xbf16> to vector<16x16x1xbf16>
    %69 = vector.broadcast %68 : vector<16x16x1xbf16> to vector<16x16x64xbf16>
    %70 = arith.mulf %57, %69 : vector<16x16x64xbf16>
    %71 = arith.extf %70 : vector<16x16x64xbf16> to vector<16x16x64xf32>
    %cst_46 = arith.constant dense<0.000000e+00> : vector<16x64xf32>
    %72 = vector.multi_reduction <add>, %71, %cst_46 [1] : vector<16x16x64xf32> to vector<16x64xf32>
    %c0_47 = arith.constant 0 : index
    %c2 = arith.constant 2 : index
    %c0_48 = arith.constant 0 : index
    %c0_49 = arith.constant 0 : index
    %73 = vector.load %arg9[%c0_47, %c2, %c0_48, %c0_49] : memref<1x3x16x16xbf16, #tpu.memory_space<vmem>>, vector<1x1x16x16xbf16>
    %74 = vector.shape_cast %73 : vector<1x1x16x16xbf16> to vector<16x16xbf16>
    %75 = vector.shape_cast %74 : vector<16x16xbf16> to vector<16x16x1xbf16>
    %76 = vector.broadcast %75 : vector<16x16x1xbf16> to vector<16x16x64xbf16>
    %77 = arith.mulf %57, %76 : vector<16x16x64xbf16>
    %78 = arith.extf %77 : vector<16x16x64xbf16> to vector<16x16x64xf32>
    %cst_50 = arith.constant dense<0.000000e+00> : vector<16x64xf32>
    %79 = vector.multi_reduction <add>, %78, %cst_50 [1] : vector<16x16x64xf32> to vector<16x64xf32>
    %80 = vector.shape_cast %65 : vector<16x64xf32> to vector<1x16x64xf32>
    %81 = vector.shape_cast %72 : vector<16x64xf32> to vector<1x16x64xf32>
    %82 = vector.shape_cast %79 : vector<16x64xf32> to vector<1x16x64xf32>
    %83 = tpu.concatenate %80, %81, %82 in 0 : vector<1x16x64xf32>, vector<1x16x64xf32>, vector<1x16x64xf32> -> vector<3x16x64xf32>
    %84 = arith.addf %58, %83 : vector<3x16x64xf32>
    %c0_51 = arith.constant 0 : index
    %c0_52 = arith.constant 0 : index
    %c0_53 = arith.constant 0 : index
    %85 = vector.load %arg28[%c0_51, %c0_52, %c0_53] : memref<3x16x64xf32, #tpu.memory_space<vmem>>, vector<3x16x64xf32>
    tpu.vector_store %arg28[%c0_51, %c0_52, %c0_53], %84 {strides = array<i32>} : memref<3x16x64xf32, #tpu.memory_space<vmem>>, vector<3x16x64xf32>,
    %c0_i32_54 = arith.constant 0 : i32
    %86 = arith.cmpi eq, %arg2, %c0_i32_54 : i32
    %87 = arith.extui %86 : i1 to i32
    %c0_i32_55 = arith.constant 0 : i32
    %88 = arith.cmpi ne, %87, %c0_i32_55 : i32
    scf.if %88 {
      %c0_56 = arith.constant 0 : index
      %c0_57 = arith.constant 0 : index
      %89 = vector.load %arg27[%c0_56, %c0_57] : memref<16x64xf32, #tpu.memory_space<vmem>>, vector<16x64xf32>
      %c0_58 = arith.constant 0 : index
      %c0_59 = arith.constant 0 : index
      %c0_60 = arith.constant 0 : index
      %90 = vector.load %arg28[%c0_58, %c0_59, %c0_60] : memref<3x16x64xf32, #tpu.memory_space<vmem>>, vector<1x16x64xf32>
      %91 = vector.shape_cast %90 : vector<1x16x64xf32> to vector<16x64xf32>
      %c1_61 = arith.constant 1 : index
      %c0_62 = arith.constant 0 : index
      %c0_63 = arith.constant 0 : index
      %92 = vector.load %arg28[%c1_61, %c0_62, %c0_63] : memref<3x16x64xf32, #tpu.memory_space<vmem>>, vector<1x16x64xf32>
      %93 = vector.shape_cast %92 : vector<1x16x64xf32> to vector<16x64xf32>
      %c2_64 = arith.constant 2 : index
      %c0_65 = arith.constant 0 : index
      %c0_66 = arith.constant 0 : index
      %94 = vector.load %arg28[%c2_64, %c0_65, %c0_66] : memref<3x16x64xf32, #tpu.memory_space<vmem>>, vector<1x16x64xf32>
      %95 = vector.shape_cast %94 : vector<1x16x64xf32> to vector<16x64xf32>
      %96 = arith.mulf %91, %91 : vector<16x64xf32>
      %97 = arith.mulf %93, %93 : vector<16x64xf32>
      %98 = arith.addf %96, %97 : vector<16x64xf32>
      %99 = arith.mulf %95, %95 : vector<16x64xf32>
      %100 = arith.addf %98, %99 : vector<16x64xf32>
      %101 = math.sqrt %100 : vector<16x64xf32>
      %cst_67 = arith.constant 9.99999996E-13 : f32
      %102 = vector.broadcast %cst_67 : f32 to vector<16x64xf32>
      %103 = arith.maximumf %101, %102 : vector<16x64xf32>
      %cst_68 = arith.constant dense<0xFF800000> : vector<16xf32>
      %104 = vector.multi_reduction <maximumf>, %103, %cst_68 [1] : vector<16x64xf32> to vector<16xf32>
      %105 = vector.shape_cast %104 : vector<16xf32> to vector<16x1xf32>
      %cst_69 = arith.constant dense<0x7F800000> : vector<16xf32>
      %106 = vector.multi_reduction <minimumf>, %103, %cst_69 [1] : vector<16x64xf32> to vector<16xf32>
      %107 = vector.shape_cast %106 : vector<16xf32> to vector<16x1xf32>
      %108 = arith.subf %105, %107 : vector<16x1xf32>
      %cst_70 = arith.constant 0.000000e+00 : f32
      %109 = vector.broadcast %cst_70 : f32 to vector<16x1xf32>
      %110 = arith.cmpf oeq, %108, %109 : vector<16x1xf32>
      %cst_71 = arith.constant 1.000000e+00 : f32
      %111 = vector.broadcast %cst_71 : f32 to vector<16x1xf32>
      %112 = arith.select %110, %111, %108 : vector<16x1xi1>, vector<16x1xf32>
      %113 = vector.broadcast %107 : vector<16x1xf32> to vector<16x64xf32>
      %114 = arith.subf %103, %113 : vector<16x64xf32>
      %115 = vector.broadcast %112 : vector<16x1xf32> to vector<16x64xf32>
      %116 = arith.divf %114, %115 : vector<16x64xf32>
      %cst_72 = arith.constant 0.000000e+00 : f32
      %117 = vector.broadcast %cst_72 : f32 to vector<16x64xf32>
      %118 = arith.maximumf %116, %117 : vector<16x64xf32>
      %119 = arith.divf %118, %103 : vector<16x64xf32>
      %120 = arith.mulf %91, %119 : vector<16x64xf32>
      %121 = arith.mulf %93, %119 : vector<16x64xf32>
      %122 = arith.mulf %95, %119 : vector<16x64xf32>
      %123 = vector.shape_cast %120 : vector<16x64xf32> to vector<1x16x64xf32>
      %124 = vector.shape_cast %121 : vector<16x64xf32> to vector<1x16x64xf32>
      %125 = vector.shape_cast %122 : vector<16x64xf32> to vector<1x16x64xf32>
      %126 = tpu.concatenate %123, %124, %125 in 0 : vector<1x16x64xf32>, vector<1x16x64xf32>, vector<1x16x64xf32> -> vector<3x16x64xf32>
      %127 = vector.shape_cast %126 : vector<3x16x64xf32> to vector<48x64xf32>
      %c0_73 = arith.constant 0 : index
      %c0_74 = arith.constant 0 : index
      %128 = vector.load %arg15[%c0_73, %c0_74] : memref<64x128xf32, #tpu.memory_space<vmem>>, vector<64x128xf32>
      %cst_75 = arith.constant dense<0.000000e+00> : vector<48x128xf32>
      %129 = tpu.matmul %127, %128, %cst_75 {dimension_numbers = #tpu.dot_dimension_numbers<[1], [0], [0], [1], [0, 0, 1, 1], [], []>} : vector<48x64xf32>, vector<64x128xf32>, vector<48x128xf32> -> vector<48x128xf32>
      %130 = vector.shape_cast %129 : vector<48x128xf32> to vector<3x16x128xf32>
      %131 = vector.extract_strided_slice %130 {offsets = [0, 0, 0], sizes = [3, 16, 64], strides = [1, 1, 1]} : vector<3x16x128xf32> to vector<3x16x64xf32>
      %132 = arith.truncf %131 : vector<3x16x64xf32> to vector<3x16x64xbf16>
      %c0_76 = arith.constant 0 : index
      %c0_77 = arith.constant 0 : index
      %c0_78 = arith.constant 0 : index
      %c0_79 = arith.constant 0 : index
      %133 = vector.load %arg25[%c0_76, %c0_77, %c0_78, %c0_79] : memref<1x3x16x64xbf16, #tpu.memory_space<vmem>>, vector<1x3x16x64xbf16>
      %134 = vector.shape_cast %133 : vector<1x3x16x64xbf16> to vector<3x16x64xbf16>
      %135 = vector.shape_cast %132 : vector<3x16x64xbf16> to vector<1x3x16x64xbf16>
      tpu.vector_store %arg25[%c0_76, %c0_77, %c0_78, %c0_79], %135 {strides = array<i32>} : memref<1x3x16x64xbf16, #tpu.memory_space<vmem>>, vector<1x3x16x64xbf16>,
      %136 = vector.extract_strided_slice %130 {offsets = [0, 0, 64], sizes = [3, 16, 64], strides = [1, 1, 1]} : vector<3x16x128xf32> to vector<3x16x64xf32>
      %137 = arith.truncf %136 : vector<3x16x64xf32> to vector<3x16x64xbf16>
      %c0_80 = arith.constant 0 : index
      %c0_81 = arith.constant 0 : index
      %c0_82 = arith.constant 0 : index
      %c0_83 = arith.constant 0 : index
      %138 = vector.load %arg26[%c0_80, %c0_81, %c0_82, %c0_83] : memref<1x3x16x64xbf16, #tpu.memory_space<vmem>>, vector<1x3x16x64xbf16>
      %139 = vector.shape_cast %138 : vector<1x3x16x64xbf16> to vector<3x16x64xbf16>
      %140 = vector.shape_cast %137 : vector<3x16x64xbf16> to vector<1x3x16x64xbf16>
      tpu.vector_store %arg26[%c0_80, %c0_81, %c0_82, %c0_83], %140 {strides = array<i32>} : memref<1x3x16x64xbf16, #tpu.memory_space<vmem>>, vector<1x3x16x64xbf16>,
      %c0_84 = arith.constant 0 : index
      %c0_85 = arith.constant 0 : index
      %c0_86 = arith.constant 0 : index
      %141 = vector.load %arg6[%c0_84, %c0_85, %c0_86] : memref<1x16x64xf32, #tpu.memory_space<vmem>>, vector<1x16x64xf32>
      %142 = vector.shape_cast %141 : vector<1x16x64xf32> to vector<16x64xf32>
      %143 = arith.addf %89, %142 : vector<16x64xf32>
      %cst_87 = arith.constant dense<0.000000e+00> : vector<16xf32>
      %144 = vector.multi_reduction <add>, %143, %cst_87 [1] : vector<16x64xf32> to vector<16xf32>
      %145 = vector.shape_cast %144 : vector<16xf32> to vector<16x1xf32>
      %cst_88 = arith.constant 6.400000e+01 : f32
      %146 = vector.broadcast %cst_88 : f32 to vector<16x1xf32>
      %147 = arith.divf %145, %146 : vector<16x1xf32>
      %148 = vector.broadcast %147 : vector<16x1xf32> to vector<16x64xf32>
      %149 = arith.subf %143, %148 : vector<16x64xf32>
      %150 = arith.mulf %149, %149 : vector<16x64xf32>
      %cst_89 = arith.constant dense<0.000000e+00> : vector<16xf32>
      %151 = vector.multi_reduction <add>, %150, %cst_89 [1] : vector<16x64xf32> to vector<16xf32>
      %152 = vector.shape_cast %151 : vector<16xf32> to vector<16x1xf32>
      %cst_90 = arith.constant 6.400000e+01 : f32
      %153 = vector.broadcast %cst_90 : f32 to vector<16x1xf32>
      %154 = arith.divf %152, %153 : vector<16x1xf32>
      %155 = vector.broadcast %147 : vector<16x1xf32> to vector<16x64xf32>
      %156 = arith.subf %143, %155 : vector<16x64xf32>
      %cst_91 = arith.constant 9.99999974E-6 : f32
      %157 = vector.broadcast %cst_91 : f32 to vector<16x1xf32>
      %158 = arith.addf %154, %157 : vector<16x1xf32>
      %159 = math.rsqrt %158 : vector<16x1xf32>
      %160 = vector.broadcast %159 : vector<16x1xf32> to vector<16x64xf32>
      %161 = arith.mulf %156, %160 : vector<16x64xf32>
      %c0_92 = arith.constant 0 : index
      %c0_93 = arith.constant 0 : index
      %162 = vector.load %arg20[%c0_92, %c0_93] : memref<1x64xf32, #tpu.memory_space<vmem>>, vector<1x64xf32>
      %163 = vector.broadcast %162 : vector<1x64xf32> to vector<16x64xf32>
      %164 = arith.mulf %161, %163 : vector<16x64xf32>
      %c0_94 = arith.constant 0 : index
      %c0_95 = arith.constant 0 : index
      %165 = vector.load %arg21[%c0_94, %c0_95] : memref<1x64xf32, #tpu.memory_space<vmem>>, vector<1x64xf32>
      %166 = vector.broadcast %165 : vector<1x64xf32> to vector<16x64xf32>
      %167 = arith.addf %164, %166 : vector<16x64xf32>
      %c0_96 = arith.constant 0 : index
      %c0_97 = arith.constant 0 : index
      %168 = vector.load %arg16[%c0_96, %c0_97] : memref<64x128xf32, #tpu.memory_space<vmem>>, vector<64x128xf32>
      %cst_98 = arith.constant dense<0.000000e+00> : vector<16x128xf32>
      %169 = tpu.matmul %167, %168, %cst_98 {dimension_numbers = #tpu.dot_dimension_numbers<[1], [0], [0], [1], [0, 0, 1, 1], [], []>} : vector<16x64xf32>, vector<64x128xf32>, vector<16x128xf32> -> vector<16x128xf32>
      %c0_99 = arith.constant 0 : index
      %c0_100 = arith.constant 0 : index
      %170 = vector.load %arg17[%c0_99, %c0_100] : memref<1x128xf32, #tpu.memory_space<vmem>>, vector<1x128xf32>
      %171 = vector.broadcast %170 : vector<1x128xf32> to vector<16x128xf32>
      %172 = arith.addf %169, %171 : vector<16x128xf32>
      %cst_101 = arith.constant 0.000000e+00 : f32
      %173 = vector.broadcast %cst_101 : f32 to vector<16x128xf32>
      %174 = arith.maximumf %172, %173 : vector<16x128xf32>
      %c0_102 = arith.constant 0 : index
      %c0_103 = arith.constant 0 : index
      %175 = vector.load %arg18[%c0_102, %c0_103] : memref<128x64xf32, #tpu.memory_space<vmem>>, vector<128x64xf32>
      %cst_104 = arith.constant dense<0.000000e+00> : vector<16x64xf32>
      %176 = tpu.matmul %174, %175, %cst_104 {dimension_numbers = #tpu.dot_dimension_numbers<[1], [0], [0], [1], [0, 0, 1, 1], [], []>} : vector<16x128xf32>, vector<128x64xf32>, vector<16x64xf32> -> vector<16x64xf32>
      %c0_105 = arith.constant 0 : index
      %c0_106 = arith.constant 0 : index
      %177 = vector.load %arg19[%c0_105, %c0_106] : memref<1x64xf32, #tpu.memory_space<vmem>>, vector<1x64xf32>
      %178 = vector.broadcast %177 : vector<1x64xf32> to vector<16x64xf32>
      %179 = arith.addf %176, %178 : vector<16x64xf32>
      %180 = arith.addf %179, %167 : vector<16x64xf32>
      %cst_107 = arith.constant dense<0.000000e+00> : vector<16xf32>
      %181 = vector.multi_reduction <add>, %180, %cst_107 [1] : vector<16x64xf32> to vector<16xf32>
      %182 = vector.shape_cast %181 : vector<16xf32> to vector<16x1xf32>
      %cst_108 = arith.constant 6.400000e+01 : f32
      %183 = vector.broadcast %cst_108 : f32 to vector<16x1xf32>
      %184 = arith.divf %182, %183 : vector<16x1xf32>
      %185 = vector.broadcast %184 : vector<16x1xf32> to vector<16x64xf32>
      %186 = arith.subf %180, %185 : vector<16x64xf32>
      %187 = arith.mulf %186, %186 : vector<16x64xf32>
      %cst_109 = arith.constant dense<0.000000e+00> : vector<16xf32>
      %188 = vector.multi_reduction <add>, %187, %cst_109 [1] : vector<16x64xf32> to vector<16xf32>
      %189 = vector.shape_cast %188 : vector<16xf32> to vector<16x1xf32>
      %cst_110 = arith.constant 6.400000e+01 : f32
      %190 = vector.broadcast %cst_110 : f32 to vector<16x1xf32>
      %191 = arith.divf %189, %190 : vector<16x1xf32>
      %192 = vector.broadcast %184 : vector<16x1xf32> to vector<16x64xf32>
      %193 = arith.subf %180, %192 : vector<16x64xf32>
      %cst_111 = arith.constant 9.99999974E-6 : f32
      %194 = vector.broadcast %cst_111 : f32 to vector<16x1xf32>
      %195 = arith.addf %191, %194 : vector<16x1xf32>
      %196 = math.rsqrt %195 : vector<16x1xf32>
      %197 = vector.broadcast %196 : vector<16x1xf32> to vector<16x64xf32>
      %198 = arith.mulf %193, %197 : vector<16x64xf32>
      %c0_112 = arith.constant 0 : index
      %c0_113 = arith.constant 0 : index
      %199 = vector.load %arg22[%c0_112, %c0_113] : memref<1x64xf32, #tpu.memory_space<vmem>>, vector<1x64xf32>
      %200 = vector.broadcast %199 : vector<1x64xf32> to vector<16x64xf32>
      %201 = arith.mulf %198, %200 : vector<16x64xf32>
      %c0_114 = arith.constant 0 : index
      %c0_115 = arith.constant 0 : index
      %202 = vector.load %arg23[%c0_114, %c0_115] : memref<1x64xf32, #tpu.memory_space<vmem>>, vector<1x64xf32>
      %203 = vector.broadcast %202 : vector<1x64xf32> to vector<16x64xf32>
      %204 = arith.addf %201, %203 : vector<16x64xf32>
      %c0_116 = arith.constant 0 : index
      %c0_117 = arith.constant 0 : index
      %c0_118 = arith.constant 0 : index
      %205 = vector.load %arg24[%c0_116, %c0_117, %c0_118] : memref<1x16x64xf32, #tpu.memory_space<vmem>>, vector<1x16x64xf32>
      %206 = vector.shape_cast %205 : vector<1x16x64xf32> to vector<16x64xf32>
      %207 = vector.shape_cast %204 : vector<16x64xf32> to vector<1x16x64xf32>
      tpu.vector_store %arg24[%c0_116, %c0_117, %c0_118], %207 {strides = array<i32>} : memref<1x16x64xf32, #tpu.memory_space<vmem>>, vector<1x16x64xf32>,
    } else {
    }
    return
  }
  func.func @transform_0(%arg0: i32, %arg1: i32, %arg2: i32) -> (i32, i32, i32) {
    %c0_i32 = arith.constant 0 : i32
    %c0_i32_0 = arith.constant 0 : i32
    return %arg0, %arg1, %c0_i32 : i32, i32, i32
  }
  func.func @transform_1(%arg0: i32, %arg1: i32, %arg2: i32) -> (i32, i32, i32) {
    %c0_i32 = arith.constant 0 : i32
    %c0_i32_0 = arith.constant 0 : i32
    return %arg0, %arg2, %c0_i32 : i32, i32, i32
  }
  func.func @transform_2(%arg0: i32, %arg1: i32, %arg2: i32) -> (i32, i32, i32) {
    %c0_i32 = arith.constant 0 : i32
    %c0_i32_0 = arith.constant 0 : i32
    return %arg0, %arg2, %c0_i32 : i32, i32, i32
  }
  func.func @transform_3(%arg0: i32, %arg1: i32, %arg2: i32) -> (i32, i32, i32) {
    %c0_i32 = arith.constant 0 : i32
    %c0_i32_0 = arith.constant 0 : i32
    return %arg0, %arg1, %c0_i32 : i32, i32, i32
  }
  func.func @transform_4(%arg0: i32, %arg1: i32, %arg2: i32) -> (i32, i32, i32, i32) {
    %c0_i32 = arith.constant 0 : i32
    %c0_i32_0 = arith.constant 0 : i32
    return %arg0, %arg1, %arg2, %c0_i32 : i32, i32, i32, i32
  }
  func.func @transform_5(%arg0: i32, %arg1: i32, %arg2: i32) -> (i32, i32, i32) {
    %c0_i32 = arith.constant 0 : i32
    return %arg0, %arg1, %arg2 : i32, i32, i32
  }
  func.func @transform_6(%arg0: i32, %arg1: i32, %arg2: i32) -> (i32, i32, i32, i32) {
    %c0_i32 = arith.constant 0 : i32
    %c0_i32_0 = arith.constant 0 : i32
    return %arg0, %c0_i32, %arg1, %arg2 : i32, i32, i32, i32
  }
  func.func @transform_7(%arg0: i32, %arg1: i32, %arg2: i32) -> (i32, i32) {
    %c0_i32 = arith.constant 0 : i32
    %c0_i32_0 = arith.constant 0 : i32
    %c0_i32_1 = arith.constant 0 : i32
    return %c0_i32, %c0_i32_0 : i32, i32
  }
  func.func @transform_8(%arg0: i32, %arg1: i32, %arg2: i32) -> (i32, i32) {
    %c0_i32 = arith.constant 0 : i32
    %c0_i32_0 = arith.constant 0 : i32
    %c0_i32_1 = arith.constant 0 : i32
    return %c0_i32, %c0_i32_0 : i32, i32
  }
  func.func @transform_9(%arg0: i32, %arg1: i32, %arg2: i32) -> (i32, i32) {
    %c0_i32 = arith.constant 0 : i32
    %c0_i32_0 = arith.constant 0 : i32
    %c0_i32_1 = arith.constant 0 : i32
    return %c0_i32, %c0_i32_0 : i32, i32
  }
  func.func @transform_10(%arg0: i32, %arg1: i32, %arg2: i32) -> (i32, i32) {
    %c0_i32 = arith.constant 0 : i32
    %c0_i32_0 = arith.constant 0 : i32
    %c0_i32_1 = arith.constant 0 : i32
    return %c0_i32, %c0_i32_0 : i32, i32
  }
  func.func @transform_11(%arg0: i32, %arg1: i32, %arg2: i32) -> (i32, i32) {
    %c0_i32 = arith.constant 0 : i32
    %c0_i32_0 = arith.constant 0 : i32
    %c0_i32_1 = arith.constant 0 : i32
    return %c0_i32, %c0_i32_0 : i32, i32
  }
  func.func @transform_12(%arg0: i32, %arg1: i32, %arg2: i32) -> (i32, i32) {
    %c0_i32 = arith.constant 0 : i32
    %c0_i32_0 = arith.constant 0 : i32
    %c0_i32_1 = arith.constant 0 : i32
    return %c0_i32, %c0_i32_0 : i32, i32
  }
  func.func @transform_13(%arg0: i32, %arg1: i32, %arg2: i32) -> (i32, i32) {
    %c0_i32 = arith.constant 0 : i32
    %c0_i32_0 = arith.constant 0 : i32
    %c0_i32_1 = arith.constant 0 : i32
    return %c0_i32, %c0_i32_0 : i32, i32
  }
  func.func @transform_14(%arg0: i32, %arg1: i32, %arg2: i32) -> (i32, i32) {
    %c0_i32 = arith.constant 0 : i32
    %c0_i32_0 = arith.constant 0 : i32
    %c0_i32_1 = arith.constant 0 : i32
    return %c0_i32, %c0_i32_0 : i32, i32
  }
  func.func @transform_15(%arg0: i32, %arg1: i32, %arg2: i32) -> (i32, i32) {
    %c0_i32 = arith.constant 0 : i32
    %c0_i32_0 = arith.constant 0 : i32
    %c0_i32_1 = arith.constant 0 : i32
    return %c0_i32, %c0_i32_0 : i32, i32
  }
  func.func @transform_16(%arg0: i32, %arg1: i32, %arg2: i32) -> (i32, i32) {
    %c0_i32 = arith.constant 0 : i32
    %c0_i32_0 = arith.constant 0 : i32
    %c0_i32_1 = arith.constant 0 : i32
    return %c0_i32, %c0_i32_0 : i32, i32
  }
  func.func @transform_17(%arg0: i32, %arg1: i32, %arg2: i32) -> (i32, i32) {
    %c0_i32 = arith.constant 0 : i32
    %c0_i32_0 = arith.constant 0 : i32
    %c0_i32_1 = arith.constant 0 : i32
    return %c0_i32, %c0_i32_0 : i32, i32
  }
  func.func @transform_18(%arg0: i32, %arg1: i32, %arg2: i32) -> (i32, i32) {
    %c0_i32 = arith.constant 0 : i32
    %c0_i32_0 = arith.constant 0 : i32
    %c0_i32_1 = arith.constant 0 : i32
    return %c0_i32, %c0_i32_0 : i32, i32
  }
  func.func @transform_19(%arg0: i32, %arg1: i32, %arg2: i32) -> (i32, i32) {
    %c0_i32 = arith.constant 0 : i32
    %c0_i32_0 = arith.constant 0 : i32
    %c0_i32_1 = arith.constant 0 : i32
    return %c0_i32, %c0_i32_0 : i32, i32
  }
  func.func @transform_20(%arg0: i32, %arg1: i32, %arg2: i32) -> (i32, i32) {
    %c0_i32 = arith.constant 0 : i32
    %c0_i32_0 = arith.constant 0 : i32
    %c0_i32_1 = arith.constant 0 : i32
    return %c0_i32, %c0_i32_0 : i32, i32
  }
  func.func @transform_21(%arg0: i32, %arg1: i32, %arg2: i32) -> (i32, i32, i32) {
    %c0_i32 = arith.constant 0 : i32
    %c0_i32_0 = arith.constant 0 : i32
    return %arg0, %arg1, %c0_i32 : i32, i32, i32
  }
  func.func @transform_22(%arg0: i32, %arg1: i32, %arg2: i32) -> (i32, i32, i32, i32) {
    %c0_i32 = arith.constant 0 : i32
    %c0_i32_0 = arith.constant 0 : i32
    %c0_i32_1 = arith.constant 0 : i32
    return %arg0, %c0_i32, %arg1, %c0_i32_0 : i32, i32, i32, i32
  }
  func.func @transform_23(%arg0: i32, %arg1: i32, %arg2: i32) -> (i32, i32, i32, i32) {
    %c0_i32 = arith.constant 0 : i32
    %c0_i32_0 = arith.constant 0 : i32
    %c0_i32_1 = arith.constant 0 : i32
    return %arg0, %c0_i32, %arg1, %c0_i32_0 : i32, i32, i32, i32
  }
}

</mosaic_0001>

<llo_original>
// kernel: tpu_custom_call.1
$region0: #{tpu_custom_call.1}
  #allocation0 [shape = 'u32[]', space=smem, size = 0x4, offset = 0x4, fixed_abs, tag = 'smem constant byte address 0x4 - core index']
  #allocation1 [shape = 'u32[144,128]{1,0:T(1,128)}', space=vmem, size = 0x12000, scoped, tag = 'internal scratch']
  #allocation2 [shape = 'f32[16,64]{1,0:T(8,128)}', space=vmem, size = 0x2000, scoped, tag = 'scratch operand']
  #allocation3 [shape = 'f32[3,16,64]{2,1,0:T(8,128)}', space=vmem, size = 0x6000, scoped, tag = 'scratch operand']
  %s0 = inlined_call_operand.hbm [shape: f32[2,16,64], index: 0, kind: input, shape index: {}]
  %s1 = inlined_call_operand.hbm [shape: f32[2,16,64], index: 1, kind: input, shape index: {}]
  %s2 = inlined_call_operand.hbm [shape: f32[2,16,64], index: 2, kind: input, shape index: {}]
  %s3 = inlined_call_operand.hbm [shape: f32[2,16,64], index: 3, kind: input, shape index: {}]
  %s4 = inlined_call_operand.hbm [shape: bf16[2,16,16,64], index: 4, kind: input, shape index: {}]
  %s5 = inlined_call_operand.hbm [shape: f32[2,16,16], index: 5, kind: input, shape index: {}]
  %s6 = inlined_call_operand.vmem [shape: bf16[2,3,16,16], index: 6, kind: input, shape index: {}]
  %s7 = inlined_call_operand.hbm [shape: bf16[64,64], index: 7, kind: input, shape index: {}]
  %s8 = inlined_call_operand.hbm [shape: bf16[64,64], index: 8, kind: input, shape index: {}]
  %s9 = inlined_call_operand.vmem [shape: f32[1,64], index: 9, kind: input, shape index: {}]
  %s10 = inlined_call_operand.vmem [shape: bf16[64,64], index: 10, kind: input, shape index: {}]
  %s11 = inlined_call_operand.vmem [shape: f32[1,64], index: 11, kind: input, shape index: {}]
  %s12 = inlined_call_operand.vmem [shape: f32[64,128], index: 12, kind: input, shape index: {}]
  %s13 = inlined_call_operand.vmem [shape: f32[64,128], index: 13, kind: input, shape index: {}]
  %s14 = inlined_call_operand.vmem [shape: f32[1,128], index: 14, kind: input, shape index: {}]
  %s15 = inlined_call_operand.vmem [shape: f32[128,64], index: 15, kind: input, shape index: {}]
  %s16 = inlined_call_operand.vmem [shape: f32[1,64], index: 16, kind: input, shape index: {}]
  %s17 = inlined_call_operand.vmem [shape: f32[1,64], index: 17, kind: input, shape index: {}]
  %s18 = inlined_call_operand.vmem [shape: f32[1,64], index: 18, kind: input, shape index: {}]
  %s19 = inlined_call_operand.vmem [shape: f32[1,64], index: 19, kind: input, shape index: {}]
  %s20 = inlined_call_operand.vmem [shape: f32[1,64], index: 20, kind: input, shape index: {}]
  %s21 = inlined_call_operand.hbm [shape: f32[2,16,64], index: 21, kind: output, shape index: {0}]
  %s22 = inlined_call_operand.hbm [shape: bf16[2,3,16,64], index: 22, kind: output, shape index: {1}]
  %s23 = inlined_call_operand.hbm [shape: bf16[2,3,16,64], index: 23, kind: output, shape index: {2}]
  %24 = xla_tuple %s21, %s22, %s23
  %s25 = sld [smem:[#allocation0]]
  $region173: #{tpu_custom_call.1} parent=0
    _
  %s27 = ssub.s32 1, %s25
  %s28 = scalar_select 0, %s27, %s25
  $region1: #{tpu_custom_call.1} parent=0
    #allocation4 [shape = 'u8[16384]{0}', space=vmem, size = 0x4000, scoped, tag = 'input window, operand 0']
    #allocation5 [shape = 's32[2]{0}', space=sflag, size = 0x8, scoped, tag = 'scoped memory for tpu_custom_call.1']
    #allocation6 [shape = 's32[2]{0}', space=sflag, size = 0x8, scoped, tag = 'scoped memory for tpu_custom_call.1']
    #allocation7 [shape = 'u8[16384]{0}', space=vmem, size = 0x4000, scoped, tag = 'input window, operand 1']
    #allocation8 [shape = 's32[2]{0}', space=sflag, size = 0x8, scoped, tag = 'scoped memory for tpu_custom_call.1']
    #allocation9 [shape = 'u8[16384]{0}', space=vmem, size = 0x4000, scoped, tag = 'input window, operand 2']
    #allocation10 [shape = 'u8[16384]{0}', space=vmem, size = 0x4000, scoped, tag = 'input window, operand 3']
    #allocation11 [shape = 's32[2]{0}', space=sflag, size = 0x8, scoped, tag = 'scoped memory for tpu_custom_call.1']
    #allocation12 [shape = 'u8[131072]{0}', space=vmem, size = 0x20000, scoped, tag = 'input window, operand 4']
    #allocation13 [shape = 'u8[16384]{0}', space=vmem, size = 0x4000, scoped, tag = 'input window, operand 5']
    #allocation14 [shape = 's32[2]{0}', space=sflag, size = 0x8, scoped, tag = 'scoped memory for tpu_custom_call.1']
    #allocation15 [shape = 'u8[16384]{0}', space=vmem, size = 0x4000, scoped, tag = 'input window, operand 7, single buffered']
    #allocation16 [shape = 'u8[16384]{0}', space=vmem, size = 0x4000, scoped, tag = 'input window, operand 8, single buffered']
    #allocation17 [shape = 's32[1]{0}', space=sflag, size = 0x4, scoped, tag = 'scoped memory for tpu_custom_call.1']
    #allocation18 [shape = 'u8[16384]{0}', space=vmem, size = 0x4000, scoped, tag = 'output window, operand 0']
    #allocation19 [shape = 'u8[24576]{0}', space=vmem, size = 0x6000, scoped, tag = 'output window, operand 1']
    #allocation20 [shape = 's32[2]{0}', space=sflag, size = 0x8, scoped, tag = 'scoped memory for tpu_custom_call.1']
    #allocation21 [shape = 'u8[24576]{0}', space=vmem, size = 0x6000, scoped, tag = 'output window, operand 2']
    %29 = vsyncpa [#allocation5], 0
    %s30 = scalar_lea.sflag [#allocation5], 1
    %31 = vsyncpa %s30, 0
    %32 = vsyncpa [#allocation8], 0
    %s33 = scalar_lea.sflag [#allocation8], 1
    %34 = vsyncpa %s33, 0
    %35 = vsyncpa [#allocation11], 0
    %s36 = scalar_lea.sflag [#allocation11], 1
    %37 = vsyncpa %s36, 0
    %38 = vsyncpa [#allocation14], 0
    %s39 = scalar_lea.sflag [#allocation14], 1
    %40 = vsyncpa %s39, 0
    %41 = vsyncpa [#allocation17], 0
    %42 = vsyncpa [#allocation6], 0
    %s43 = scalar_lea.sflag [#allocation6], 1
    %44 = vsyncpa %s43, 0
    %45 = vsyncpa [#allocation20], 0
    %s46 = scalar_lea.sflag [#allocation20], 1
    %47 = vsyncpa %s46, 0
    loop: start=0, step=1, limit=4
    $region2: #{tpu_custom_call.1} parent=1 // loop_pre_header
      _
    $region3: #{tpu_custom_call.1} parent=1 // loop_header
      %s49 = sphi 0, %s53
      %p50 = scmp.ge.s32.totalorder %s49, 4
      %s56 = sphi 0, %s75
      %s57 = sphi 0, %s71
      %s58 = sphi 0, %s67
      %s59 = sphi 0, %s56
      %s60 = sphi 0, %s57
      %s61 = sphi 0, %s58
      %s62 = sphi 0, %s59
      %s63 = sphi 0, %s60
      %s64 = sphi 0, %s61
      %s80 = sphi 0, %s82
      %s83 = sphi 0, %s80
      %s84 = sphi 0, %s83
      %s100 = sphi 0, %s84
      %s108 = sphi 0, %s110
      %s111 = sphi 0, %s108
      %s112 = sphi 0, %s111
      %s128 = sphi 0, %s112
      %s136 = sphi 0, %s138
      %s139 = sphi 0, %s136
      %s140 = sphi 0, %s139
      %s156 = sphi 0, %s140
      %s164 = sphi 0, %s166
      %s167 = sphi 0, %s164
      %s168 = sphi 0, %s167
      %s184 = sphi 0, %s168
      %s194 = sphi 0, %s196
      %s197 = sphi 0, %s194
      %s198 = sphi 0, %s197
      %s214 = sphi 0, %s198
      %s224 = sphi 0, %s226
      %s227 = sphi 0, %s224
      %s228 = sphi 0, %s227
      %s244 = sphi 0, %s228
      %s254 = sphi 0, %s256
      %s257 = sphi 0, %s254
      %s258 = sphi 0, %s257
      %s274 = sphi 0, %s258
      %s278 = sphi 0, %s278
      %s280 = sphi 0, %s278
      %s281 = sphi 0, %s280
      %s295 = sphi 0, %s281
      %s299 = sphi 0, %s299
      %s301 = sphi 0, %s299
      %s302 = sphi 0, %s301
      %s316 = sphi 0, %s302
      %s320 = sphi 0, %s320
      %s322 = sphi 0, %s320
      %s323 = sphi 0, %s322
      %s337 = sphi 0, %s323
      %s341 = sphi 0, %s341
      %s343 = sphi 0, %s341
      %s344 = sphi 0, %s343
      %s358 = sphi 0, %s344
      %s362 = sphi 0, %s362
      %s364 = sphi 0, %s362
      %s365 = sphi 0, %s364
      %s379 = sphi 0, %s365
      %s383 = sphi 0, %s383
      %s385 = sphi 0, %s383
      %s386 = sphi 0, %s385
      %s400 = sphi 0, %s386
      %s404 = sphi 0, %s404
      %s406 = sphi 0, %s404
      %s407 = sphi 0, %s406
      %s421 = sphi 0, %s407
      %s425 = sphi 0, %s425
      %s427 = sphi 0, %s425
      %s428 = sphi 0, %s427
      %s442 = sphi 0, %s428
      %s446 = sphi 0, %s446
      %s448 = sphi 0, %s446
      %s449 = sphi 0, %s448
      %s463 = sphi 0, %s449
      %s467 = sphi 0, %s467
      %s469 = sphi 0, %s467
      %s470 = sphi 0, %s469
      %s484 = sphi 0, %s470
      %s488 = sphi 0, %s488
      %s490 = sphi 0, %s488
      %s491 = sphi 0, %s490
      %s505 = sphi 0, %s491
      %s509 = sphi 0, %s509
      %s511 = sphi 0, %s509
      %s512 = sphi 0, %s511
      %s526 = sphi 0, %s512
      %s530 = sphi 0, %s530
      %s532 = sphi 0, %s530
      %s533 = sphi 0, %s532
      %s547 = sphi 0, %s533
      %s551 = sphi 0, %s551
      %s553 = sphi 0, %s551
      %s554 = sphi 0, %s553
      %s568 = sphi 0, %s554
      %s576 = sphi 0, %s578
      %s579 = sphi 0, %s576
      %s580 = sphi 0, %s579
      %s596 = sphi 0, %s580
      %s604 = sphi 0, %s606
      %s607 = sphi 0, %s604
      %s608 = sphi 0, %s607
      %s624 = sphi 0, %s608
      %s632 = sphi 0, %s634
      %s635 = sphi 0, %s632
      %s636 = sphi 0, %s635
      %s652 = sphi 0, %s636
    $region4: #{tpu_custom_call.1} parent=1 // loop_header_branch
      %52 = sbr.rel (%p50) target = $region8
    $region5: #{tpu_custom_call.1} parent=1 // loop_body
      %s54 = ssub.s32 %s49, 1
      %s55 = ssub.s32 %s49, 2
      %s65 = sadd.s32 1, %s58
      %p66 = scmp.ge.s32.totalorder %s65, 1
      %s67 = scalar_select %p66, 0, %s65
      %s68 = sadd.s32 1, %s57
      %s69 = scalar_select %p66, %s68, %s57
      %p70 = scmp.ge.s32.totalorder %s69, 1
      %s71 = scalar_select %p70, 0, %s69
      %s72 = sadd.s32 1, %s56
      %s73 = scalar_select %p70, %s72, %s56
      %p74 = scmp.ge.s32.totalorder %s73, 2
      %s75 = scalar_select %p74, 0, %s73
      %s76 = ssub.s32 %s56, %s75
      %s77 = ssub.s32 %s57, %s71
      %s78 = sor.u32 %s76, %s77
      %p79 = scmp.eq.s32.totalorder %s78, 0
      %s81 = sadd.s32 %s80, 1
      %s82 = scalar_select %p79, %s80, %s81
      %p85 = pneg %p79
      %p86 = scmp.eq.s32.totalorder %s49, 1
      %p87 = por %p85, %p86
      %p88 = scmp.ne.s32.totalorder %s80, %s83
      %p89 = scmp.eq.s32.totalorder %s49, 0
      %p90 = por %p88, %p89
      %p91 = scmp.ne.s32.totalorder %s80, %s83
      %p92 = scmp.eq.s32.totalorder %s54, 1
      %p93 = por %p91, %p92
      %p94 = scmp.ne.s32.totalorder %s83, %s84
      %p95 = scmp.eq.s32.totalorder %s54, 0
      %p96 = por %p94, %p95
      %p97 = scmp.ne.s32.totalorder %s83, %s84
      %p98 = scmp.eq.s32.totalorder %s55, 1
      %p99 = por %p97, %p98
      %p101 = scmp.ne.s32.totalorder %s84, %s100
      %p102 = scmp.eq.s32.totalorder %s55, 0
      %p103 = por %p101, %p102
      %s104 = ssub.s32 %s56, %s75
      %s105 = ssub.s32 %s58, %s67
      %s106 = sor.u32 %s104, %s105
      %p107 = scmp.eq.s32.totalorder %s106, 0
      %s109 = sadd.s32 %s108, 1
      %s110 = scalar_select %p107, %s108, %s109
      %p113 = pneg %p107
      %p114 = scmp.eq.s32.totalorder %s49, 1
      %p115 = por %p113, %p114
      %p116 = scmp.ne.s32.totalorder %s108, %s111
      %p117 = scmp.eq.s32.totalorder %s49, 0
      %p118 = por %p116, %p117
      %p119 = scmp.ne.s32.totalorder %s108, %s111
      %p120 = scmp.eq.s32.totalorder %s54, 1
      %p121 = por %p119, %p120
      %p122 = scmp.ne.s32.totalorder %s111, %s112
      %p123 = scmp.eq.s32.totalorder %s54, 0
      %p124 = por %p122, %p123
      %p125 = scmp.ne.s32.totalorder %s111, %s112
      %p126 = scmp.eq.s32.totalorder %s55, 1
      %p127 = por %p125, %p126
      %p129 = scmp.ne.s32.totalorder %s112, %s128
      %p130 = scmp.eq.s32.totalorder %s55, 0
      %p131 = por %p129, %p130
      %s132 = ssub.s32 %s56, %s75
      %s133 = ssub.s32 %s58, %s67
      %s134 = sor.u32 %s132, %s133
      %p135 = scmp.eq.s32.totalorder %s134, 0
      %s137 = sadd.s32 %s136, 1
      %s138 = scalar_select %p135, %s136, %s137
      %p141 = pneg %p135
      %p142 = scmp.eq.s32.totalorder %s49, 1
      %p143 = por %p141, %p142
      %p144 = scmp.ne.s32.totalorder %s136, %s139
      %p145 = scmp.eq.s32.totalorder %s49, 0
      %p146 = por %p144, %p145
      %p147 = scmp.ne.s32.totalorder %s136, %s139
      %p148 = scmp.eq.s32.totalorder %s54, 1
      %p149 = por %p147, %p148
      %p150 = scmp.ne.s32.totalorder %s139, %s140
      %p151 = scmp.eq.s32.totalorder %s54, 0
      %p152 = por %p150, %p151
      %p153 = scmp.ne.s32.totalorder %s139, %s140
      %p154 = scmp.eq.s32.totalorder %s55, 1
      %p155 = por %p153, %p154
      %p157 = scmp.ne.s32.totalorder %s140, %s156
      %p158 = scmp.eq.s32.totalorder %s55, 0
      %p159 = por %p157, %p158
      %s160 = ssub.s32 %s56, %s75
      %s161 = ssub.s32 %s57, %s71
      %s162 = sor.u32 %s160, %s161
      %p163 = scmp.eq.s32.totalorder %s162, 0
      %s165 = sadd.s32 %s164, 1
      %s166 = scalar_select %p163, %s164, %s165
      %p169 = pneg %p163
      %p170 = scmp.eq.s32.totalorder %s49, 1
      %p171 = por %p169, %p170
      %p172 = scmp.ne.s32.totalorder %s164, %s167
      %p173 = scmp.eq.s32.totalorder %s49, 0
      %p174 = por %p172, %p173
      %p175 = scmp.ne.s32.totalorder %s164, %s167
      %p176 = scmp.eq.s32.totalorder %s54, 1
      %p177 = por %p175, %p176
      %p178 = scmp.ne.s32.totalorder %s167, %s168
      %p179 = scmp.eq.s32.totalorder %s54, 0
      %p180 = por %p178, %p179
      %p181 = scmp.ne.s32.totalorder %s167, %s168
      %p182 = scmp.eq.s32.totalorder %s55, 1
      %p183 = por %p181, %p182
      %p185 = scmp.ne.s32.totalorder %s168, %s184
      %p186 = scmp.eq.s32.totalorder %s55, 0
      %p187 = por %p185, %p186
      %s188 = ssub.s32 %s56, %s75
      %s189 = ssub.s32 %s57, %s71
      %s190 = sor.u32 %s188, %s189
      %s191 = ssub.s32 %s58, %s67
      %s192 = sor.u32 %s190, %s191
      %p193 = scmp.eq.s32.totalorder %s192, 0
      %s195 = sadd.s32 %s194, 1
      %s196 = scalar_select %p193, %s194, %s195
      %p199 = pneg %p193
      %p200 = scmp.eq.s32.totalorder %s49, 1
      %p201 = por %p199, %p200
      %p202 = scmp.ne.s32.totalorder %s194, %s197
      %p203 = scmp.eq.s32.totalorder %s49, 0
      %p204 = por %p202, %p203
      %p205 = scmp.ne.s32.totalorder %s194, %s197
      %p206 = scmp.eq.s32.totalorder %s54, 1
      %p207 = por %p205, %p206
      %p208 = scmp.ne.s32.totalorder %s197, %s198
      %p209 = scmp.eq.s32.totalorder %s54, 0
      %p210 = por %p208, %p209
      %p211 = scmp.ne.s32.totalorder %s197, %s198
      %p212 = scmp.eq.s32.totalorder %s55, 1
      %p213 = por %p211, %p212
      %p215 = scmp.ne.s32.totalorder %s198, %s214
      %p216 = scmp.eq.s32.totalorder %s55, 0
      %p217 = por %p215, %p216
      %s218 = ssub.s32 %s56, %s75
      %s219 = ssub.s32 %s57, %s71
      %s220 = sor.u32 %s218, %s219
      %s221 = ssub.s32 %s58, %s67
      %s222 = sor.u32 %s220, %s221
      %p223 = scmp.eq.s32.totalorder %s222, 0
      %s225 = sadd.s32 %s224, 1
      %s226 = scalar_select %p223, %s224, %s225
      %p229 = pneg %p223
      %p230 = scmp.eq.s32.totalorder %s49, 1
      %p231 = por %p229, %p230
      %p232 = scmp.ne.s32.totalorder %s224, %s227
      %p233 = scmp.eq.s32.totalorder %s49, 0
      %p234 = por %p232, %p233
      %p235 = scmp.ne.s32.totalorder %s224, %s227
      %p236 = scmp.eq.s32.totalorder %s54, 1
      %p237 = por %p235, %p236
      %p238 = scmp.ne.s32.totalorder %s227, %s228
      %p239 = scmp.eq.s32.totalorder %s54, 0
      %p240 = por %p238, %p239
      %p241 = scmp.ne.s32.totalorder %s227, %s228
      %p242 = scmp.eq.s32.totalorder %s55, 1
      %p243 = por %p241, %p242
      %p245 = scmp.ne.s32.totalorder %s228, %s244
      %p246 = scmp.eq.s32.totalorder %s55, 0
      %p247 = por %p245, %p246
      %s248 = ssub.s32 %s56, %s75
      %s249 = ssub.s32 %s57, %s71
      %s250 = sor.u32 %s248, %s249
      %s251 = ssub.s32 %s58, %s67
      %s252 = sor.u32 %s250, %s251
      %p253 = scmp.eq.s32.totalorder %s252, 0
      %s255 = sadd.s32 %s254, 1
      %s256 = scalar_select %p253, %s254, %s255
      %p259 = pneg %p253
      %p260 = scmp.eq.s32.totalorder %s49, 1
      %p261 = por %p259, %p260
      %p262 = scmp.ne.s32.totalorder %s254, %s257
      %p263 = scmp.eq.s32.totalorder %s49, 0
      %p264 = por %p262, %p263
      %p265 = scmp.ne.s32.totalorder %s254, %s257
      %p266 = scmp.eq.s32.totalorder %s54, 1
      %p267 = por %p265, %p266
      %p268 = scmp.ne.s32.totalorder %s257, %s258
      %p269 = scmp.eq.s32.totalorder %s54, 0
      %p270 = por %p268, %p269
      %p271 = scmp.ne.s32.totalorder %s257, %s258
      %p272 = scmp.eq.s32.totalorder %s55, 1
      %p273 = por %p271, %p272
      %p275 = scmp.ne.s32.totalorder %s258, %s274
      %p276 = scmp.eq.s32.totalorder %s55, 0
      %p277 = por %p275, %p276
      %s279 = sadd.s32 %s278, 1
      %p282 = scmp.eq.s32.totalorder %s49, 1
      %p283 = scmp.ne.s32.totalorder %s278, %s280
      %p284 = scmp.eq.s32.totalorder %s49, 0
      %p285 = por %p283, %p284
      %p286 = scmp.ne.s32.totalorder %s278, %s280
      %p287 = scmp.eq.s32.totalorder %s54, 1
      %p288 = por %p286, %p287
      %p289 = scmp.ne.s32.totalorder %s280, %s281
      %p290 = scmp.eq.s32.totalorder %s54, 0
      %p291 = por %p289, %p290
      %p292 = scmp.ne.s32.totalorder %s280, %s281
      %p293 = scmp.eq.s32.totalorder %s55, 1
      %p294 = por %p292, %p293
      %p296 = scmp.ne.s32.totalorder %s281, %s295
      %p297 = scmp.eq.s32.totalorder %s55, 0
      %p298 = por %p296, %p297
      %s300 = sadd.s32 %s299, 1
      %p303 = scmp.eq.s32.totalorder %s49, 1
      %p304 = scmp.ne.s32.totalorder %s299, %s301
      %p305 = scmp.eq.s32.totalorder %s49, 0
      %p306 = por %p304, %p305
      %p307 = scmp.ne.s32.totalorder %s299, %s301
      %p308 = scmp.eq.s32.totalorder %s54, 1
      %p309 = por %p307, %p308
      %p310 = scmp.ne.s32.totalorder %s301, %s302
      %p311 = scmp.eq.s32.totalorder %s54, 0
      %p312 = por %p310, %p311
      %p313 = scmp.ne.s32.totalorder %s301, %s302
      %p314 = scmp.eq.s32.totalorder %s55, 1
      %p315 = por %p313, %p314
      %p317 = scmp.ne.s32.totalorder %s302, %s316
      %p318 = scmp.eq.s32.totalorder %s55, 0
      %p319 = por %p317, %p318
      %s321 = sadd.s32 %s320, 1
      %p324 = scmp.eq.s32.totalorder %s49, 1
      %p325 = scmp.ne.s32.totalorder %s320, %s322
      %p326 = scmp.eq.s32.totalorder %s49, 0
      %p327 = por %p325, %p326
      %p328 = scmp.ne.s32.totalorder %s320, %s322
      %p329 = scmp.eq.s32.totalorder %s54, 1
      %p330 = por %p328, %p329
      %p331 = scmp.ne.s32.totalorder %s322, %s323
      %p332 = scmp.eq.s32.totalorder %s54, 0
      %p333 = por %p331, %p332
      %p334 = scmp.ne.s32.totalorder %s322, %s323
      %p335 = scmp.eq.s32.totalorder %s55, 1
      %p336 = por %p334, %p335
      %p338 = scmp.ne.s32.totalorder %s323, %s337
      %p339 = scmp.eq.s32.totalorder %s55, 0
      %p340 = por %p338, %p339
      %s342 = sadd.s32 %s341, 1
      %p345 = scmp.eq.s32.totalorder %s49, 1
      %p346 = scmp.ne.s32.totalorder %s341, %s343
      %p347 = scmp.eq.s32.totalorder %s49, 0
      %p348 = por %p346, %p347
      %p349 = scmp.ne.s32.totalorder %s341, %s343
      %p350 = scmp.eq.s32.totalorder %s54, 1
      %p351 = por %p349, %p350
      %p352 = scmp.ne.s32.totalorder %s343, %s344
      %p353 = scmp.eq.s32.totalorder %s54, 0
      %p354 = por %p352, %p353
      %p355 = scmp.ne.s32.totalorder %s343, %s344
      %p356 = scmp.eq.s32.totalorder %s55, 1
      %p357 = por %p355, %p356
      %p359 = scmp.ne.s32.totalorder %s344, %s358
      %p360 = scmp.eq.s32.totalorder %s55, 0
      %p361 = por %p359, %p360
      %s363 = sadd.s32 %s362, 1
      %p366 = scmp.eq.s32.totalorder %s49, 1
      %p367 = scmp.ne.s32.totalorder %s362, %s364
      %p368 = scmp.eq.s32.totalorder %s49, 0
      %p369 = por %p367, %p368
      %p370 = scmp.ne.s32.totalorder %s362, %s364
      %p371 = scmp.eq.s32.totalorder %s54, 1
      %p372 = por %p370, %p371
      %p373 = scmp.ne.s32.totalorder %s364, %s365
      %p374 = scmp.eq.s32.totalorder %s54, 0
      %p375 = por %p373, %p374
      %p376 = scmp.ne.s32.totalorder %s364, %s365
      %p377 = scmp.eq.s32.totalorder %s55, 1
      %p378 = por %p376, %p377
      %p380 = scmp.ne.s32.totalorder %s365, %s379
      %p381 = scmp.eq.s32.totalorder %s55, 0
      %p382 = por %p380, %p381
      %s384 = sadd.s32 %s383, 1
      %p387 = scmp.eq.s32.totalorder %s49, 1
      %p388 = scmp.ne.s32.totalorder %s383, %s385
      %p389 = scmp.eq.s32.totalorder %s49, 0
      %p390 = por %p388, %p389
      %p391 = scmp.ne.s32.totalorder %s383, %s385
      %p392 = scmp.eq.s32.totalorder %s54, 1
      %p393 = por %p391, %p392
      %p394 = scmp.ne.s32.totalorder %s385, %s386
      %p395 = scmp.eq.s32.totalorder %s54, 0
      %p396 = por %p394, %p395
      %p397 = scmp.ne.s32.totalorder %s385, %s386
      %p398 = scmp.eq.s32.totalorder %s55, 1
      %p399 = por %p397, %p398
      %p401 = scmp.ne.s32.totalorder %s386, %s400
      %p402 = scmp.eq.s32.totalorder %s55, 0
      %p403 = por %p401, %p402
      %s405 = sadd.s32 %s404, 1
      %p408 = scmp.eq.s32.totalorder %s49, 1
      %p409 = scmp.ne.s32.totalorder %s404, %s406
      %p410 = scmp.eq.s32.totalorder %s49, 0
      %p411 = por %p409, %p410
      %p412 = scmp.ne.s32.totalorder %s404, %s406
      %p413 = scmp.eq.s32.totalorder %s54, 1
      %p414 = por %p412, %p413
      %p415 = scmp.ne.s32.totalorder %s406, %s407
      %p416 = scmp.eq.s32.totalorder %s54, 0
      %p417 = por %p415, %p416
      %p418 = scmp.ne.s32.totalorder %s406, %s407
      %p419 = scmp.eq.s32.totalorder %s55, 1
      %p420 = por %p418, %p419
      %p422 = scmp.ne.s32.totalorder %s407, %s421
      %p423 = scmp.eq.s32.totalorder %s55, 0
      %p424 = por %p422, %p423
      %s426 = sadd.s32 %s425, 1
      %p429 = scmp.eq.s32.totalorder %s49, 1
      %p430 = scmp.ne.s32.totalorder %s425, %s427
      %p431 = scmp.eq.s32.totalorder %s49, 0
      %p432 = por %p430, %p431
      %p433 = scmp.ne.s32.totalorder %s425, %s427
      %p434 = scmp.eq.s32.totalorder %s54, 1
      %p435 = por %p433, %p434
      %p436 = scmp.ne.s32.totalorder %s427, %s428
      %p437 = scmp.eq.s32.totalorder %s54, 0
      %p438 = por %p436, %p437
      %p439 = scmp.ne.s32.totalorder %s427, %s428
      %p440 = scmp.eq.s32.totalorder %s55, 1
      %p441 = por %p439, %p440
      %p443 = scmp.ne.s32.totalorder %s428, %s442
      %p444 = scmp.eq.s32.totalorder %s55, 0
      %p445 = por %p443, %p444
      %s447 = sadd.s32 %s446, 1
      %p450 = scmp.eq.s32.totalorder %s49, 1
      %p451 = scmp.ne.s32.totalorder %s446, %s448
      %p452 = scmp.eq.s32.totalorder %s49, 0
      %p453 = por %p451, %p452
      %p454 = scmp.ne.s32.totalorder %s446, %s448
      %p455 = scmp.eq.s32.totalorder %s54, 1
      %p456 = por %p454, %p455
      %p457 = scmp.ne.s32.totalorder %s448, %s449
      %p458 = scmp.eq.s32.totalorder %s54, 0
      %p459 = por %p457, %p458
      %p460 = scmp.ne.s32.totalorder %s448, %s449
      %p461 = scmp.eq.s32.totalorder %s55, 1
      %p462 = por %p460, %p461
      %p464 = scmp.ne.s32.totalorder %s449, %s463
      %p465 = scmp.eq.s32.totalorder %s55, 0
      %p466 = por %p464, %p465
      %s468 = sadd.s32 %s467, 1
      %p471 = scmp.eq.s32.totalorder %s49, 1
      %p472 = scmp.ne.s32.totalorder %s467, %s469
      %p473 = scmp.eq.s32.totalorder %s49, 0
      %p474 = por %p472, %p473
      %p475 = scmp.ne.s32.totalorder %s467, %s469
      %p476 = scmp.eq.s32.totalorder %s54, 1
      %p477 = por %p475, %p476
      %p478 = scmp.ne.s32.totalorder %s469, %s470
      %p479 = scmp.eq.s32.totalorder %s54, 0
      %p480 = por %p478, %p479
      %p481 = scmp.ne.s32.totalorder %s469, %s470
      %p482 = scmp.eq.s32.totalorder %s55, 1
      %p483 = por %p481, %p482
      %p485 = scmp.ne.s32.totalorder %s470, %s484
      %p486 = scmp.eq.s32.totalorder %s55, 0
      %p487 = por %p485, %p486
      %s489 = sadd.s32 %s488, 1
      %p492 = scmp.eq.s32.totalorder %s49, 1
      %p493 = scmp.ne.s32.totalorder %s488, %s490
      %p494 = scmp.eq.s32.totalorder %s49, 0
      %p495 = por %p493, %p494
      %p496 = scmp.ne.s32.totalorder %s488, %s490
      %p497 = scmp.eq.s32.totalorder %s54, 1
      %p498 = por %p496, %p497
      %p499 = scmp.ne.s32.totalorder %s490, %s491
      %p500 = scmp.eq.s32.totalorder %s54, 0
      %p501 = por %p499, %p500
      %p502 = scmp.ne.s32.totalorder %s490, %s491
      %p503 = scmp.eq.s32.totalorder %s55, 1
      %p504 = por %p502, %p503
      %p506 = scmp.ne.s32.totalorder %s491, %s505
      %p507 = scmp.eq.s32.totalorder %s55, 0
      %p508 = por %p506, %p507
      %s510 = sadd.s32 %s509, 1
      %p513 = scmp.eq.s32.totalorder %s49, 1
      %p514 = scmp.ne.s32.totalorder %s509, %s511
      %p515 = scmp.eq.s32.totalorder %s49, 0
      %p516 = por %p514, %p515
      %p517 = scmp.ne.s32.totalorder %s509, %s511
      %p518 = scmp.eq.s32.totalorder %s54, 1
      %p519 = por %p517, %p518
      %p520 = scmp.ne.s32.totalorder %s511, %s512
      %p521 = scmp.eq.s32.totalorder %s54, 0
      %p522 = por %p520, %p521
      %p523 = scmp.ne.s32.totalorder %s511, %s512
      %p524 = scmp.eq.s32.totalorder %s55, 1
      %p525 = por %p523, %p524
      %p527 = scmp.ne.s32.totalorder %s512, %s526
      %p528 = scmp.eq.s32.totalorder %s55, 0
      %p529 = por %p527, %p528
      %s531 = sadd.s32 %s530, 1
      %p534 = scmp.eq.s32.totalorder %s49, 1
      %p535 = scmp.ne.s32.totalorder %s530, %s532
      %p536 = scmp.eq.s32.totalorder %s49, 0
      %p537 = por %p535, %p536
      %p538 = scmp.ne.s32.totalorder %s530, %s532
      %p539 = scmp.eq.s32.totalorder %s54, 1
      %p540 = por %p538, %p539
      %p541 = scmp.ne.s32.totalorder %s532, %s533
      %p542 = scmp.eq.s32.totalorder %s54, 0
      %p543 = por %p541, %p542
      %p544 = scmp.ne.s32.totalorder %s532, %s533
      %p545 = scmp.eq.s32.totalorder %s55, 1
      %p546 = por %p544, %p545
      %p548 = scmp.ne.s32.totalorder %s533, %s547
      %p549 = scmp.eq.s32.totalorder %s55, 0
      %p550 = por %p548, %p549
      %s552 = sadd.s32 %s551, 1
      %p555 = scmp.eq.s32.totalorder %s49, 1
      %p556 = scmp.ne.s32.totalorder %s551, %s553
      %p557 = scmp.eq.s32.totalorder %s49, 0
      %p558 = por %p556, %p557
      %p559 = scmp.ne.s32.totalorder %s551, %s553
      %p560 = scmp.eq.s32.totalorder %s54, 1
      %p561 = por %p559, %p560
      %p562 = scmp.ne.s32.totalorder %s553, %s554
      %p563 = scmp.eq.s32.totalorder %s54, 0
      %p564 = por %p562, %p563
      %p565 = scmp.ne.s32.totalorder %s553, %s554
      %p566 = scmp.eq.s32.totalorder %s55, 1
      %p567 = por %p565, %p566
      %p569 = scmp.ne.s32.totalorder %s554, %s568
      %p570 = scmp.eq.s32.totalorder %s55, 0
      %p571 = por %p569, %p570
      %s572 = ssub.s32 %s56, %s75
      %s573 = ssub.s32 %s57, %s71
      %s574 = sor.u32 %s572, %s573
      %p575 = scmp.eq.s32.totalorder %s574, 0
      %s577 = sadd.s32 %s576, 1
      %s578 = scalar_select %p575, %s576, %s577
      %p581 = pneg %p575
      %p582 = scmp.eq.s32.totalorder %s49, 1
      %p583 = por %p581, %p582
      %p584 = scmp.ne.s32.totalorder %s576, %s579
      %p585 = scmp.eq.s32.totalorder %s49, 0
      %p586 = por %p584, %p585
      %p587 = scmp.ne.s32.totalorder %s576, %s579
      %p588 = scmp.eq.s32.totalorder %s54, 1
      %p589 = por %p587, %p588
      %p590 = scmp.ne.s32.totalorder %s579, %s580
      %p591 = scmp.eq.s32.totalorder %s54, 0
      %p592 = por %p590, %p591
      %p593 = scmp.ne.s32.totalorder %s579, %s580
      %p594 = scmp.eq.s32.totalorder %s55, 1
      %p595 = por %p593, %p594
      %p597 = scmp.ne.s32.totalorder %s580, %s596
      %p598 = scmp.eq.s32.totalorder %s55, 0
      %p599 = por %p597, %p598
      %s600 = ssub.s32 %s56, %s75
      %s601 = ssub.s32 %s57, %s71
      %s602 = sor.u32 %s600, %s601
      %p603 = scmp.eq.s32.totalorder %s602, 0
      %s605 = sadd.s32 %s604, 1
      %s606 = scalar_select %p603, %s604, %s605
      %p609 = pneg %p603
      %p610 = scmp.eq.s32.totalorder %s49, 1
      %p611 = por %p609, %p610
      %p612 = scmp.ne.s32.totalorder %s604, %s607
      %p613 = scmp.eq.s32.totalorder %s49, 0
      %p614 = por %p612, %p613
      %p615 = scmp.ne.s32.totalorder %s604, %s607
      %p616 = scmp.eq.s32.totalorder %s54, 1
      %p617 = por %p615, %p616
      %p618 = scmp.ne.s32.totalorder %s607, %s608
      %p619 = scmp.eq.s32.totalorder %s54, 0
      %p620 = por %p618, %p619
      %p621 = scmp.ne.s32.totalorder %s607, %s608
      %p622 = scmp.eq.s32.totalorder %s55, 1
      %p623 = por %p621, %p622
      %p625 = scmp.ne.s32.totalorder %s608, %s624
      %p626 = scmp.eq.s32.totalorder %s55, 0
      %p627 = por %p625, %p626
      %s628 = ssub.s32 %s56, %s75
      %s629 = ssub.s32 %s57, %s71
      %s630 = sor.u32 %s628, %s629
      %p631 = scmp.eq.s32.totalorder %s630, 0
      %s633 = sadd.s32 %s632, 1
      %s634 = scalar_select %p631, %s632, %s633
      %p637 = pneg %p631
      %p638 = scmp.eq.s32.totalorder %s49, 1
      %p639 = por %p637, %p638
      %p640 = scmp.ne.s32.totalorder %s632, %s635
      %p641 = scmp.eq.s32.totalorder %s49, 0
      %p642 = por %p640, %p641
      %p643 = scmp.ne.s32.totalorder %s632, %s635
      %p644 = scmp.eq.s32.totalorder %s54, 1
      %p645 = por %p643, %p644
      %p646 = scmp.ne.s32.totalorder %s635, %s636
      %p647 = scmp.eq.s32.totalorder %s54, 0
      %p648 = por %p646, %p647
      %p649 = scmp.ne.s32.totalorder %s635, %s636
      %p650 = scmp.eq.s32.totalorder %s55, 1
      %p651 = por %p649, %p650
      %p653 = scmp.ne.s32.totalorder %s636, %s652
      %p654 = scmp.eq.s32.totalorder %s55, 0
      %p655 = por %p653, %p654
      %p656 = scmp.le.s32.totalorder 1, %s49
      %p657 = scmp.lt.s32.totalorder %s49, 3
      %p658 = pnand %p656, %p657
      %p659 = pneg %p658
      // Predicated region
      $region9: #{tpu_custom_call.1} parent=5 // pred_check
        _
      $region10: #{tpu_custom_call.1} parent=5 // pred_check_branch
        %661 = sbr.rel (%p658) target = $region12
      $region11: #{tpu_custom_call.1} parent=5 // pred_region
        %s662 = ssub.s32 %s49, 1
        // Predicated region
        $region13: #{tpu_custom_call.1} parent=11 // pred_check
          %p663 = pneg %p291
        $region14: #{tpu_custom_call.1} parent=11 // pred_check_branch
          %665 = sbr.rel (%p663) target = $region16
        $region15: #{tpu_custom_call.1} parent=11 // pred_region
          %s667 = ssub.s32 512, 512
          %668 = vsyncadd [#allocation14], %s667
          %s669 = sshll.u32 [#allocation15], 4
          %s670 = int_to_ptr.vmem [resolvable:$true] %s669
          %675 = dma.hbm_to_vmem [thread:$0]  %s7, 512, %s670, [#allocation14], 64, 64, 4
        $region16: #{tpu_custom_call.1} parent=11 // pred_fallthru
          _
        // Predicated region
        $region17: #{tpu_custom_call.1} parent=11 // pred_check
          %p676 = pneg %p312
        $region18: #{tpu_custom_call.1} parent=11 // pred_check_branch
          %678 = sbr.rel (%p676) target = $region20
        $region19: #{tpu_custom_call.1} parent=11 // pred_region
          %s680 = ssub.s32 512, 512
          %681 = vsyncadd [#allocation17], %s680
          %s682 = sshll.u32 [#allocation16], 4
          %s683 = int_to_ptr.vmem [resolvable:$true] %s682
          %688 = dma.hbm_to_vmem [thread:$0]  %s8, 512, %s683, [#allocation17], 64, 64, 4
        $region20: #{tpu_custom_call.1} parent=11 // pred_fallthru
          _
        // Predicated region
        $region21: #{tpu_custom_call.1} parent=11 // pred_check
          %p689 = pneg %p333
        $region22: #{tpu_custom_call.1} parent=11 // pred_check_branch
          %691 = sbr.rel (%p689) target = $region24
        $region23: #{tpu_custom_call.1} parent=11 // pred_region
          _
        $region24: #{tpu_custom_call.1} parent=11 // pred_fallthru
          _
        // Predicated region
        $region25: #{tpu_custom_call.1} parent=11 // pred_check
          %p692 = pneg %p354
        $region26: #{tpu_custom_call.1} parent=11 // pred_check_branch
          %694 = sbr.rel (%p692) target = $region28
        $region27: #{tpu_custom_call.1} parent=11 // pred_region
          _
        $region28: #{tpu_custom_call.1} parent=11 // pred_fallthru
          _
        // Predicated region
        $region29: #{tpu_custom_call.1} parent=11 // pred_check
          %p695 = pneg %p375
        $region30: #{tpu_custom_call.1} parent=11 // pred_check_branch
          %697 = sbr.rel (%p695) target = $region32
        $region31: #{tpu_custom_call.1} parent=11 // pred_region
          _
        $region32: #{tpu_custom_call.1} parent=11 // pred_fallthru
          _
        // Predicated region
        $region33: #{tpu_custom_call.1} parent=11 // pred_check
          %p698 = pneg %p396
        $region34: #{tpu_custom_call.1} parent=11 // pred_check_branch
          %700 = sbr.rel (%p698) target = $region36
        $region35: #{tpu_custom_call.1} parent=11 // pred_region
          _
        $region36: #{tpu_custom_call.1} parent=11 // pred_fallthru
          _
        // Predicated region
        $region37: #{tpu_custom_call.1} parent=11 // pred_check
          %p701 = pneg %p417
        $region38: #{tpu_custom_call.1} parent=11 // pred_check_branch
          %703 = sbr.rel (%p701) target = $region40
        $region39: #{tpu_custom_call.1} parent=11 // pred_region
          _
        $region40: #{tpu_custom_call.1} parent=11 // pred_fallthru
          _
        // Predicated region
        $region41: #{tpu_custom_call.1} parent=11 // pred_check
          %p704 = pneg %p438
        $region42: #{tpu_custom_call.1} parent=11 // pred_check_branch
          %706 = sbr.rel (%p704) target = $region44
        $region43: #{tpu_custom_call.1} parent=11 // pred_region
          _
        $region44: #{tpu_custom_call.1} parent=11 // pred_fallthru
          _
        // Predicated region
        $region45: #{tpu_custom_call.1} parent=11 // pred_check
          %p707 = pneg %p459
        $region46: #{tpu_custom_call.1} parent=11 // pred_check_branch
          %709 = sbr.rel (%p707) target = $region48
        $region47: #{tpu_custom_call.1} parent=11 // pred_region
          _
        $region48: #{tpu_custom_call.1} parent=11 // pred_fallthru
          _
        // Predicated region
        $region49: #{tpu_custom_call.1} parent=11 // pred_check
          %p710 = pneg %p480
        $region50: #{tpu_custom_call.1} parent=11 // pred_check_branch
          %712 = sbr.rel (%p710) target = $region52
        $region51: #{tpu_custom_call.1} parent=11 // pred_region
          _
        $region52: #{tpu_custom_call.1} parent=11 // pred_fallthru
          _
        // Predicated region
        $region53: #{tpu_custom_call.1} parent=11 // pred_check
          %p713 = pneg %p501
        $region54: #{tpu_custom_call.1} parent=11 // pred_check_branch
          %715 = sbr.rel (%p713) target = $region56
        $region55: #{tpu_custom_call.1} parent=11 // pred_region
          _
        $region56: #{tpu_custom_call.1} parent=11 // pred_fallthru
          _
        // Predicated region
        $region57: #{tpu_custom_call.1} parent=11 // pred_check
          %p716 = pneg %p522
        $region58: #{tpu_custom_call.1} parent=11 // pred_check_branch
          %718 = sbr.rel (%p716) target = $region60
        $region59: #{tpu_custom_call.1} parent=11 // pred_region
          _
        $region60: #{tpu_custom_call.1} parent=11 // pred_fallthru
          _
        // Predicated region
        $region61: #{tpu_custom_call.1} parent=11 // pred_check
          %p719 = pneg %p543
        $region62: #{tpu_custom_call.1} parent=11 // pred_check_branch
          %721 = sbr.rel (%p719) target = $region64
        $region63: #{tpu_custom_call.1} parent=11 // pred_region
          _
        $region64: #{tpu_custom_call.1} parent=11 // pred_fallthru
          _
        // Predicated region
        $region65: #{tpu_custom_call.1} parent=11 // pred_check
          %p722 = pneg %p564
        $region66: #{tpu_custom_call.1} parent=11 // pred_check_branch
          %724 = sbr.rel (%p722) target = $region68
        $region67: #{tpu_custom_call.1} parent=11 // pred_region
          _
        $region68: #{tpu_custom_call.1} parent=11 // pred_fallthru
          _
      $region12: #{tpu_custom_call.1} parent=5 // pred_fallthru
        _
      %p725 = scmp.lt.s32.totalorder %s49, 2
      // Predicated region
      $region69: #{tpu_custom_call.1} parent=5 // pred_check
        %p726 = pneg %p725
      $region70: #{tpu_custom_call.1} parent=5 // pred_check_branch
        %728 = sbr.rel (%p726) target = $region72
      $region71: #{tpu_custom_call.1} parent=5 // pred_region
        // Predicated region
        $region73: #{tpu_custom_call.1} parent=71 // pred_check
          %p729 = pneg %p90
        $region74: #{tpu_custom_call.1} parent=71 // pred_check_branch
          %731 = sbr.rel (%p729) target = $region76
        $region75: #{tpu_custom_call.1} parent=71 // pred_region
          %s732 = sand.u32 %s80, 1
          %s733 = scalar_lea.sflag [#allocation5], %s732
          %s734 = sand.u32 %s80, 1
          %s735 = smul.addr %s734, 16
          %s736 = scalar_lea.vmem [#allocation4], %s735
          %s737 = smul.u32 2, %s57
          %s739 = ssub.s32 256, 256
          %740 = vsyncadd %s733, %s739
          %s741 = smul.addr %s56, 2
          %s742 = sadd.s32 %s737, %s741
          %s743 = smul.addr %s742, 128
          %s744 = scalar_lea.hbm %s0, %s743
          %s745 = sshll.u32 %s736, 4
          %s746 = int_to_ptr.vmem [resolvable:$true] %s745
          %751 = dma.hbm_to_vmem [thread:$0]  %s744, 256, %s746, %s733, 128, 128, 8
        $region76: #{tpu_custom_call.1} parent=71 // pred_fallthru
          _
        // Predicated region
        $region77: #{tpu_custom_call.1} parent=71 // pred_check
          %p752 = pneg %p118
        $region78: #{tpu_custom_call.1} parent=71 // pred_check_branch
          %754 = sbr.rel (%p752) target = $region80
        $region79: #{tpu_custom_call.1} parent=71 // pred_region
          %s755 = sand.u32 %s49, 1
          %s756 = scalar_lea.sflag [#allocation8], %s755
          %s757 = sand.u32 %s108, 1
          %s758 = smul.addr %s757, 16
          %s759 = scalar_lea.vmem [#allocation7], %s758
          %s760 = smul.u32 2, %s58
          %s762 = ssub.s32 256, 256
          %763 = vsyncadd %s756, %s762
          %s764 = smul.addr %s56, 2
          %s765 = sadd.s32 %s760, %s764
          %s766 = smul.addr %s765, 128
          %s767 = scalar_lea.hbm %s1, %s766
          %s768 = sshll.u32 %s759, 4
          %s769 = int_to_ptr.vmem [resolvable:$true] %s768
          %774 = dma.hbm_to_vmem [thread:$0]  %s767, 256, %s769, %s756, 128, 128, 8
        $region80: #{tpu_custom_call.1} parent=71 // pred_fallthru
          _
        // Predicated region
        $region81: #{tpu_custom_call.1} parent=71 // pred_check
          %p775 = pneg %p146
        $region82: #{tpu_custom_call.1} parent=71 // pred_check_branch
          %777 = sbr.rel (%p775) target = $region84
        $region83: #{tpu_custom_call.1} parent=71 // pred_region
          %s778 = sand.u32 %s49, 1
          %s779 = scalar_lea.sflag [#allocation8], %s778
          %s780 = sand.u32 %s136, 1
          %s781 = smul.addr %s780, 16
          %s782 = scalar_lea.vmem [#allocation9], %s781
          %s783 = smul.u32 2, %s58
          %s785 = ssub.s32 256, 256
          %786 = vsyncadd %s779, %s785
          %s787 = smul.addr %s56, 2
          %s788 = sadd.s32 %s783, %s787
          %s789 = smul.addr %s788, 128
          %s790 = scalar_lea.hbm %s2, %s789
          %s791 = sshll.u32 %s782, 4
          %s792 = int_to_ptr.vmem [resolvable:$true] %s791
          %797 = dma.hbm_to_vmem [thread:$0]  %s790, 256, %s792, %s779, 128, 128, 8
        $region84: #{tpu_custom_call.1} parent=71 // pred_fallthru
          _
        // Predicated region
        $region85: #{tpu_custom_call.1} parent=71 // pred_check
          %p798 = pneg %p174
        $region86: #{tpu_custom_call.1} parent=71 // pred_check_branch
          %800 = sbr.rel (%p798) target = $region88
        $region87: #{tpu_custom_call.1} parent=71 // pred_region
          %s801 = sand.u32 %s49, 1
          %s802 = scalar_lea.sflag [#allocation11], %s801
          %s803 = sand.u32 %s164, 1
          %s804 = smul.addr %s803, 16
          %s805 = scalar_lea.vmem [#allocation10], %s804
          %s806 = smul.u32 2, %s57
          %s808 = ssub.s32 256, 256
          %809 = vsyncadd %s802, %s808
          %s810 = smul.addr %s56, 2
          %s811 = sadd.s32 %s806, %s810
          %s812 = smul.addr %s811, 128
          %s813 = scalar_lea.hbm %s3, %s812
          %s814 = sshll.u32 %s805, 4
          %s815 = int_to_ptr.vmem [resolvable:$true] %s814
          %820 = dma.hbm_to_vmem [thread:$0]  %s813, 256, %s815, %s802, 128, 128, 8
        $region88: #{tpu_custom_call.1} parent=71 // pred_fallthru
          _
        // Predicated region
        $region89: #{tpu_custom_call.1} parent=71 // pred_check
          %p821 = pneg %p204
        $region90: #{tpu_custom_call.1} parent=71 // pred_check_branch
          %823 = sbr.rel (%p821) target = $region92
        $region91: #{tpu_custom_call.1} parent=71 // pred_region
          %s824 = sand.u32 %s49, 1
          %s825 = scalar_lea.sflag [#allocation11], %s824
          %s826 = sand.u32 %s194, 1
          %s827 = smul.addr %s826, 128
          %s828 = scalar_lea.vmem [#allocation12], %s827
          %s829 = smul.u32 16, %s57
          %s830 = smul.u32 2, %s58
          %s832 = ssub.s32 2048, 2048
          %833 = vsyncadd %s825, %s832
          %s834 = smul.addr %s829, 2
          %s835 = sadd.s32 %s830, %s834
          %s836 = smul.addr %s56, 32
          %s837 = sadd.s32 %s835, %s836
          %s838 = smul.addr %s837, 64
          %s839 = scalar_lea.hbm %s4, %s838
          %s840 = sshll.u32 %s828, 4
          %s841 = int_to_ptr.vmem [resolvable:$true] %s840
          %846 = dma.hbm_to_vmem [thread:$0]  %s839, 2048, %s841, %s825, 64, 64, 4
        $region92: #{tpu_custom_call.1} parent=71 // pred_fallthru
          _
        // Predicated region
        $region93: #{tpu_custom_call.1} parent=71 // pred_check
          %p847 = pneg %p234
        $region94: #{tpu_custom_call.1} parent=71 // pred_check_branch
          %849 = sbr.rel (%p847) target = $region96
        $region95: #{tpu_custom_call.1} parent=71 // pred_region
          %s850 = sand.u32 %s49, 1
          %s851 = scalar_lea.sflag [#allocation14], %s850
          %s852 = sand.u32 %s224, 1
          %s853 = smul.addr %s852, 16
          %s854 = scalar_lea.vmem [#allocation13], %s853
          %s855 = smul.u32 2, %s57
          %s857 = ssub.s32 256, 256
          %858 = vsyncadd %s851, %s857
          %s859 = sadd.s32 %s58, %s855
          %s860 = smul.addr %s56, 2
          %s861 = sadd.s32 %s859, %s860
          %s862 = smul.addr %s861, 128
          %s863 = scalar_lea.hbm %s5, %s862
          %s864 = sshll.u32 %s854, 4
          %s865 = int_to_ptr.vmem [resolvable:$true] %s864
          %870 = dma.hbm_to_vmem [thread:$0]  %s863, 256, %s865, %s851, 128, 128, 8
        $region96: #{tpu_custom_call.1} parent=71 // pred_fallthru
          _
        // Predicated region
        $region97: #{tpu_custom_call.1} parent=71 // pred_check
          %p871 = pneg %p264
        $region98: #{tpu_custom_call.1} parent=71 // pred_check_branch
          %873 = sbr.rel (%p871) target = $region100
        $region99: #{tpu_custom_call.1} parent=71 // pred_region
          %s874 = smul.u32 2, %s57
          %p875 = scmp.lt.s32.totalorder %s56, 1
          %s876 = scalar_select %p875, %s56, 1
          %p877 = scmp.lt.s32.totalorder %s874, 1
          %s878 = scalar_select %p877, %s874, 1
          %p879 = scmp.lt.s32.totalorder %s58, 0
          %s880 = scalar_select %p879, %s58, 0
          %s881 = sadd.s32 %s880, %s878
          %s882 = smul.addr %s876, 6
          %s883 = sadd.s32 %s881, %s882
          %s884 = smul.addr %s883, 4
          %s885 = scalar_lea.vmem %s6, %s884
          %s886 = smul.u32 2, %s57
        $region100: #{tpu_custom_call.1} parent=71 // pred_fallthru
          _
      $region72: #{tpu_custom_call.1} parent=5 // pred_fallthru
        _
      %p887 = scmp.le.s32.totalorder 1, %s49
      %p888 = scmp.lt.s32.totalorder %s49, 3
      %p889 = pnand %p887, %p888
      %p890 = pneg %p889
      // Predicated region
      $region101: #{tpu_custom_call.1} parent=5 // pred_check
        _
      $region102: #{tpu_custom_call.1} parent=5 // pred_check_branch
        %892 = sbr.rel (%p889) target = $region104
      $region103: #{tpu_custom_call.1} parent=5 // pred_region
        %s893 = ssub.s32 %s49, 1
        %s894 = sand.u32 %s83, 1
        %s895 = scalar_lea.sflag [#allocation5], %s894
        %s896 = sand.u32 %s83, 1
        %s897 = smul.addr %s896, 16
        %s898 = scalar_lea.vmem [#allocation4], %s897
        // Predicated region
        $region105: #{tpu_custom_call.1} parent=103 // pred_check
          %p899 = pneg %p96
        $region106: #{tpu_custom_call.1} parent=103 // pred_check_branch
          %901 = sbr.rel (%p899) target = $region108
        $region107: #{tpu_custom_call.1} parent=103 // pred_region
          %902 = dma.done %s895, 256
        $region108: #{tpu_custom_call.1} parent=103 // pred_fallthru
          _
        %s903 = sand.u32 %s54, 1
        %s904 = scalar_lea.sflag [#allocation8], %s903
        %s905 = sand.u32 %s111, 1
        %s906 = smul.addr %s905, 16
        %s907 = scalar_lea.vmem [#allocation7], %s906
        // Predicated region
        $region109: #{tpu_custom_call.1} parent=103 // pred_check
          %p908 = pneg %p124
        $region110: #{tpu_custom_call.1} parent=103 // pred_check_branch
          %910 = sbr.rel (%p908) target = $region112
        $region111: #{tpu_custom_call.1} parent=103 // pred_region
          %911 = dma.done %s904, 256
        $region112: #{tpu_custom_call.1} parent=103 // pred_fallthru
          _
        %s912 = sand.u32 %s54, 1
        %s913 = scalar_lea.sflag [#allocation8], %s912
        %s914 = sand.u32 %s139, 1
        %s915 = smul.addr %s914, 16
        %s916 = scalar_lea.vmem [#allocation9], %s915
        // Predicated region
        $region113: #{tpu_custom_call.1} parent=103 // pred_check
          %p917 = pneg %p152
        $region114: #{tpu_custom_call.1} parent=103 // pred_check_branch
          %919 = sbr.rel (%p917) target = $region116
        $region115: #{tpu_custom_call.1} parent=103 // pred_region
          %920 = dma.done %s913, 256
        $region116: #{tpu_custom_call.1} parent=103 // pred_fallthru
          _
        %s921 = sand.u32 %s54, 1
        %s922 = scalar_lea.sflag [#allocation11], %s921
        %s923 = sand.u32 %s167, 1
        %s924 = smul.addr %s923, 16
        %s925 = scalar_lea.vmem [#allocation10], %s924
        // Predicated region
        $region117: #{tpu_custom_call.1} parent=103 // pred_check
          %p926 = pneg %p180
        $region118: #{tpu_custom_call.1} parent=103 // pred_check_branch
          %928 = sbr.rel (%p926) target = $region120
        $region119: #{tpu_custom_call.1} parent=103 // pred_region
          %929 = dma.done %s922, 256
        $region120: #{tpu_custom_call.1} parent=103 // pred_fallthru
          _
        %s930 = sand.u32 %s54, 1
        %s931 = scalar_lea.sflag [#allocation11], %s930
        %s932 = sand.u32 %s197, 1
        %s933 = smul.addr %s932, 128
        %s934 = scalar_lea.vmem [#allocation12], %s933
        // Predicated region
        $region121: #{tpu_custom_call.1} parent=103 // pred_check
          %p935 = pneg %p210
        $region122: #{tpu_custom_call.1} parent=103 // pred_check_branch
          %937 = sbr.rel (%p935) target = $region124
        $region123: #{tpu_custom_call.1} parent=103 // pred_region
          %938 = dma.done %s931, 2048
        $region124: #{tpu_custom_call.1} parent=103 // pred_fallthru
          _
        %s939 = sand.u32 %s54, 1
        %s940 = scalar_lea.sflag [#allocation14], %s939
        %s941 = sand.u32 %s227, 1
        %s942 = smul.addr %s941, 16
        %s943 = scalar_lea.vmem [#allocation13], %s942
        // Predicated region
        $region125: #{tpu_custom_call.1} parent=103 // pred_check
          %p944 = pneg %p240
        $region126: #{tpu_custom_call.1} parent=103 // pred_check_branch
          %946 = sbr.rel (%p944) target = $region128
        $region127: #{tpu_custom_call.1} parent=103 // pred_region
          %947 = dma.done %s940, 256
        $region128: #{tpu_custom_call.1} parent=103 // pred_fallthru
          _
        // Predicated region
        $region129: #{tpu_custom_call.1} parent=103 // pred_check
          %p948 = pneg %p291
        $region130: #{tpu_custom_call.1} parent=103 // pred_check_branch
          %950 = sbr.rel (%p948) target = $region132
        $region131: #{tpu_custom_call.1} parent=103 // pred_region
          %951 = dma.done [#allocation14], 512
        $region132: #{tpu_custom_call.1} parent=103 // pred_fallthru
          _
        // Predicated region
        $region133: #{tpu_custom_call.1} parent=103 // pred_check
          %p952 = pneg %p312
        $region134: #{tpu_custom_call.1} parent=103 // pred_check_branch
          %954 = sbr.rel (%p952) target = $region136
        $region135: #{tpu_custom_call.1} parent=103 // pred_region
          %955 = dma.done [#allocation17], 512
        $region136: #{tpu_custom_call.1} parent=103 // pred_fallthru
          _
        %s956 = sand.u32 %s83, 1
        %s957 = scalar_lea.sflag [#allocation5], %s956
        %s958 = sand.u32 %s83, 1
        %s959 = smul.addr %s958, 16
        %s960 = scalar_lea.vmem [#allocation4], %s959
        %p961 = pneg %p96
        %p962 = pneg %p93
        %s963 = sand.u32 %s54, 1
        %s964 = scalar_lea.sflag [#allocation8], %s963
        %s965 = sand.u32 %s111, 1
        %s966 = smul.addr %s965, 16
        %s967 = scalar_lea.vmem [#allocation7], %s966
        %p968 = pneg %p124
        %p969 = pneg %p121
        %s970 = sand.u32 %s54, 1
        %s971 = scalar_lea.sflag [#allocation8], %s970
        %s972 = sand.u32 %s139, 1
        %s973 = smul.addr %s972, 16
        %s974 = scalar_lea.vmem [#allocation9], %s973
        %p975 = pneg %p152
        %p976 = pneg %p149
        %s977 = sand.u32 %s54, 1
        %s978 = scalar_lea.sflag [#allocation11], %s977
        %s979 = sand.u32 %s167, 1
        %s980 = smul.addr %s979, 16
        %s981 = scalar_lea.vmem [#allocation10], %s980
        %p982 = pneg %p180
        %p983 = pneg %p177
        %s984 = sand.u32 %s54, 1
        %s985 = scalar_lea.sflag [#allocation11], %s984
        %s986 = sand.u32 %s197, 1
        %s987 = smul.addr %s986, 128
        %s988 = scalar_lea.vmem [#allocation12], %s987
        %p989 = pneg %p210
        %p990 = pneg %p207
        %s991 = sand.u32 %s54, 1
        %s992 = scalar_lea.sflag [#allocation14], %s991
        %s993 = sand.u32 %s227, 1
        %s994 = smul.addr %s993, 16
        %s995 = scalar_lea.vmem [#allocation13], %s994
        %p996 = pneg %p240
        %p997 = pneg %p237
        %s998 = smul.u32 2, %s60
        %p999 = scmp.lt.s32.totalorder %s59, 1
        %s1000 = scalar_select %p999, %s59, 1
        %p1001 = scmp.lt.s32.totalorder %s998, 1
        %s1002 = scalar_select %p1001, %s998, 1
        %p1003 = scmp.lt.s32.totalorder %s61, 0
        %s1004 = scalar_select %p1003, %s61, 0
        %s1005 = sadd.s32 %s1004, %s1002
        %s1006 = smul.addr %s1000, 6
        %s1007 = sadd.s32 %s1005, %s1006
        %s1008 = smul.addr %s1007, 4
        %s1009 = scalar_lea.vmem %s6, %s1008
        %p1010 = pneg %p270
        %p1011 = pneg %p267
        %p1012 = pneg %p291
        %p1013 = pneg %p288
        %p1014 = pneg %p312
        %p1015 = pneg %p309
        %p1016 = pneg %p333
        %p1017 = pneg %p330
        %p1018 = pneg %p354
        %p1019 = pneg %p351
        %p1020 = pneg %p375
        %p1021 = pneg %p372
        %p1022 = pneg %p396
        %p1023 = pneg %p393
        %p1024 = pneg %p417
        %p1025 = pneg %p414
        %p1026 = pneg %p438
        %p1027 = pneg %p435
        %p1028 = pneg %p459
        %p1029 = pneg %p456
        %p1030 = pneg %p480
        %p1031 = pneg %p477
        %p1032 = pneg %p501
        %p1033 = pneg %p498
        %p1034 = pneg %p522
        %p1035 = pneg %p519
        %p1036 = pneg %p543
        %p1037 = pneg %p540
        %p1038 = pneg %p564
        %p1039 = pneg %p561
        %p1040 = pneg %p592
        %p1041 = pneg %p589
        %s1042 = sand.u32 %s579, 1
        %s1043 = scalar_lea.sflag [#allocation6], %s1042
        %s1044 = sand.u32 %s579, 1
        %s1045 = smul.addr %s1044, 16
        %s1046 = scalar_lea.vmem [#allocation18], %s1045
        %p1047 = pneg %p620
        %p1048 = pneg %p617
        %s1049 = sand.u32 %s54, 1
        %s1050 = scalar_lea.sflag [#allocation20], %s1049
        %s1051 = sand.u32 %s607, 1
        %s1052 = smul.addr %s1051, 24
        %s1053 = scalar_lea.vmem [#allocation19], %s1052
        %p1054 = pneg %p648
        %p1055 = pneg %p645
        %s1056 = sand.u32 %s54, 1
        %s1057 = scalar_lea.sflag [#allocation20], %s1056
        %s1058 = sand.u32 %s635, 1
        %s1059 = smul.addr %s1058, 24
        %s1060 = scalar_lea.vmem [#allocation21], %s1059
        %s1061 = smul.u32 2, %s60
        %s1062 = smul.u32 2, %s61
        %s1063 = smul.u32 2, %s61
        %s1064 = smul.u32 2, %s60
        %s1065 = smul.u32 16, %s60
        %s1066 = smul.u32 2, %s61
        %s1067 = smul.u32 2, %s60
        %s1068 = smul.u32 2, %s60
        %p1069 = scmp.lt.s32.totalorder %s59, 1
        %s1070 = scalar_select %p1069, %s59, 1
        %p1071 = scmp.lt.s32.totalorder %s1068, 1
        %s1072 = scalar_select %p1071, %s1068, 1
        %p1073 = scmp.lt.s32.totalorder %s61, 0
        %s1074 = scalar_select %p1073, %s61, 0
        %s1075 = sadd.s32 %s1074, %s1072
        %s1076 = smul.addr %s1070, 6
        %s1077 = sadd.s32 %s1075, %s1076
        %s1078 = smul.addr %s1077, 4
        %s1079 = scalar_lea.vmem %s6, %s1078
        %s1080 = smul.u32 2, %s60
        %s1081 = smul.u32 2, %s60
        %s1082 = smul.u32 2, %s60
        %s1083 = smul.u32 2, %s60
        %p1085 = scmp.eq.s32.totalorder %s61, 0
        // Predicated region
        $region137: #{tpu_custom_call.1} parent=103 // pred_check
          %p1086 = pneg %p1085
        $region138: #{tpu_custom_call.1} parent=103 // pred_check_branch
          %1088 = sbr.rel (%p1086) target = $region140
        $region139: #{tpu_custom_call.1} parent=103 // pred_region
          %vm1089 = vcmask 523264
          %1090 = vst.msk [vmem:[#allocation2] sm:$0xff] %vm1089, 0.0
          %1091 = vst.msk [vmem:[#allocation2 + $0x8] sm:$0xff] %vm1089, 0.0
          %1092 = vst.msk [vmem:[#allocation3] sm:$0xff] %vm1089, 0.0
          %1093 = vst.msk [vmem:[#allocation3 + $0x8] sm:$0xff] %vm1089, 0.0
          %1094 = vst.msk [vmem:[#allocation3 + $0x10] sm:$0xff] %vm1089, 0.0
          %1095 = vst.msk [vmem:[#allocation3 + $0x18] sm:$0xff] %vm1089, 0.0
          %1096 = vst.msk [vmem:[#allocation3 + $0x20] sm:$0xff] %vm1089, 0.0
          %1097 = vst.msk [vmem:[#allocation3 + $0x28] sm:$0xff] %vm1089, 0.0
        $region140: #{tpu_custom_call.1} parent=103 // pred_fallthru
          _
        %v1098 = vld [vmem:[%s934] sm:$0xf]
        %v1099 = vld [vmem:[%s934 + $0x4] sm:$0xf]
        %v1100 = vld [vmem:[%s934 + $0x8] sm:$0xf]
        %v1101 = vld [vmem:[%s934 + $0xc] sm:$0xf]
        %v1102 = vld [vmem:[%s934 + $0x10] sm:$0xf]
        %v1103 = vld [vmem:[%s934 + $0x14] sm:$0xf]
        %v1104 = vld [vmem:[%s934 + $0x18] sm:$0xf]
        %v1105 = vld [vmem:[%s934 + $0x1c] sm:$0xf]
        %v1106 = vld [vmem:[%s934 + $0x20] sm:$0xf]
        %v1107 = vld [vmem:[%s934 + $0x24] sm:$0xf]
        %v1108 = vld [vmem:[%s934 + $0x28] sm:$0xf]
        %v1109 = vld [vmem:[%s934 + $0x2c] sm:$0xf]
        %v1110 = vld [vmem:[%s934 + $0x30] sm:$0xf]
        %v1111 = vld [vmem:[%s934 + $0x34] sm:$0xf]
        %v1112 = vld [vmem:[%s934 + $0x38] sm:$0xf]
        %v1113 = vld [vmem:[%s934 + $0x3c] sm:$0xf]
        %v1114 = vld [vmem:[%s934 + $0x40] sm:$0xf]
        %v1115 = vld [vmem:[%s934 + $0x44] sm:$0xf]
        %v1116 = vld [vmem:[%s934 + $0x48] sm:$0xf]
        %v1117 = vld [vmem:[%s934 + $0x4c] sm:$0xf]
        %v1118 = vld [vmem:[%s934 + $0x50] sm:$0xf]
        %v1119 = vld [vmem:[%s934 + $0x54] sm:$0xf]
        %v1120 = vld [vmem:[%s934 + $0x58] sm:$0xf]
        %v1121 = vld [vmem:[%s934 + $0x5c] sm:$0xf]
        %v1122 = vld [vmem:[%s934 + $0x60] sm:$0xf]
        %v1123 = vld [vmem:[%s934 + $0x64] sm:$0xf]
        %v1124 = vld [vmem:[%s934 + $0x68] sm:$0xf]
        %v1125 = vld [vmem:[%s934 + $0x6c] sm:$0xf]
        %v1126 = vld [vmem:[%s934 + $0x70] sm:$0xf]
        %v1127 = vld [vmem:[%s934 + $0x74] sm:$0xf]
        %v1128 = vld [vmem:[%s934 + $0x78] sm:$0xf]
        %v1129 = vld [vmem:[%s934 + $0x7c] sm:$0xf]
        %v1130 = vld [vmem:[#allocation16] sm:$0xf]
        %v1131 = vld [vmem:[#allocation16 + $0x4] sm:$0xf]
        %v1132 = vld [vmem:[#allocation16 + $0x8] sm:$0xf]
        %v1133 = vld [vmem:[#allocation16 + $0xc] sm:$0xf]
        %v1134 = vld [vmem:[#allocation16 + $0x10] sm:$0xf]
        %v1135 = vld [vmem:[#allocation16 + $0x14] sm:$0xf]
        %v1136 = vld [vmem:[#allocation16 + $0x18] sm:$0xf]
        %v1137 = vld [vmem:[#allocation16 + $0x1c] sm:$0xf]
        %v1138 = vld [vmem:[%s9] sm:$0x1]
        %v1140 = vlaneseq
        %v1141 = vshrl.u32 %v1140, 7
        %v1142 = vsub.s32 0, %v1141
        %v1143 = vrot.slane %v1138, %v1142
        %v1177 = vunpack.c.l.b16 %v1098
        %v1178 = vunpack.c.l.b16 %v1099
        %v1179 = vunpack.c.l.b16 %v1100
        %v1180 = vunpack.c.l.b16 %v1101
        %v1181 = vunpack.c.l.b16 %v1102
        %v1182 = vunpack.c.l.b16 %v1103
        %v1183 = vunpack.c.l.b16 %v1104
        %v1184 = vunpack.c.l.b16 %v1105
        %v1185 = vunpack.c.l.b16 %v1106
        %v1186 = vunpack.c.l.b16 %v1107
        %v1187 = vunpack.c.l.b16 %v1108
        %v1188 = vunpack.c.l.b16 %v1109
        %v1189 = vunpack.c.l.b16 %v1110
        %v1190 = vunpack.c.l.b16 %v1111
        %v1191 = vunpack.c.l.b16 %v1112
        %v1192 = vunpack.c.l.b16 %v1113
        %v1193 = vunpack.c.l.b16 %v1114
        %v1194 = vunpack.c.l.b16 %v1115
        %v1195 = vunpack.c.l.b16 %v1116
        %v1196 = vunpack.c.l.b16 %v1117
        %v1197 = vunpack.c.l.b16 %v1118
        %v1198 = vunpack.c.l.b16 %v1119
        %v1199 = vunpack.c.l.b16 %v1120
        %v1200 = vunpack.c.l.b16 %v1121
        %v1201 = vunpack.c.l.b16 %v1122
        %v1202 = vunpack.c.l.b16 %v1123
        %v1203 = vunpack.c.l.b16 %v1124
        %v1204 = vunpack.c.l.b16 %v1125
        %v1205 = vunpack.c.l.b16 %v1126
        %v1206 = vunpack.c.l.b16 %v1127
        %v1207 = vunpack.c.l.b16 %v1128
        %v1208 = vunpack.c.l.b16 %v1129
        %v1209 = vpack.c.b16 %v1178, %v1177
        %v1210 = vpack.c.b16 %v1180, %v1179
        %v1211 = vpack.c.b16 %v1182, %v1181
        %v1212 = vpack.c.b16 %v1184, %v1183
        %v1213 = vpack.c.b16 %v1186, %v1185
        %v1214 = vpack.c.b16 %v1188, %v1187
        %v1215 = vpack.c.b16 %v1190, %v1189
        %v1216 = vpack.c.b16 %v1192, %v1191
        %v1217 = vpack.c.b16 %v1194, %v1193
        %v1218 = vpack.c.b16 %v1196, %v1195
        %v1219 = vpack.c.b16 %v1198, %v1197
        %v1220 = vpack.c.b16 %v1200, %v1199
        %v1221 = vpack.c.b16 %v1202, %v1201
        %v1222 = vpack.c.b16 %v1204, %v1203
        %v1223 = vpack.c.b16 %v1206, %v1205
        %v1224 = vpack.c.b16 %v1208, %v1207
        %v1233 = vunpack.c.l.b16 %v1130
        %v1234 = vunpack.c.l.b16 %v1131
        %v1235 = vunpack.c.l.b16 %v1132
        %v1236 = vunpack.c.l.b16 %v1133
        %v1237 = vunpack.c.l.b16 %v1134
        %v1238 = vunpack.c.l.b16 %v1135
        %v1239 = vunpack.c.l.b16 %v1136
        %v1240 = vunpack.c.l.b16 %v1137
        %v1241 = vpack.c.b16 %v1234, %v1233
        %v1242 = vpack.c.b16 %v1236, %v1235
        %v1243 = vpack.c.b16 %v1238, %v1237
        %v1244 = vpack.c.b16 %v1240, %v1239
        %vm1249 = vcmask 523264
        %v1251 = vsel %vm1249, %v1209, 0
        %v1254 = vsel %vm1249, %v1210, 0
        %v1257 = vsel %vm1249, %v1211, 0
        %v1260 = vsel %vm1249, %v1212, 0
        %v1263 = vsel %vm1249, %v1213, 0
        %v1266 = vsel %vm1249, %v1214, 0
        %v1269 = vsel %vm1249, %v1215, 0
        %v1272 = vsel %vm1249, %v1216, 0
        %v1275 = vsel %vm1249, %v1217, 0
        %v1278 = vsel %vm1249, %v1218, 0
        %v1281 = vsel %vm1249, %v1219, 0
        %v1284 = vsel %vm1249, %v1220, 0
        %v1287 = vsel %vm1249, %v1221, 0
        %v1290 = vsel %vm1249, %v1222, 0
        %v1293 = vsel %vm1249, %v1223, 0
        %v1296 = vsel %vm1249, %v1224, 0
        %1298 = vmatprep.subr.bf16.mxu0 0
        %1299 = vmatpush1.bf16.msra.mxu0 0
        %1300 = vmatprep.subr.bf16.mxu0 0
        %1301 = vmatpush1.bf16.msra.mxu0 0
        %1302 = vmatprep.subr.bf16.mxu0 0
        %1303 = vmatpush1.bf16.msra.mxu0 0
        %1304 = vmatprep.subr.bf16.mxu0 0
        %1305 = vmatpush1.bf16.msra.mxu0 0
        %1306 = vmatprep.subr.bf16.mxu0 0
        %1307 = vmatpush1.bf16.msra.mxu0 %v1244
        %1308 = vmatprep.subr.bf16.mxu0 0
        %1309 = vmatpush1.bf16.msra.mxu0 %v1243
        %1310 = vmatprep.subr.bf16.mxu0 0
        %1311 = vmatpush1.bf16.msra.mxu0 %v1242
        %1312 = vmatprep.subr.bf16.mxu0 0
        %1313 = vmatpush1.bf16.msra.mxu0 %v1241
        %1314 = vmatprep.subr.bf16.mxu0 0
        %1315 = vmatpush2.bf16.msra.mxu0 0
        %1316 = vmatprep.subr.bf16.mxu0 0
        %1317 = vmatpush2.bf16.msra.mxu0 0
        %1318 = vmatprep.subr.bf16.mxu0 0
        %1319 = vmatpush2.bf16.msra.mxu0 0
        %1320 = vmatprep.subr.bf16.mxu0 0
        %1321 = vmatpush2.bf16.msra.mxu0 0
        %1322 = vmatprep.subr.bf16.mxu0 0
        %1323 = vmatpush2.bf16.msra.mxu0 0
        %1324 = vmatprep.subr.bf16.mxu0 0
        %1325 = vmatpush2.bf16.msra.mxu0 0
        %1326 = vmatprep.subr.bf16.mxu0 0
        %1327 = vmatpush2.bf16.msra.mxu0 0
        %1328 = vmatprep.subr.bf16.mxu0 0
        %1329 = vmatpush2.bf16.msra.mxu0 0
        %1330 = vmatprep.mubr.bf16.mxu0 0
        %1331 = vmatmul.mubr.bf16.gmra.mxu0 %v1251
        %v1332 = vpop.f32.mrf.mxu0
        %v1333 = vadd.f32 %v1143, %v1332
        %v1334 = vpop.f32.mrf.mxu0
        %v1335 = vpop.f32.mrf.mxu0
        %v1336 = vadd.f32 %v1143, %v1335
        %v1337 = vpop.f32.mrf.mxu0
        %1338 = vmatprep.mubr.bf16.mxu0 0
        %1339 = vmatmul.mubr.bf16.gmra.mxu0 %v1254
        %v1340 = vpop.f32.mrf.mxu0
        %v1341 = vadd.f32 %v1143, %v1340
        %v1342 = vpop.f32.mrf.mxu0
        %v1343 = vpop.f32.mrf.mxu0
        %v1344 = vadd.f32 %v1143, %v1343
        %v1345 = vpop.f32.mrf.mxu0
        %1346 = vmatprep.mubr.bf16.mxu0 0
        %1347 = vmatmul.mubr.bf16.gmra.mxu0 %v1257
        %v1348 = vpop.f32.mrf.mxu0
        %v1349 = vadd.f32 %v1143, %v1348
        %v1350 = vpop.f32.mrf.mxu0
        %v1351 = vpop.f32.mrf.mxu0
        %v1352 = vadd.f32 %v1143, %v1351
        %v1353 = vpop.f32.mrf.mxu0
        %1354 = vmatprep.mubr.bf16.mxu0 0
        %1355 = vmatmul.mubr.bf16.gmra.mxu0 %v1260
        %v1356 = vpop.f32.mrf.mxu0
        %v1357 = vadd.f32 %v1143, %v1356
        %v1358 = vpop.f32.mrf.mxu0
        %v1359 = vpop.f32.mrf.mxu0
        %v1360 = vadd.f32 %v1143, %v1359
        %v1361 = vpop.f32.mrf.mxu0
        %1362 = vmatprep.mubr.bf16.mxu0 0
        %1363 = vmatmul.mubr.bf16.gmra.mxu0 %v1263
        %v1364 = vpop.f32.mrf.mxu0
        %v1365 = vadd.f32 %v1143, %v1364
        %v1366 = vpop.f32.mrf.mxu0
        %v1367 = vpop.f32.mrf.mxu0
        %v1368 = vadd.f32 %v1143, %v1367
        %v1369 = vpop.f32.mrf.mxu0
        %1370 = vmatprep.mubr.bf16.mxu0 0
        %1371 = vmatmul.mubr.bf16.gmra.mxu0 %v1266
        %v1372 = vpop.f32.mrf.mxu0
        %v1373 = vadd.f32 %v1143, %v1372
        %v1374 = vpop.f32.mrf.mxu0
        %v1375 = vpop.f32.mrf.mxu0
        %v1376 = vadd.f32 %v1143, %v1375
        %v1377 = vpop.f32.mrf.mxu0
        %1378 = vmatprep.mubr.bf16.mxu0 0
        %1379 = vmatmul.mubr.bf16.gmra.mxu0 %v1269
        %v1380 = vpop.f32.mrf.mxu0
        %v1381 = vadd.f32 %v1143, %v1380
        %v1382 = vpop.f32.mrf.mxu0
        %v1383 = vpop.f32.mrf.mxu0
        %v1384 = vadd.f32 %v1143, %v1383
        %v1385 = vpop.f32.mrf.mxu0
        %1386 = vmatprep.mubr.bf16.mxu0 0
        %1387 = vmatmul.mubr.bf16.gmra.mxu0 %v1272
        %v1388 = vpop.f32.mrf.mxu0
        %v1389 = vadd.f32 %v1143, %v1388
        %v1390 = vpop.f32.mrf.mxu0
        %v1391 = vpop.f32.mrf.mxu0
        %v1392 = vadd.f32 %v1143, %v1391
        %v1393 = vpop.f32.mrf.mxu0
        %1394 = vmatprep.mubr.bf16.mxu0 0
        %1395 = vmatmul.mubr.bf16.gmra.mxu0 %v1275
        %v1396 = vpop.f32.mrf.mxu0
        %v1397 = vadd.f32 %v1143, %v1396
        %v1398 = vpop.f32.mrf.mxu0
        %v1399 = vpop.f32.mrf.mxu0
        %v1400 = vadd.f32 %v1143, %v1399
        %v1401 = vpop.f32.mrf.mxu0
        %1402 = vmatprep.mubr.bf16.mxu0 0
        %1403 = vmatmul.mubr.bf16.gmra.mxu0 %v1278
        %v1404 = vpop.f32.mrf.mxu0
        %v1405 = vadd.f32 %v1143, %v1404
        %v1406 = vpop.f32.mrf.mxu0
        %v1407 = vpop.f32.mrf.mxu0
        %v1408 = vadd.f32 %v1143, %v1407
        %v1409 = vpop.f32.mrf.mxu0
        %1410 = vmatprep.mubr.bf16.mxu0 0
        %1411 = vmatmul.mubr.bf16.gmra.mxu0 %v1281
        %v1412 = vpop.f32.mrf.mxu0
        %v1413 = vadd.f32 %v1143, %v1412
        %v1414 = vpop.f32.mrf.mxu0
        %v1415 = vpop.f32.mrf.mxu0
        %v1416 = vadd.f32 %v1143, %v1415
        %v1417 = vpop.f32.mrf.mxu0
        %1418 = vmatprep.mubr.bf16.mxu0 0
        %1419 = vmatmul.mubr.bf16.gmra.mxu0 %v1284
        %v1420 = vpop.f32.mrf.mxu0
        %v1421 = vadd.f32 %v1143, %v1420
        %v1422 = vpop.f32.mrf.mxu0
        %v1423 = vpop.f32.mrf.mxu0
        %v1424 = vadd.f32 %v1143, %v1423
        %v1425 = vpop.f32.mrf.mxu0
        %1426 = vmatprep.mubr.bf16.mxu0 0
        %1427 = vmatmul.mubr.bf16.gmra.mxu0 %v1287
        %v1428 = vpop.f32.mrf.mxu0
        %v1429 = vadd.f32 %v1143, %v1428
        %v1430 = vpop.f32.mrf.mxu0
        %v1431 = vpop.f32.mrf.mxu0
        %v1432 = vadd.f32 %v1143, %v1431
        %v1433 = vpop.f32.mrf.mxu0
        %1434 = vmatprep.mubr.bf16.mxu0 0
        %1435 = vmatmul.mubr.bf16.gmra.mxu0 %v1290
        %v1436 = vpop.f32.mrf.mxu0
        %v1437 = vadd.f32 %v1143, %v1436
        %v1438 = vpop.f32.mrf.mxu0
        %v1439 = vpop.f32.mrf.mxu0
        %v1440 = vadd.f32 %v1143, %v1439
        %v1441 = vpop.f32.mrf.mxu0
        %1442 = vmatprep.mubr.bf16.mxu0 0
        %1443 = vmatmul.mubr.bf16.gmra.mxu0 %v1293
        %v1444 = vpop.f32.mrf.mxu0
        %v1445 = vadd.f32 %v1143, %v1444
        %v1446 = vpop.f32.mrf.mxu0
        %v1447 = vpop.f32.mrf.mxu0
        %v1448 = vadd.f32 %v1143, %v1447
        %v1449 = vpop.f32.mrf.mxu0
        %1450 = vmatprep.mubr.bf16.mxu0 0
        %1451 = vmatmul.mubr.bf16.gmra.mxu0 %v1296
        %v1452 = vpop.f32.mrf.mxu0
        %v1453 = vadd.f32 %v1143, %v1452
        %v1454 = vpop.f32.mrf.mxu0
        %v1455 = vpop.f32.mrf.mxu0
        %v1456 = vadd.f32 %v1143, %v1455
        %v1457 = vpop.f32.mrf.mxu0
        %1458 = vdwg.mxu0
        %v1459 = vmax.f32 %v1333, 0.0
        %v1460 = vmax.f32 %v1336, 0.0
        %v1461 = vmax.f32 %v1341, 0.0
        %v1462 = vmax.f32 %v1344, 0.0
        %v1463 = vmax.f32 %v1349, 0.0
        %v1464 = vmax.f32 %v1352, 0.0
        %v1465 = vmax.f32 %v1357, 0.0
        %v1466 = vmax.f32 %v1360, 0.0
        %v1467 = vmax.f32 %v1365, 0.0
        %v1468 = vmax.f32 %v1368, 0.0
        %v1469 = vmax.f32 %v1373, 0.0
        %v1470 = vmax.f32 %v1376, 0.0
        %v1471 = vmax.f32 %v1381, 0.0
        %v1472 = vmax.f32 %v1384, 0.0
        %v1473 = vmax.f32 %v1389, 0.0
        %v1474 = vmax.f32 %v1392, 0.0
        %v1475 = vmax.f32 %v1397, 0.0
        %v1476 = vmax.f32 %v1400, 0.0
        %v1477 = vmax.f32 %v1405, 0.0
        %v1478 = vmax.f32 %v1408, 0.0
        %v1479 = vmax.f32 %v1413, 0.0
        %v1480 = vmax.f32 %v1416, 0.0
        %v1481 = vmax.f32 %v1421, 0.0
        %v1482 = vmax.f32 %v1424, 0.0
        %v1483 = vmax.f32 %v1429, 0.0
        %v1484 = vmax.f32 %v1432, 0.0
        %v1485 = vmax.f32 %v1437, 0.0
        %v1486 = vmax.f32 %v1440, 0.0
        %v1487 = vmax.f32 %v1445, 0.0
        %v1488 = vmax.f32 %v1448, 0.0
        %v1489 = vmax.f32 %v1453, 0.0
        %v1490 = vmax.f32 %v1456, 0.0
        %v1491 = vpack.c.bf16 %v1460, %v1459
        %v1492 = vpack.c.bf16 %v1462, %v1461
        %v1493 = vpack.c.bf16 %v1464, %v1463
        %v1494 = vpack.c.bf16 %v1466, %v1465
        %v1495 = vpack.c.bf16 %v1468, %v1467
        %v1496 = vpack.c.bf16 %v1470, %v1469
        %v1497 = vpack.c.bf16 %v1472, %v1471
        %v1498 = vpack.c.bf16 %v1474, %v1473
        %v1499 = vpack.c.bf16 %v1476, %v1475
        %v1500 = vpack.c.bf16 %v1478, %v1477
        %v1501 = vpack.c.bf16 %v1480, %v1479
        %v1502 = vpack.c.bf16 %v1482, %v1481
        %v1503 = vpack.c.bf16 %v1484, %v1483
        %v1504 = vpack.c.bf16 %v1486, %v1485
        %v1505 = vpack.c.bf16 %v1488, %v1487
        %v1506 = vpack.c.bf16 %v1490, %v1489
        %v1507 = vld [vmem:[%s898] sm:$0xff]
        %v1508 = vld [vmem:[%s898 + $0x8] sm:$0xff]
        %v1509 = vpack.c.bf16 %v1508, %v1507
        %v1510 = vld [vmem:[%s907] sm:$0xff]
        %v1511 = vld [vmem:[%s907 + $0x8] sm:$0xff]
        %v1512 = vpack.c.bf16 %v1511, %v1510
        %v1513 = vld [vmem:[%s916] sm:$0xff]
        %v1514 = vld [vmem:[%s916 + $0x8] sm:$0xff]
        %v1515 = vpack.c.bf16 %v1514, %v1513
        %v1517 = vcombine.high %v1509, %v1509
        %v1519 = vunpack.c.l.s4 1966171168
        %v1520 = vunpack.c.0.s8 %v1519
        %v1521 = vlaneseq
        %v1522 = vshrl.u32 %v1521, 7
        %v1523 = vsub.s32 %v1520, %v1522
        %v1524 = vrot.slane %v1509, %v1523
        %v1526 = vunpack.c.l.s4 1966171168
        %v1527 = vunpack.c.0.s8 %v1526
        %v1528 = vlaneseq
        %v1529 = vshrl.u32 %v1528, 7
        %v1530 = vsub.s32 %v1527, %v1529
        %v1531 = vrot.slane %v1517, %v1530
        %v1532 = vcombine.high %v1524, %v1524
        %v1533 = vcombine.high %v1531, %v1531
        %v1535 = vunpack.c.l.s4 1966171168
        %v1536 = vunpack.c.0.s8 %v1535
        %v1537 = vlaneseq
        %v1538 = vshrl.u32 %v1537, 7
        %v1539 = vsub.s32 %v1536, %v1538
        %v1540 = vrot.slane %v1524, %v1539
        %v1542 = vunpack.c.l.s4 1966171168
        %v1543 = vunpack.c.0.s8 %v1542
        %v1544 = vlaneseq
        %v1545 = vshrl.u32 %v1544, 7
        %v1546 = vsub.s32 %v1543, %v1545
        %v1547 = vrot.slane %v1531, %v1546
        %v1549 = vunpack.c.l.s4 1966171168
        %v1550 = vunpack.c.0.s8 %v1549
        %v1551 = vlaneseq
        %v1552 = vshrl.u32 %v1551, 7
        %v1553 = vsub.s32 %v1550, %v1552
        %v1554 = vrot.slane %v1532, %v1553
        %v1556 = vunpack.c.l.s4 1966171168
        %v1557 = vunpack.c.0.s8 %v1556
        %v1558 = vlaneseq
        %v1559 = vshrl.u32 %v1558, 7
        %v1560 = vsub.s32 %v1557, %v1559
        %v1561 = vrot.slane %v1533, %v1560
        %v1562 = vcombine.high %v1540, %v1540
        %v1563 = vcombine.high %v1547, %v1547
        %v1564 = vcombine.high %v1554, %v1554
        %v1565 = vcombine.high %v1561, %v1561
        %v1566 = vunpack.i.l.s16 %v1540
        %v1567 = vunpack.i.h.s16 %v1540
        %v1568 = vunpack.i.l.s16 %v1554
        %v1569 = vunpack.i.h.s16 %v1554
        %v1570 = vunpack.i.l.s16 %v1562
        %v1571 = vunpack.i.h.s16 %v1562
        %v1572 = vunpack.i.l.s16 %v1564
        %v1573 = vunpack.i.h.s16 %v1564
        %v1574 = vunpack.i.l.s16 %v1547
        %v1575 = vunpack.i.h.s16 %v1547
        %v1576 = vunpack.i.l.s16 %v1561
        %v1577 = vunpack.i.h.s16 %v1561
        %v1578 = vunpack.i.l.s16 %v1563
        %v1579 = vunpack.i.h.s16 %v1563
        %v1580 = vunpack.i.l.s16 %v1565
        %v1581 = vunpack.i.h.s16 %v1565
        %v1582 = vpack.i.b16 %v1566, %v1566
        %v1583 = vpack.i.b16 %v1567, %v1567
        %v1584 = vpack.i.b16 %v1568, %v1568
        %v1585 = vpack.i.b16 %v1569, %v1569
        %v1586 = vpack.i.b16 %v1570, %v1570
        %v1587 = vpack.i.b16 %v1571, %v1571
        %v1588 = vpack.i.b16 %v1572, %v1572
        %v1589 = vpack.i.b16 %v1573, %v1573
        %v1590 = vpack.i.b16 %v1574, %v1574
        %v1591 = vpack.i.b16 %v1575, %v1575
        %v1592 = vpack.i.b16 %v1576, %v1576
        %v1593 = vpack.i.b16 %v1577, %v1577
        %v1594 = vpack.i.b16 %v1578, %v1578
        %v1595 = vpack.i.b16 %v1579, %v1579
        %v1596 = vpack.i.b16 %v1580, %v1580
        %v1597 = vpack.i.b16 %v1581, %v1581
        %v1598 = vlaneseq
        %v1599 = vshrl.u32 %v1598, 7
        %v1600 = vsub.s32 0, %v1599
        %v1601 = vrot.slane %v1582, %v1600
        %v1602 = vlaneseq
        %v1603 = vshrl.u32 %v1602, 7
        %v1604 = vsub.s32 0, %v1603
        %v1605 = vrot.slane %v1583, %v1604
        %v1606 = vlaneseq
        %v1607 = vshrl.u32 %v1606, 7
        %v1608 = vsub.s32 0, %v1607
        %v1609 = vrot.slane %v1584, %v1608
        %v1610 = vlaneseq
        %v1611 = vshrl.u32 %v1610, 7
        %v1612 = vsub.s32 0, %v1611
        %v1613 = vrot.slane %v1585, %v1612
        %v1614 = vlaneseq
        %v1615 = vshrl.u32 %v1614, 7
        %v1616 = vsub.s32 0, %v1615
        %v1617 = vrot.slane %v1586, %v1616
        %v1618 = vlaneseq
        %v1619 = vshrl.u32 %v1618, 7
        %v1620 = vsub.s32 0, %v1619
        %v1621 = vrot.slane %v1587, %v1620
        %v1622 = vlaneseq
        %v1623 = vshrl.u32 %v1622, 7
        %v1624 = vsub.s32 0, %v1623
        %v1625 = vrot.slane %v1588, %v1624
        %v1626 = vlaneseq
        %v1627 = vshrl.u32 %v1626, 7
        %v1628 = vsub.s32 0, %v1627
        %v1629 = vrot.slane %v1589, %v1628
        %v1630 = vlaneseq
        %v1631 = vshrl.u32 %v1630, 7
        %v1632 = vsub.s32 0, %v1631
        %v1633 = vrot.slane %v1590, %v1632
        %v1634 = vlaneseq
        %v1635 = vshrl.u32 %v1634, 7
        %v1636 = vsub.s32 0, %v1635
        %v1637 = vrot.slane %v1591, %v1636
        %v1638 = vlaneseq
        %v1639 = vshrl.u32 %v1638, 7
        %v1640 = vsub.s32 0, %v1639
        %v1641 = vrot.slane %v1592, %v1640
        %v1642 = vlaneseq
        %v1643 = vshrl.u32 %v1642, 7
        %v1644 = vsub.s32 0, %v1643
        %v1645 = vrot.slane %v1593, %v1644
        %v1646 = vlaneseq
        %v1647 = vshrl.u32 %v1646, 7
        %v1648 = vsub.s32 0, %v1647
        %v1649 = vrot.slane %v1594, %v1648
        %v1650 = vlaneseq
        %v1651 = vshrl.u32 %v1650, 7
        %v1652 = vsub.s32 0, %v1651
        %v1653 = vrot.slane %v1595, %v1652
        %v1654 = vlaneseq
        %v1655 = vshrl.u32 %v1654, 7
        %v1656 = vsub.s32 0, %v1655
        %v1657 = vrot.slane %v1596, %v1656
        %v1658 = vlaneseq
        %v1659 = vshrl.u32 %v1658, 7
        %v1660 = vsub.s32 0, %v1659
        %v1661 = vrot.slane %v1597, %v1660
        %v1663 = vpack.i.b16 %v1601, %v1601
        %v1665 = vlaneseq
        %v1666 = vshrl.u32 %v1665, 7
        %v1667 = vsub.s32 0, %v1666
        %v1668 = vrot.slane %v1663, %v1667
        %v1670 = vpack.i.b16 %v1605, %v1605
        %v1672 = vlaneseq
        %v1673 = vshrl.u32 %v1672, 7
        %v1674 = vsub.s32 0, %v1673
        %v1675 = vrot.slane %v1670, %v1674
        %v1677 = vpack.i.b16 %v1609, %v1609
        %v1679 = vlaneseq
        %v1680 = vshrl.u32 %v1679, 7
        %v1681 = vsub.s32 0, %v1680
        %v1682 = vrot.slane %v1677, %v1681
        %v1684 = vpack.i.b16 %v1613, %v1613
        %v1686 = vlaneseq
        %v1687 = vshrl.u32 %v1686, 7
        %v1688 = vsub.s32 0, %v1687
        %v1689 = vrot.slane %v1684, %v1688
        %v1691 = vpack.i.b16 %v1617, %v1617
        %v1693 = vlaneseq
        %v1694 = vshrl.u32 %v1693, 7
        %v1695 = vsub.s32 0, %v1694
        %v1696 = vrot.slane %v1691, %v1695
        %v1698 = vpack.i.b16 %v1621, %v1621
        %v1700 = vlaneseq
        %v1701 = vshrl.u32 %v1700, 7
        %v1702 = vsub.s32 0, %v1701
        %v1703 = vrot.slane %v1698, %v1702
        %v1705 = vpack.i.b16 %v1625, %v1625
        %v1707 = vlaneseq
        %v1708 = vshrl.u32 %v1707, 7
        %v1709 = vsub.s32 0, %v1708
        %v1710 = vrot.slane %v1705, %v1709
        %v1712 = vpack.i.b16 %v1629, %v1629
        %v1714 = vlaneseq
        %v1715 = vshrl.u32 %v1714, 7
        %v1716 = vsub.s32 0, %v1715
        %v1717 = vrot.slane %v1712, %v1716
        %v1719 = vpack.i.b16 %v1633, %v1633
        %v1721 = vlaneseq
        %v1722 = vshrl.u32 %v1721, 7
        %v1723 = vsub.s32 0, %v1722
        %v1724 = vrot.slane %v1719, %v1723
        %v1726 = vpack.i.b16 %v1637, %v1637
        %v1728 = vlaneseq
        %v1729 = vshrl.u32 %v1728, 7
        %v1730 = vsub.s32 0, %v1729
        %v1731 = vrot.slane %v1726, %v1730
        %v1733 = vpack.i.b16 %v1641, %v1641
        %v1735 = vlaneseq
        %v1736 = vshrl.u32 %v1735, 7
        %v1737 = vsub.s32 0, %v1736
        %v1738 = vrot.slane %v1733, %v1737
        %v1740 = vpack.i.b16 %v1645, %v1645
        %v1742 = vlaneseq
        %v1743 = vshrl.u32 %v1742, 7
        %v1744 = vsub.s32 0, %v1743
        %v1745 = vrot.slane %v1740, %v1744
        %v1747 = vpack.i.b16 %v1649, %v1649
        %v1749 = vlaneseq
        %v1750 = vshrl.u32 %v1749, 7
        %v1751 = vsub.s32 0, %v1750
        %v1752 = vrot.slane %v1747, %v1751
        %v1754 = vpack.i.b16 %v1653, %v1653
        %v1756 = vlaneseq
        %v1757 = vshrl.u32 %v1756, 7
        %v1758 = vsub.s32 0, %v1757
        %v1759 = vrot.slane %v1754, %v1758
        %v1761 = vpack.i.b16 %v1657, %v1657
        %v1763 = vlaneseq
        %v1764 = vshrl.u32 %v1763, 7
        %v1765 = vsub.s32 0, %v1764
        %v1766 = vrot.slane %v1761, %v1765
        %v1768 = vpack.i.b16 %v1661, %v1661
        %v1770 = vlaneseq
        %v1771 = vshrl.u32 %v1770, 7
        %v1772 = vsub.s32 0, %v1771
        %v1773 = vrot.slane %v1768, %v1772
        %v1774 = vmul.bf16 %v1668, %v1512
        %v1775 = vmul.bf16 %v1675, %v1512
        %v1776 = vmul.bf16 %v1682, %v1512
        %v1777 = vmul.bf16 %v1689, %v1512
        %v1778 = vmul.bf16 %v1696, %v1512
        %v1779 = vmul.bf16 %v1703, %v1512
        %v1780 = vmul.bf16 %v1710, %v1512
        %v1781 = vmul.bf16 %v1717, %v1512
        %v1782 = vmul.bf16 %v1724, %v1512
        %v1783 = vmul.bf16 %v1731, %v1512
        %v1784 = vmul.bf16 %v1738, %v1512
        %v1785 = vmul.bf16 %v1745, %v1512
        %v1786 = vmul.bf16 %v1752, %v1512
        %v1787 = vmul.bf16 %v1759, %v1512
        %v1788 = vmul.bf16 %v1766, %v1512
        %v1789 = vmul.bf16 %v1773, %v1512
        %v1790 = vmul.bf16 %v1774, %v1491
        %v1791 = vmul.bf16 %v1775, %v1492
        %v1792 = vmul.bf16 %v1776, %v1493
        %v1793 = vmul.bf16 %v1777, %v1494
        %v1794 = vmul.bf16 %v1778, %v1495
        %v1795 = vmul.bf16 %v1779, %v1496
        %v1796 = vmul.bf16 %v1780, %v1497
        %v1797 = vmul.bf16 %v1781, %v1498
        %v1798 = vmul.bf16 %v1782, %v1499
        %v1799 = vmul.bf16 %v1783, %v1500
        %v1800 = vmul.bf16 %v1784, %v1501
        %v1801 = vmul.bf16 %v1785, %v1502
        %v1802 = vmul.bf16 %v1786, %v1503
        %v1803 = vmul.bf16 %v1787, %v1504
        %v1804 = vmul.bf16 %v1788, %v1505
        %v1805 = vmul.bf16 %v1789, %v1506
        %v1806 = vld [vmem:[#allocation15] sm:$0xf]
        %v1807 = vld [vmem:[#allocation15 + $0x4] sm:$0xf]
        %v1808 = vld [vmem:[#allocation15 + $0x8] sm:$0xf]
        %v1809 = vld [vmem:[#allocation15 + $0xc] sm:$0xf]
        %v1810 = vld [vmem:[#allocation15 + $0x10] sm:$0xf]
        %v1811 = vld [vmem:[#allocation15 + $0x14] sm:$0xf]
        %v1812 = vld [vmem:[#allocation15 + $0x18] sm:$0xf]
        %v1813 = vld [vmem:[#allocation15 + $0x1c] sm:$0xf]
        %v1822 = vunpack.c.l.b16 %v1806
        %v1823 = vunpack.c.l.b16 %v1807
        %v1824 = vunpack.c.l.b16 %v1808
        %v1825 = vunpack.c.l.b16 %v1809
        %v1826 = vunpack.c.l.b16 %v1810
        %v1827 = vunpack.c.l.b16 %v1811
        %v1828 = vunpack.c.l.b16 %v1812
        %v1829 = vunpack.c.l.b16 %v1813
        %v1830 = vpack.c.b16 %v1823, %v1822
        %v1831 = vpack.c.b16 %v1825, %v1824
        %v1832 = vpack.c.b16 %v1827, %v1826
        %v1833 = vpack.c.b16 %v1829, %v1828
        %v1839 = vsel %vm1249, %v1790, 0
        %v1842 = vsel %vm1249, %v1791, 0
        %v1845 = vsel %vm1249, %v1792, 0
        %v1848 = vsel %vm1249, %v1793, 0
        %v1851 = vsel %vm1249, %v1794, 0
        %v1854 = vsel %vm1249, %v1795, 0
        %v1857 = vsel %vm1249, %v1796, 0
        %v1860 = vsel %vm1249, %v1797, 0
        %v1863 = vsel %vm1249, %v1798, 0
        %v1866 = vsel %vm1249, %v1799, 0
        %v1869 = vsel %vm1249, %v1800, 0
        %v1872 = vsel %vm1249, %v1801, 0
        %v1875 = vsel %vm1249, %v1802, 0
        %v1878 = vsel %vm1249, %v1803, 0
        %v1881 = vsel %vm1249, %v1804, 0
        %v1884 = vsel %vm1249, %v1805, 0
        %1886 = vmatprep.subr.bf16.mxu0 0
        %1887 = vmatpush1.bf16.msra.mxu0 0
        %1888 = vmatprep.subr.bf16.mxu0 0
        %1889 = vmatpush1.bf16.msra.mxu0 0
        %1890 = vmatprep.subr.bf16.mxu0 0
        %1891 = vmatpush1.bf16.msra.mxu0 0
        %1892 = vmatprep.subr.bf16.mxu0 0
        %1893 = vmatpush1.bf16.msra.mxu0 0
        %1894 = vmatprep.subr.bf16.mxu0 0
        %1895 = vmatpush1.bf16.msra.mxu0 %v1833
        %1896 = vmatprep.subr.bf16.mxu0 0
        %1897 = vmatpush1.bf16.msra.mxu0 %v1832
        %1898 = vmatprep.subr.bf16.mxu0 0
        %1899 = vmatpush1.bf16.msra.mxu0 %v1831
        %1900 = vmatprep.subr.bf16.mxu0 0
        %1901 = vmatpush1.bf16.msra.mxu0 %v1830
        %1902 = vmatprep.subr.bf16.mxu0 0
        %1903 = vmatpush2.bf16.msra.mxu0 0
        %1904 = vmatprep.subr.bf16.mxu0 0
        %1905 = vmatpush2.bf16.msra.mxu0 0
        %1906 = vmatprep.subr.bf16.mxu0 0
        %1907 = vmatpush2.bf16.msra.mxu0 0
        %1908 = vmatprep.subr.bf16.mxu0 0
        %1909 = vmatpush2.bf16.msra.mxu0 0
        %1910 = vmatprep.subr.bf16.mxu0 0
        %1911 = vmatpush2.bf16.msra.mxu0 0
        %1912 = vmatprep.subr.bf16.mxu0 0
        %1913 = vmatpush2.bf16.msra.mxu0 0
        %1914 = vmatprep.subr.bf16.mxu0 0
        %1915 = vmatpush2.bf16.msra.mxu0 0
        %1916 = vmatprep.subr.bf16.mxu0 0
        %1917 = vmatpush2.bf16.msra.mxu0 0
        %1918 = vmatprep.mubr.bf16.mxu0 0
        %1919 = vmatmul.mubr.bf16.gmra.mxu0 %v1839
        %v1920 = vpop.f32.mrf.mxu0
        %v1921 = vadd.f32 0.0, %v1920
        %v1922 = vpop.f32.mrf.mxu0
        %v1923 = vpop.f32.mrf.mxu0
        %v1924 = vadd.f32 0.0, %v1923
        %v1925 = vpop.f32.mrf.mxu0
        %1926 = vmatprep.mubr.bf16.mxu0 0
        %1927 = vmatmul.mubr.bf16.gmra.mxu0 %v1842
        %v1928 = vpop.f32.mrf.mxu0
        %v1929 = vadd.f32 0.0, %v1928
        %v1930 = vpop.f32.mrf.mxu0
        %v1931 = vpop.f32.mrf.mxu0
        %v1932 = vadd.f32 0.0, %v1931
        %v1933 = vpop.f32.mrf.mxu0
        %1934 = vmatprep.mubr.bf16.mxu0 0
        %1935 = vmatmul.mubr.bf16.gmra.mxu0 %v1845
        %v1936 = vpop.f32.mrf.mxu0
        %v1937 = vadd.f32 0.0, %v1936
        %v1938 = vpop.f32.mrf.mxu0
        %v1939 = vpop.f32.mrf.mxu0
        %v1940 = vadd.f32 0.0, %v1939
        %v1941 = vpop.f32.mrf.mxu0
        %1942 = vmatprep.mubr.bf16.mxu0 0
        %1943 = vmatmul.mubr.bf16.gmra.mxu0 %v1848
        %v1944 = vpop.f32.mrf.mxu0
        %v1945 = vadd.f32 0.0, %v1944
        %v1946 = vpop.f32.mrf.mxu0
        %v1947 = vpop.f32.mrf.mxu0
        %v1948 = vadd.f32 0.0, %v1947
        %v1949 = vpop.f32.mrf.mxu0
        %1950 = vmatprep.mubr.bf16.mxu0 0
        %1951 = vmatmul.mubr.bf16.gmra.mxu0 %v1851
        %v1952 = vpop.f32.mrf.mxu0
        %v1953 = vadd.f32 0.0, %v1952
        %v1954 = vpop.f32.mrf.mxu0
        %v1955 = vpop.f32.mrf.mxu0
        %v1956 = vadd.f32 0.0, %v1955
        %v1957 = vpop.f32.mrf.mxu0
        %1958 = vmatprep.mubr.bf16.mxu0 0
        %1959 = vmatmul.mubr.bf16.gmra.mxu0 %v1854
        %v1960 = vpop.f32.mrf.mxu0
        %v1961 = vadd.f32 0.0, %v1960
        %v1962 = vpop.f32.mrf.mxu0
        %v1963 = vpop.f32.mrf.mxu0
        %v1964 = vadd.f32 0.0, %v1963
        %v1965 = vpop.f32.mrf.mxu0
        %1966 = vmatprep.mubr.bf16.mxu0 0
        %1967 = vmatmul.mubr.bf16.gmra.mxu0 %v1857
        %v1968 = vpop.f32.mrf.mxu0
        %v1969 = vadd.f32 0.0, %v1968
        %v1970 = vpop.f32.mrf.mxu0
        %v1971 = vpop.f32.mrf.mxu0
        %v1972 = vadd.f32 0.0, %v1971
        %v1973 = vpop.f32.mrf.mxu0
        %1974 = vmatprep.mubr.bf16.mxu0 0
        %1975 = vmatmul.mubr.bf16.gmra.mxu0 %v1860
        %v1976 = vpop.f32.mrf.mxu0
        %v1977 = vadd.f32 0.0, %v1976
        %v1978 = vpop.f32.mrf.mxu0
        %v1979 = vpop.f32.mrf.mxu0
        %v1980 = vadd.f32 0.0, %v1979
        %v1981 = vpop.f32.mrf.mxu0
        %1982 = vmatprep.mubr.bf16.mxu0 0
        %1983 = vmatmul.mubr.bf16.gmra.mxu0 %v1863
        %v1984 = vpop.f32.mrf.mxu0
        %v1985 = vadd.f32 0.0, %v1984
        %v1986 = vpop.f32.mrf.mxu0
        %v1987 = vpop.f32.mrf.mxu0
        %v1988 = vadd.f32 0.0, %v1987
        %v1989 = vpop.f32.mrf.mxu0
        %1990 = vmatprep.mubr.bf16.mxu0 0
        %1991 = vmatmul.mubr.bf16.gmra.mxu0 %v1866
        %v1992 = vpop.f32.mrf.mxu0
        %v1993 = vadd.f32 0.0, %v1992
        %v1994 = vpop.f32.mrf.mxu0
        %v1995 = vpop.f32.mrf.mxu0
        %v1996 = vadd.f32 0.0, %v1995
        %v1997 = vpop.f32.mrf.mxu0
        %1998 = vmatprep.mubr.bf16.mxu0 0
        %1999 = vmatmul.mubr.bf16.gmra.mxu0 %v1869
        %v2000 = vpop.f32.mrf.mxu0
        %v2001 = vadd.f32 0.0, %v2000
        %v2002 = vpop.f32.mrf.mxu0
        %v2003 = vpop.f32.mrf.mxu0
        %v2004 = vadd.f32 0.0, %v2003
        %v2005 = vpop.f32.mrf.mxu0
        %2006 = vmatprep.mubr.bf16.mxu0 0
        %2007 = vmatmul.mubr.bf16.gmra.mxu0 %v1872
        %v2008 = vpop.f32.mrf.mxu0
        %v2009 = vadd.f32 0.0, %v2008
        %v2010 = vpop.f32.mrf.mxu0
        %v2011 = vpop.f32.mrf.mxu0
        %v2012 = vadd.f32 0.0, %v2011
        %v2013 = vpop.f32.mrf.mxu0
        %2014 = vmatprep.mubr.bf16.mxu0 0
        %2015 = vmatmul.mubr.bf16.gmra.mxu0 %v1875
        %v2016 = vpop.f32.mrf.mxu0
        %v2017 = vadd.f32 0.0, %v2016
        %v2018 = vpop.f32.mrf.mxu0
        %v2019 = vpop.f32.mrf.mxu0
        %v2020 = vadd.f32 0.0, %v2019
        %v2021 = vpop.f32.mrf.mxu0
        %2022 = vmatprep.mubr.bf16.mxu0 0
        %2023 = vmatmul.mubr.bf16.gmra.mxu0 %v1878
        %v2024 = vpop.f32.mrf.mxu0
        %v2025 = vadd.f32 0.0, %v2024
        %v2026 = vpop.f32.mrf.mxu0
        %v2027 = vpop.f32.mrf.mxu0
        %v2028 = vadd.f32 0.0, %v2027
        %v2029 = vpop.f32.mrf.mxu0
        %2030 = vmatprep.mubr.bf16.mxu0 0
        %2031 = vmatmul.mubr.bf16.gmra.mxu0 %v1881
        %v2032 = vpop.f32.mrf.mxu0
        %v2033 = vadd.f32 0.0, %v2032
        %v2034 = vpop.f32.mrf.mxu0
        %v2035 = vpop.f32.mrf.mxu0
        %v2036 = vadd.f32 0.0, %v2035
        %v2037 = vpop.f32.mrf.mxu0
        %2038 = vmatprep.mubr.bf16.mxu0 0
        %2039 = vmatmul.mubr.bf16.gmra.mxu0 %v1884
        %v2040 = vpop.f32.mrf.mxu0
        %v2041 = vadd.f32 0.0, %v2040
        %v2042 = vpop.f32.mrf.mxu0
        %v2043 = vpop.f32.mrf.mxu0
        %v2044 = vadd.f32 0.0, %v2043
        %v2045 = vpop.f32.mrf.mxu0
        %2046 = vdwg.mxu0
        %v2047 = vld [vmem:[%s943] sm:$0xff]
        %v2048 = vld [vmem:[%s943 + $0x8] sm:$0xff]
        %v2049 = vmax.f32 %v1921, 0.0
        %v2050 = vmax.f32 %v1924, 0.0
        %v2051 = vmax.f32 %v1929, 0.0
        %v2052 = vmax.f32 %v1932, 0.0
        %v2053 = vmax.f32 %v1937, 0.0
        %v2054 = vmax.f32 %v1940, 0.0
        %v2055 = vmax.f32 %v1945, 0.0
        %v2056 = vmax.f32 %v1948, 0.0
        %v2057 = vmax.f32 %v1953, 0.0
        %v2058 = vmax.f32 %v1956, 0.0
        %v2059 = vmax.f32 %v1961, 0.0
        %v2060 = vmax.f32 %v1964, 0.0
        %v2061 = vmax.f32 %v1969, 0.0
        %v2062 = vmax.f32 %v1972, 0.0
        %v2063 = vmax.f32 %v1977, 0.0
        %v2064 = vmax.f32 %v1980, 0.0
        %v2065 = vmax.f32 %v1985, 0.0
        %v2066 = vmax.f32 %v1988, 0.0
        %v2067 = vmax.f32 %v1993, 0.0
        %v2068 = vmax.f32 %v1996, 0.0
        %v2069 = vmax.f32 %v2001, 0.0
        %v2070 = vmax.f32 %v2004, 0.0
        %v2071 = vmax.f32 %v2009, 0.0
        %v2072 = vmax.f32 %v2012, 0.0
        %v2073 = vmax.f32 %v2017, 0.0
        %v2074 = vmax.f32 %v2020, 0.0
        %v2075 = vmax.f32 %v2025, 0.0
        %v2076 = vmax.f32 %v2028, 0.0
        %v2077 = vmax.f32 %v2033, 0.0
        %v2078 = vmax.f32 %v2036, 0.0
        %v2079 = vmax.f32 %v2041, 0.0
        %v2080 = vmax.f32 %v2044, 0.0
        %v2081 = vlaneseq
        %v2082 = vshrl.u32 %v2081, 7
        %v2083 = vsub.s32 0, %v2082
        %v2084 = vrot.slane %v2047, %v2083
        %2086 = vbcast.lane.b32.xlu0 %v2084, 256
        %v2087 = vpop.permute.xlu0 %2086
        %s2089 = sor.u32 256, 8
        %2090 = vbcast.lane.b32.xlu0 %v2084, %s2089
        %v2091 = vpop.permute.xlu0 %2090
        %v2092 = vlaneseq
        %v2093 = vshrl.u32 %v2092, 7
        %v2094 = vsub.s32 1, %v2093
        %v2095 = vrot.slane %v2047, %v2094
        %2097 = vbcast.lane.b32.xlu0 %v2095, 256
        %v2098 = vpop.permute.xlu0 %2097
        %s2100 = sor.u32 256, 8
        %2101 = vbcast.lane.b32.xlu0 %v2095, %s2100
        %v2102 = vpop.permute.xlu0 %2101
        %v2103 = vlaneseq
        %v2104 = vshrl.u32 %v2103, 7
        %v2105 = vsub.s32 2, %v2104
        %v2106 = vrot.slane %v2047, %v2105
        %2108 = vbcast.lane.b32.xlu0 %v2106, 256
        %v2109 = vpop.permute.xlu0 %2108
        %s2111 = sor.u32 256, 8
        %2112 = vbcast.lane.b32.xlu0 %v2106, %s2111
        %v2113 = vpop.permute.xlu0 %2112
        %v2114 = vlaneseq
        %v2115 = vshrl.u32 %v2114, 7
        %v2116 = vsub.s32 3, %v2115
        %v2117 = vrot.slane %v2047, %v2116
        %2119 = vbcast.lane.b32.xlu0 %v2117, 256
        %v2120 = vpop.permute.xlu0 %2119
        %s2122 = sor.u32 256, 8
        %2123 = vbcast.lane.b32.xlu0 %v2117, %s2122
        %v2124 = vpop.permute.xlu0 %2123
        %v2125 = vlaneseq
        %v2126 = vshrl.u32 %v2125, 7
        %v2127 = vsub.s32 4, %v2126
        %v2128 = vrot.slane %v2047, %v2127
        %2130 = vbcast.lane.b32.xlu0 %v2128, 256
        %v2131 = vpop.permute.xlu0 %2130
        %s2133 = sor.u32 256, 8
        %2134 = vbcast.lane.b32.xlu0 %v2128, %s2133
        %v2135 = vpop.permute.xlu0 %2134
        %v2136 = vlaneseq
        %v2137 = vshrl.u32 %v2136, 7
        %v2138 = vsub.s32 5, %v2137
        %v2139 = vrot.slane %v2047, %v2138
        %2141 = vbcast.lane.b32.xlu0 %v2139, 256
        %v2142 = vpop.permute.xlu0 %2141
        %s2144 = sor.u32 256, 8
        %2145 = vbcast.lane.b32.xlu0 %v2139, %s2144
        %v2146 = vpop.permute.xlu0 %2145
        %v2147 = vlaneseq
        %v2148 = vshrl.u32 %v2147, 7
        %v2149 = vsub.s32 6, %v2148
        %v2150 = vrot.slane %v2047, %v2149
        %2152 = vbcast.lane.b32.xlu0 %v2150, 256
        %v2153 = vpop.permute.xlu0 %2152
        %s2155 = sor.u32 256, 8
        %2156 = vbcast.lane.b32.xlu0 %v2150, %s2155
        %v2157 = vpop.permute.xlu0 %2156
        %v2158 = vlaneseq
        %v2159 = vshrl.u32 %v2158, 7
        %v2160 = vsub.s32 7, %v2159
        %v2161 = vrot.slane %v2047, %v2160
        %2163 = vbcast.lane.b32.xlu0 %v2161, 256
        %v2164 = vpop.permute.xlu0 %2163
        %s2166 = sor.u32 256, 8
        %2167 = vbcast.lane.b32.xlu0 %v2161, %s2166
        %v2168 = vpop.permute.xlu0 %2167
        %v2169 = vlaneseq
        %v2170 = vshrl.u32 %v2169, 7
        %v2171 = vsub.s32 0, %v2170
        %v2172 = vrot.slane %v2048, %v2171
        %2174 = vbcast.lane.b32.xlu0 %v2172, 256
        %v2175 = vpop.permute.xlu0 %2174
        %s2177 = sor.u32 256, 8
        %2178 = vbcast.lane.b32.xlu0 %v2172, %s2177
        %v2179 = vpop.permute.xlu0 %2178
        %v2180 = vlaneseq
        %v2181 = vshrl.u32 %v2180, 7
        %v2182 = vsub.s32 1, %v2181
        %v2183 = vrot.slane %v2048, %v2182
        %2185 = vbcast.lane.b32.xlu0 %v2183, 256
        %v2186 = vpop.permute.xlu0 %2185
        %s2188 = sor.u32 256, 8
        %2189 = vbcast.lane.b32.xlu0 %v2183, %s2188
        %v2190 = vpop.permute.xlu0 %2189
        %v2191 = vlaneseq
        %v2192 = vshrl.u32 %v2191, 7
        %v2193 = vsub.s32 2, %v2192
        %v2194 = vrot.slane %v2048, %v2193
        %2196 = vbcast.lane.b32.xlu0 %v2194, 256
        %v2197 = vpop.permute.xlu0 %2196
        %s2199 = sor.u32 256, 8
        %2200 = vbcast.lane.b32.xlu0 %v2194, %s2199
        %v2201 = vpop.permute.xlu0 %2200
        %v2202 = vlaneseq
        %v2203 = vshrl.u32 %v2202, 7
        %v2204 = vsub.s32 3, %v2203
        %v2205 = vrot.slane %v2048, %v2204
        %2207 = vbcast.lane.b32.xlu0 %v2205, 256
        %v2208 = vpop.permute.xlu0 %2207
        %s2210 = sor.u32 256, 8
        %2211 = vbcast.lane.b32.xlu0 %v2205, %s2210
        %v2212 = vpop.permute.xlu0 %2211
        %v2213 = vlaneseq
        %v2214 = vshrl.u32 %v2213, 7
        %v2215 = vsub.s32 4, %v2214
        %v2216 = vrot.slane %v2048, %v2215
        %2218 = vbcast.lane.b32.xlu0 %v2216, 256
        %v2219 = vpop.permute.xlu0 %2218
        %s2221 = sor.u32 256, 8
        %2222 = vbcast.lane.b32.xlu0 %v2216, %s2221
        %v2223 = vpop.permute.xlu0 %2222
        %v2224 = vlaneseq
        %v2225 = vshrl.u32 %v2224, 7
        %v2226 = vsub.s32 5, %v2225
        %v2227 = vrot.slane %v2048, %v2226
        %2229 = vbcast.lane.b32.xlu0 %v2227, 256
        %v2230 = vpop.permute.xlu0 %2229
        %s2232 = sor.u32 256, 8
        %2233 = vbcast.lane.b32.xlu0 %v2227, %s2232
        %v2234 = vpop.permute.xlu0 %2233
        %v2235 = vlaneseq
        %v2236 = vshrl.u32 %v2235, 7
        %v2237 = vsub.s32 6, %v2236
        %v2238 = vrot.slane %v2048, %v2237
        %2240 = vbcast.lane.b32.xlu0 %v2238, 256
        %v2241 = vpop.permute.xlu0 %2240
        %s2243 = sor.u32 256, 8
        %2244 = vbcast.lane.b32.xlu0 %v2238, %s2243
        %v2245 = vpop.permute.xlu0 %2244
        %v2246 = vlaneseq
        %v2247 = vshrl.u32 %v2246, 7
        %v2248 = vsub.s32 7, %v2247
        %v2249 = vrot.slane %v2048, %v2248
        %2251 = vbcast.lane.b32.xlu0 %v2249, 256
        %v2252 = vpop.permute.xlu0 %2251
        %s2254 = sor.u32 256, 8
        %2255 = vbcast.lane.b32.xlu0 %v2249, %s2254
        %v2256 = vpop.permute.xlu0 %2255
        %v2257 = vmul.f32 %v2049, %v2087
        %v2258 = vmul.f32 %v2050, %v2091
        %v2259 = vmul.f32 %v2051, %v2098
        %v2260 = vmul.f32 %v2052, %v2102
        %v2261 = vmul.f32 %v2053, %v2109
        %v2262 = vmul.f32 %v2054, %v2113
        %v2263 = vmul.f32 %v2055, %v2120
        %v2264 = vmul.f32 %v2056, %v2124
        %v2265 = vmul.f32 %v2057, %v2131
        %v2266 = vmul.f32 %v2058, %v2135
        %v2267 = vmul.f32 %v2059, %v2142
        %v2268 = vmul.f32 %v2060, %v2146
        %v2269 = vmul.f32 %v2061, %v2153
        %v2270 = vmul.f32 %v2062, %v2157
        %v2271 = vmul.f32 %v2063, %v2164
        %v2272 = vmul.f32 %v2064, %v2168
        %v2273 = vmul.f32 %v2065, %v2175
        %v2274 = vmul.f32 %v2066, %v2179
        %v2275 = vmul.f32 %v2067, %v2186
        %v2276 = vmul.f32 %v2068, %v2190
        %v2277 = vmul.f32 %v2069, %v2197
        %v2278 = vmul.f32 %v2070, %v2201
        %v2279 = vmul.f32 %v2071, %v2208
        %v2280 = vmul.f32 %v2072, %v2212
        %v2281 = vmul.f32 %v2073, %v2219
        %v2282 = vmul.f32 %v2074, %v2223
        %v2283 = vmul.f32 %v2075, %v2230
        %v2284 = vmul.f32 %v2076, %v2234
        %v2285 = vmul.f32 %v2077, %v2241
        %v2286 = vmul.f32 %v2078, %v2245
        %v2287 = vmul.f32 %v2079, %v2252
        %v2288 = vmul.f32 %v2080, %v2256
        %v2289 = vpack.c.bf16 %v2258, %v2257
        %v2290 = vpack.c.bf16 %v2260, %v2259
        %v2291 = vpack.c.bf16 %v2262, %v2261
        %v2292 = vpack.c.bf16 %v2264, %v2263
        %v2293 = vpack.c.bf16 %v2266, %v2265
        %v2294 = vpack.c.bf16 %v2268, %v2267
        %v2295 = vpack.c.bf16 %v2270, %v2269
        %v2296 = vpack.c.bf16 %v2272, %v2271
        %v2297 = vpack.c.bf16 %v2274, %v2273
        %v2298 = vpack.c.bf16 %v2276, %v2275
        %v2299 = vpack.c.bf16 %v2278, %v2277
        %v2300 = vpack.c.bf16 %v2280, %v2279
        %v2301 = vpack.c.bf16 %v2282, %v2281
        %v2302 = vpack.c.bf16 %v2284, %v2283
        %v2303 = vpack.c.bf16 %v2286, %v2285
        %v2304 = vpack.c.bf16 %v2288, %v2287
        %v2305 = vmul.bf16 %v2289, %v1515
        %v2306 = vmul.bf16 %v2290, %v1515
        %v2307 = vmul.bf16 %v2291, %v1515
        %v2308 = vmul.bf16 %v2292, %v1515
        %v2309 = vmul.bf16 %v2293, %v1515
        %v2310 = vmul.bf16 %v2294, %v1515
        %v2311 = vmul.bf16 %v2295, %v1515
        %v2312 = vmul.bf16 %v2296, %v1515
        %v2313 = vmul.bf16 %v2297, %v1515
        %v2314 = vmul.bf16 %v2298, %v1515
        %v2315 = vmul.bf16 %v2299, %v1515
        %v2316 = vmul.bf16 %v2300, %v1515
        %v2317 = vmul.bf16 %v2301, %v1515
        %v2318 = vmul.bf16 %v2302, %v1515
        %v2319 = vmul.bf16 %v2303, %v1515
        %v2320 = vmul.bf16 %v2304, %v1515
        %v2321 = vld [vmem:[#allocation2] sm:$0xff]
        %v2322 = vld [vmem:[#allocation2 + $0x8] sm:$0xff]
        %v2323 = vunpack.c.l.bf16 %v2305
        %v2324 = vunpack.c.h.bf16 %v2305
        %v2325 = vunpack.c.l.bf16 %v2306
        %v2326 = vunpack.c.h.bf16 %v2306
        %v2327 = vunpack.c.l.bf16 %v2307
        %v2328 = vunpack.c.h.bf16 %v2307
        %v2329 = vunpack.c.l.bf16 %v2308
        %v2330 = vunpack.c.h.bf16 %v2308
        %v2331 = vunpack.c.l.bf16 %v2309
        %v2332 = vunpack.c.h.bf16 %v2309
        %v2333 = vunpack.c.l.bf16 %v2310
        %v2334 = vunpack.c.h.bf16 %v2310
        %v2335 = vunpack.c.l.bf16 %v2311
        %v2336 = vunpack.c.h.bf16 %v2311
        %v2337 = vunpack.c.l.bf16 %v2312
        %v2338 = vunpack.c.h.bf16 %v2312
        %v2339 = vunpack.c.l.bf16 %v2313
        %v2340 = vunpack.c.h.bf16 %v2313
        %v2341 = vunpack.c.l.bf16 %v2314
        %v2342 = vunpack.c.h.bf16 %v2314
        %v2343 = vunpack.c.l.bf16 %v2315
        %v2344 = vunpack.c.h.bf16 %v2315
        %v2345 = vunpack.c.l.bf16 %v2316
        %v2346 = vunpack.c.h.bf16 %v2316
        %v2347 = vunpack.c.l.bf16 %v2317
        %v2348 = vunpack.c.h.bf16 %v2317
        %v2349 = vunpack.c.l.bf16 %v2318
        %v2350 = vunpack.c.h.bf16 %v2318
        %v2351 = vunpack.c.l.bf16 %v2319
        %v2352 = vunpack.c.h.bf16 %v2319
        %v2353 = vunpack.c.l.bf16 %v2320
        %v2354 = vunpack.c.h.bf16 %v2320
        %v2355 = vsel %vm1249, %v2323, 0.0
        %v2356 = vsel %vm1249, %v2324, 0.0
        %v2357 = vadd.f32 %v2355, %v2356
        %v2358 = vrot.slane %v2357, 4
        %v2359 = vadd.f32 %v2357, %v2358
        %v2360 = vrot.slane %v2359, 2
        %v2361 = vadd.f32 %v2359, %v2360
        %v2362 = vrot.slane %v2361, 1
        %v2363 = vadd.f32 %v2361, %v2362
        %v2364 = vsel %vm1249, %v2325, 0.0
        %v2365 = vsel %vm1249, %v2326, 0.0
        %v2366 = vadd.f32 %v2364, %v2365
        %v2367 = vrot.slane %v2366, 4
        %v2368 = vadd.f32 %v2366, %v2367
        %v2369 = vrot.slane %v2368, 2
        %v2370 = vadd.f32 %v2368, %v2369
        %v2371 = vrot.slane %v2370, 1
        %v2372 = vadd.f32 %v2370, %v2371
        %v2373 = vsel %vm1249, %v2327, 0.0
        %v2374 = vsel %vm1249, %v2328, 0.0
        %v2375 = vadd.f32 %v2373, %v2374
        %v2376 = vrot.slane %v2375, 4
        %v2377 = vadd.f32 %v2375, %v2376
        %v2378 = vrot.slane %v2377, 2
        %v2379 = vadd.f32 %v2377, %v2378
        %v2380 = vrot.slane %v2379, 1
        %v2381 = vadd.f32 %v2379, %v2380
        %v2382 = vsel %vm1249, %v2329, 0.0
        %v2383 = vsel %vm1249, %v2330, 0.0
        %v2384 = vadd.f32 %v2382, %v2383
        %v2385 = vrot.slane %v2384, 4
        %v2386 = vadd.f32 %v2384, %v2385
        %v2387 = vrot.slane %v2386, 2
        %v2388 = vadd.f32 %v2386, %v2387
        %v2389 = vrot.slane %v2388, 1
        %v2390 = vadd.f32 %v2388, %v2389
        %v2391 = vsel %vm1249, %v2331, 0.0
        %v2392 = vsel %vm1249, %v2332, 0.0
        %v2393 = vadd.f32 %v2391, %v2392
        %v2394 = vrot.slane %v2393, 4
        %v2395 = vadd.f32 %v2393, %v2394
        %v2396 = vrot.slane %v2395, 2
        %v2397 = vadd.f32 %v2395, %v2396
        %v2398 = vrot.slane %v2397, 1
        %v2399 = vadd.f32 %v2397, %v2398
        %v2400 = vsel %vm1249, %v2333, 0.0
        %v2401 = vsel %vm1249, %v2334, 0.0
        %v2402 = vadd.f32 %v2400, %v2401
        %v2403 = vrot.slane %v2402, 4
        %v2404 = vadd.f32 %v2402, %v2403
        %v2405 = vrot.slane %v2404, 2
        %v2406 = vadd.f32 %v2404, %v2405
        %v2407 = vrot.slane %v2406, 1
        %v2408 = vadd.f32 %v2406, %v2407
        %v2409 = vsel %vm1249, %v2335, 0.0
        %v2410 = vsel %vm1249, %v2336, 0.0
        %v2411 = vadd.f32 %v2409, %v2410
        %v2412 = vrot.slane %v2411, 4
        %v2413 = vadd.f32 %v2411, %v2412
        %v2414 = vrot.slane %v2413, 2
        %v2415 = vadd.f32 %v2413, %v2414
        %v2416 = vrot.slane %v2415, 1
        %v2417 = vadd.f32 %v2415, %v2416
        %v2418 = vsel %vm1249, %v2337, 0.0
        %v2419 = vsel %vm1249, %v2338, 0.0
        %v2420 = vadd.f32 %v2418, %v2419
        %v2421 = vrot.slane %v2420, 4
        %v2422 = vadd.f32 %v2420, %v2421
        %v2423 = vrot.slane %v2422, 2
        %v2424 = vadd.f32 %v2422, %v2423
        %v2425 = vrot.slane %v2424, 1
        %v2426 = vadd.f32 %v2424, %v2425
        %v2427 = vsel %vm1249, %v2339, 0.0
        %v2428 = vsel %vm1249, %v2340, 0.0
        %v2429 = vadd.f32 %v2427, %v2428
        %v2430 = vrot.slane %v2429, 4
        %v2431 = vadd.f32 %v2429, %v2430
        %v2432 = vrot.slane %v2431, 2
        %v2433 = vadd.f32 %v2431, %v2432
        %v2434 = vrot.slane %v2433, 1
        %v2435 = vadd.f32 %v2433, %v2434
        %v2436 = vsel %vm1249, %v2341, 0.0
        %v2437 = vsel %vm1249, %v2342, 0.0
        %v2438 = vadd.f32 %v2436, %v2437
        %v2439 = vrot.slane %v2438, 4
        %v2440 = vadd.f32 %v2438, %v2439
        %v2441 = vrot.slane %v2440, 2
        %v2442 = vadd.f32 %v2440, %v2441
        %v2443 = vrot.slane %v2442, 1
        %v2444 = vadd.f32 %v2442, %v2443
        %v2445 = vsel %vm1249, %v2343, 0.0
        %v2446 = vsel %vm1249, %v2344, 0.0
        %v2447 = vadd.f32 %v2445, %v2446
        %v2448 = vrot.slane %v2447, 4
        %v2449 = vadd.f32 %v2447, %v2448
        %v2450 = vrot.slane %v2449, 2
        %v2451 = vadd.f32 %v2449, %v2450
        %v2452 = vrot.slane %v2451, 1
        %v2453 = vadd.f32 %v2451, %v2452
        %v2454 = vsel %vm1249, %v2345, 0.0
        %v2455 = vsel %vm1249, %v2346, 0.0
        %v2456 = vadd.f32 %v2454, %v2455
        %v2457 = vrot.slane %v2456, 4
        %v2458 = vadd.f32 %v2456, %v2457
        %v2459 = vrot.slane %v2458, 2
        %v2460 = vadd.f32 %v2458, %v2459
        %v2461 = vrot.slane %v2460, 1
        %v2462 = vadd.f32 %v2460, %v2461
        %v2463 = vsel %vm1249, %v2347, 0.0
        %v2464 = vsel %vm1249, %v2348, 0.0
        %v2465 = vadd.f32 %v2463, %v2464
        %v2466 = vrot.slane %v2465, 4
        %v2467 = vadd.f32 %v2465, %v2466
        %v2468 = vrot.slane %v2467, 2
        %v2469 = vadd.f32 %v2467, %v2468
        %v2470 = vrot.slane %v2469, 1
        %v2471 = vadd.f32 %v2469, %v2470
        %v2472 = vsel %vm1249, %v2349, 0.0
        %v2473 = vsel %vm1249, %v2350, 0.0
        %v2474 = vadd.f32 %v2472, %v2473
        %v2475 = vrot.slane %v2474, 4
        %v2476 = vadd.f32 %v2474, %v2475
        %v2477 = vrot.slane %v2476, 2
        %v2478 = vadd.f32 %v2476, %v2477
        %v2479 = vrot.slane %v2478, 1
        %v2480 = vadd.f32 %v2478, %v2479
        %v2481 = vsel %vm1249, %v2351, 0.0
        %v2482 = vsel %vm1249, %v2352, 0.0
        %v2483 = vadd.f32 %v2481, %v2482
        %v2484 = vrot.slane %v2483, 4
        %v2485 = vadd.f32 %v2483, %v2484
        %v2486 = vrot.slane %v2485, 2
        %v2487 = vadd.f32 %v2485, %v2486
        %v2488 = vrot.slane %v2487, 1
        %v2489 = vadd.f32 %v2487, %v2488
        %v2490 = vsel %vm1249, %v2353, 0.0
        %v2491 = vsel %vm1249, %v2354, 0.0
        %v2492 = vadd.f32 %v2490, %v2491
        %v2493 = vrot.slane %v2492, 4
        %v2494 = vadd.f32 %v2492, %v2493
        %v2495 = vrot.slane %v2494, 2
        %v2496 = vadd.f32 %v2494, %v2495
        %v2497 = vrot.slane %v2496, 1
        %v2498 = vadd.f32 %v2496, %v2497
        %vm2515 = vcmask 1041409
        %v2516 = vsel %vm2515, %v2372, %v2363
        %vm2517 = vcmask 1042434
        %v2518 = vsel %vm2517, %v2381, %v2516
        %vm2519 = vcmask 1043459
        %v2520 = vsel %vm2519, %v2390, %v2518
        %vm2521 = vcmask 1044484
        %v2522 = vsel %vm2521, %v2399, %v2520
        %vm2523 = vcmask 1045509
        %v2524 = vsel %vm2523, %v2408, %v2522
        %vm2525 = vcmask 1046534
        %v2526 = vsel %vm2525, %v2417, %v2524
        %vm2527 = vcmask 1047559
        %v2528 = vsel %vm2527, %v2426, %v2526
        %v2529 = vsel %vm2515, %v2444, %v2435
        %v2530 = vsel %vm2517, %v2453, %v2529
        %v2531 = vsel %vm2519, %v2462, %v2530
        %v2532 = vsel %vm2521, %v2471, %v2531
        %v2533 = vsel %vm2523, %v2480, %v2532
        %v2534 = vsel %vm2525, %v2489, %v2533
        %v2535 = vsel %vm2527, %v2498, %v2534
        %v2538 = vadd.f32 %v2321, %v2528
        %v2539 = vadd.f32 %v2322, %v2535
        %2540 = vst.msk [vmem:[#allocation2] sm:$0xff] %vm1249, %v2538
        %2541 = vst.msk [vmem:[#allocation2 + $0x8] sm:$0xff] %vm1249, %v2539
        %v2542 = vld [vmem:[%s10] sm:$0xf]
        %v2543 = vld [vmem:[%s10 + $0x4] sm:$0xf]
        %v2544 = vld [vmem:[%s10 + $0x8] sm:$0xf]
        %v2545 = vld [vmem:[%s10 + $0xc] sm:$0xf]
        %v2546 = vld [vmem:[%s10 + $0x10] sm:$0xf]
        %v2547 = vld [vmem:[%s10 + $0x14] sm:$0xf]
        %v2548 = vld [vmem:[%s10 + $0x18] sm:$0xf]
        %v2549 = vld [vmem:[%s10 + $0x1c] sm:$0xf]
        %v2550 = vld [vmem:[%s11] sm:$0x1]
        %v2552 = vlaneseq
        %v2553 = vshrl.u32 %v2552, 7
        %v2554 = vsub.s32 0, %v2553
        %v2555 = vrot.slane %v2550, %v2554
        %v2565 = vunpack.c.l.b16 %v2542
        %v2566 = vunpack.c.l.b16 %v2543
        %v2567 = vunpack.c.l.b16 %v2544
        %v2568 = vunpack.c.l.b16 %v2545
        %v2569 = vunpack.c.l.b16 %v2546
        %v2570 = vunpack.c.l.b16 %v2547
        %v2571 = vunpack.c.l.b16 %v2548
        %v2572 = vunpack.c.l.b16 %v2549
        %v2573 = vpack.c.b16 %v2566, %v2565
        %v2574 = vpack.c.b16 %v2568, %v2567
        %v2575 = vpack.c.b16 %v2570, %v2569
        %v2576 = vpack.c.b16 %v2572, %v2571
        %v2582 = vsel %vm1249, %v2305, 0
        %v2585 = vsel %vm1249, %v2306, 0
        %v2588 = vsel %vm1249, %v2307, 0
        %v2591 = vsel %vm1249, %v2308, 0
        %v2594 = vsel %vm1249, %v2309, 0
        %v2597 = vsel %vm1249, %v2310, 0
        %v2600 = vsel %vm1249, %v2311, 0
        %v2603 = vsel %vm1249, %v2312, 0
        %v2606 = vsel %vm1249, %v2313, 0
        %v2609 = vsel %vm1249, %v2314, 0
        %v2612 = vsel %vm1249, %v2315, 0
        %v2615 = vsel %vm1249, %v2316, 0
        %v2618 = vsel %vm1249, %v2317, 0
        %v2621 = vsel %vm1249, %v2318, 0
        %v2624 = vsel %vm1249, %v2319, 0
        %v2627 = vsel %vm1249, %v2320, 0
        %2629 = vmatprep.subr.bf16.mxu0 0
        %2630 = vmatpush1.bf16.msra.mxu0 0
        %2631 = vmatprep.subr.bf16.mxu0 0
        %2632 = vmatpush1.bf16.msra.mxu0 0
        %2633 = vmatprep.subr.bf16.mxu0 0
        %2634 = vmatpush1.bf16.msra.mxu0 0
        %2635 = vmatprep.subr.bf16.mxu0 0
        %2636 = vmatpush1.bf16.msra.mxu0 0
        %2637 = vmatprep.subr.bf16.mxu0 0
        %2638 = vmatpush1.bf16.msra.mxu0 %v2576
        %2639 = vmatprep.subr.bf16.mxu0 0
        %2640 = vmatpush1.bf16.msra.mxu0 %v2575
        %2641 = vmatprep.subr.bf16.mxu0 0
        %2642 = vmatpush1.bf16.msra.mxu0 %v2574
        %2643 = vmatprep.subr.bf16.mxu0 0
        %2644 = vmatpush1.bf16.msra.mxu0 %v2573
        %2645 = vmatprep.subr.bf16.mxu0 0
        %2646 = vmatpush2.bf16.msra.mxu0 0
        %2647 = vmatprep.subr.bf16.mxu0 0
        %2648 = vmatpush2.bf16.msra.mxu0 0
        %2649 = vmatprep.subr.bf16.mxu0 0
        %2650 = vmatpush2.bf16.msra.mxu0 0
        %2651 = vmatprep.subr.bf16.mxu0 0
        %2652 = vmatpush2.bf16.msra.mxu0 0
        %2653 = vmatprep.subr.bf16.mxu0 0
        %2654 = vmatpush2.bf16.msra.mxu0 0
        %2655 = vmatprep.subr.bf16.mxu0 0
        %2656 = vmatpush2.bf16.msra.mxu0 0
        %2657 = vmatprep.subr.bf16.mxu0 0
        %2658 = vmatpush2.bf16.msra.mxu0 0
        %2659 = vmatprep.subr.bf16.mxu0 0
        %2660 = vmatpush2.bf16.msra.mxu0 0
        %2661 = vmatprep.mubr.bf16.mxu0 0
        %2662 = vmatmul.mubr.bf16.gmra.mxu0 %v2582
        %v2663 = vpop.f32.mrf.mxu0
        %v2664 = vadd.f32 %v2555, %v2663
        %v2665 = vpop.f32.mrf.mxu0
        %v2666 = vpop.f32.mrf.mxu0
        %v2667 = vadd.f32 %v2555, %v2666
        %v2668 = vpop.f32.mrf.mxu0
        %2669 = vmatprep.mubr.bf16.mxu0 0
        %2670 = vmatmul.mubr.bf16.gmra.mxu0 %v2585
        %v2671 = vpop.f32.mrf.mxu0
        %v2672 = vadd.f32 %v2555, %v2671
        %v2673 = vpop.f32.mrf.mxu0
        %v2674 = vpop.f32.mrf.mxu0
        %v2675 = vadd.f32 %v2555, %v2674
        %v2676 = vpop.f32.mrf.mxu0
        %2677 = vmatprep.mubr.bf16.mxu0 0
        %2678 = vmatmul.mubr.bf16.gmra.mxu0 %v2588
        %v2679 = vpop.f32.mrf.mxu0
        %v2680 = vadd.f32 %v2555, %v2679
        %v2681 = vpop.f32.mrf.mxu0
        %v2682 = vpop.f32.mrf.mxu0
        %v2683 = vadd.f32 %v2555, %v2682
        %v2684 = vpop.f32.mrf.mxu0
        %2685 = vmatprep.mubr.bf16.mxu0 0
        %2686 = vmatmul.mubr.bf16.gmra.mxu0 %v2591
        %v2687 = vpop.f32.mrf.mxu0
        %v2688 = vadd.f32 %v2555, %v2687
        %v2689 = vpop.f32.mrf.mxu0
        %v2690 = vpop.f32.mrf.mxu0
        %v2691 = vadd.f32 %v2555, %v2690
        %v2692 = vpop.f32.mrf.mxu0
        %2693 = vmatprep.mubr.bf16.mxu0 0
        %2694 = vmatmul.mubr.bf16.gmra.mxu0 %v2594
        %v2695 = vpop.f32.mrf.mxu0
        %v2696 = vadd.f32 %v2555, %v2695
        %v2697 = vpop.f32.mrf.mxu0
        %v2698 = vpop.f32.mrf.mxu0
        %v2699 = vadd.f32 %v2555, %v2698
        %v2700 = vpop.f32.mrf.mxu0
        %2701 = vmatprep.mubr.bf16.mxu0 0
        %2702 = vmatmul.mubr.bf16.gmra.mxu0 %v2597
        %v2703 = vpop.f32.mrf.mxu0
        %v2704 = vadd.f32 %v2555, %v2703
        %v2705 = vpop.f32.mrf.mxu0
        %v2706 = vpop.f32.mrf.mxu0
        %v2707 = vadd.f32 %v2555, %v2706
        %v2708 = vpop.f32.mrf.mxu0
        %2709 = vmatprep.mubr.bf16.mxu0 0
        %2710 = vmatmul.mubr.bf16.gmra.mxu0 %v2600
        %v2711 = vpop.f32.mrf.mxu0
        %v2712 = vadd.f32 %v2555, %v2711
        %v2713 = vpop.f32.mrf.mxu0
        %v2714 = vpop.f32.mrf.mxu0
        %v2715 = vadd.f32 %v2555, %v2714
        %v2716 = vpop.f32.mrf.mxu0
        %2717 = vmatprep.mubr.bf16.mxu0 0
        %2718 = vmatmul.mubr.bf16.gmra.mxu0 %v2603
        %v2719 = vpop.f32.mrf.mxu0
        %v2720 = vadd.f32 %v2555, %v2719
        %v2721 = vpop.f32.mrf.mxu0
        %v2722 = vpop.f32.mrf.mxu0
        %v2723 = vadd.f32 %v2555, %v2722
        %v2724 = vpop.f32.mrf.mxu0
        %2725 = vmatprep.mubr.bf16.mxu0 0
        %2726 = vmatmul.mubr.bf16.gmra.mxu0 %v2606
        %v2727 = vpop.f32.mrf.mxu0
        %v2728 = vadd.f32 %v2555, %v2727
        %v2729 = vpop.f32.mrf.mxu0
        %v2730 = vpop.f32.mrf.mxu0
        %v2731 = vadd.f32 %v2555, %v2730
        %v2732 = vpop.f32.mrf.mxu0
        %2733 = vmatprep.mubr.bf16.mxu0 0
        %2734 = vmatmul.mubr.bf16.gmra.mxu0 %v2609
        %v2735 = vpop.f32.mrf.mxu0
        %v2736 = vadd.f32 %v2555, %v2735
        %v2737 = vpop.f32.mrf.mxu0
        %v2738 = vpop.f32.mrf.mxu0
        %v2739 = vadd.f32 %v2555, %v2738
        %v2740 = vpop.f32.mrf.mxu0
        %2741 = vmatprep.mubr.bf16.mxu0 0
        %2742 = vmatmul.mubr.bf16.gmra.mxu0 %v2612
        %v2743 = vpop.f32.mrf.mxu0
        %v2744 = vadd.f32 %v2555, %v2743
        %v2745 = vpop.f32.mrf.mxu0
        %v2746 = vpop.f32.mrf.mxu0
        %v2747 = vadd.f32 %v2555, %v2746
        %v2748 = vpop.f32.mrf.mxu0
        %2749 = vmatprep.mubr.bf16.mxu0 0
        %2750 = vmatmul.mubr.bf16.gmra.mxu0 %v2615
        %v2751 = vpop.f32.mrf.mxu0
        %v2752 = vadd.f32 %v2555, %v2751
        %v2753 = vpop.f32.mrf.mxu0
        %v2754 = vpop.f32.mrf.mxu0
        %v2755 = vadd.f32 %v2555, %v2754
        %v2756 = vpop.f32.mrf.mxu0
        %2757 = vmatprep.mubr.bf16.mxu0 0
        %2758 = vmatmul.mubr.bf16.gmra.mxu0 %v2618
        %v2759 = vpop.f32.mrf.mxu0
        %v2760 = vadd.f32 %v2555, %v2759
        %v2761 = vpop.f32.mrf.mxu0
        %v2762 = vpop.f32.mrf.mxu0
        %v2763 = vadd.f32 %v2555, %v2762
        %v2764 = vpop.f32.mrf.mxu0
        %2765 = vmatprep.mubr.bf16.mxu0 0
        %2766 = vmatmul.mubr.bf16.gmra.mxu0 %v2621
        %v2767 = vpop.f32.mrf.mxu0
        %v2768 = vadd.f32 %v2555, %v2767
        %v2769 = vpop.f32.mrf.mxu0
        %v2770 = vpop.f32.mrf.mxu0
        %v2771 = vadd.f32 %v2555, %v2770
        %v2772 = vpop.f32.mrf.mxu0
        %2773 = vmatprep.mubr.bf16.mxu0 0
        %2774 = vmatmul.mubr.bf16.gmra.mxu0 %v2624
        %v2775 = vpop.f32.mrf.mxu0
        %v2776 = vadd.f32 %v2555, %v2775
        %v2777 = vpop.f32.mrf.mxu0
        %v2778 = vpop.f32.mrf.mxu0
        %v2779 = vadd.f32 %v2555, %v2778
        %v2780 = vpop.f32.mrf.mxu0
        %2781 = vmatprep.mubr.bf16.mxu0 0
        %2782 = vmatmul.mubr.bf16.gmra.mxu0 %v2627
        %v2783 = vpop.f32.mrf.mxu0
        %v2784 = vadd.f32 %v2555, %v2783
        %v2785 = vpop.f32.mrf.mxu0
        %v2786 = vpop.f32.mrf.mxu0
        %v2787 = vadd.f32 %v2555, %v2786
        %v2788 = vpop.f32.mrf.mxu0
        %2789 = vdwg.mxu0
        %v2790 = vpack.c.bf16 %v2667, %v2664
        %v2791 = vpack.c.bf16 %v2675, %v2672
        %v2792 = vpack.c.bf16 %v2683, %v2680
        %v2793 = vpack.c.bf16 %v2691, %v2688
        %v2794 = vpack.c.bf16 %v2699, %v2696
        %v2795 = vpack.c.bf16 %v2707, %v2704
        %v2796 = vpack.c.bf16 %v2715, %v2712
        %v2797 = vpack.c.bf16 %v2723, %v2720
        %v2798 = vpack.c.bf16 %v2731, %v2728
        %v2799 = vpack.c.bf16 %v2739, %v2736
        %v2800 = vpack.c.bf16 %v2747, %v2744
        %v2801 = vpack.c.bf16 %v2755, %v2752
        %v2802 = vpack.c.bf16 %v2763, %v2760
        %v2803 = vpack.c.bf16 %v2771, %v2768
        %v2804 = vpack.c.bf16 %v2779, %v2776
        %v2805 = vpack.c.bf16 %v2787, %v2784
        %v2806 = vld [vmem:[#allocation3] sm:$0xff]
        %v2807 = vld [vmem:[#allocation3 + $0x8] sm:$0xff]
        %v2808 = vld [vmem:[#allocation3 + $0x10] sm:$0xff]
        %v2809 = vld [vmem:[#allocation3 + $0x18] sm:$0xff]
        %v2810 = vld [vmem:[#allocation3 + $0x20] sm:$0xff]
        %v2811 = vld [vmem:[#allocation3 + $0x28] sm:$0xff]
        %v2812 = vld [vmem:[%s1079] sm:$0xf]
        %v2813 = vld [vmem:[%s1079 + $0x4] sm:$0xf]
        %v2816 = vunpack.c.l.b16 %v2812
        %v2817 = vunpack.c.l.b16 %v2813
        %v2818 = vpack.c.b16 %v2817, %v2816
        %v2820 = vpack.i.b16 %v2818, %v2818
        %v2822 = vlaneseq
        %v2823 = vshrl.u32 %v2822, 7
        %v2824 = vsub.s32 0, %v2823
        %v2825 = vrot.slane %v2820, %v2824
        %2827 = vbcast.lane.c.b16.xlu0 %v2825, 256
        %v2828 = vpop.permute.xlu0 %2827
        %v2829 = vshrl.u32 %v2818, 16
        %v2830 = vpack.i.b16 %v2829, %v2829
        %v2832 = vlaneseq
        %v2833 = vshrl.u32 %v2832, 7
        %v2834 = vsub.s32 0, %v2833
        %v2835 = vrot.slane %v2830, %v2834
        %2837 = vbcast.lane.c.b16.xlu0 %v2835, 256
        %v2838 = vpop.permute.xlu0 %2837
        %v2839 = vlaneseq
        %v2840 = vshrl.u32 %v2839, 7
        %v2841 = vsub.s32 1, %v2840
        %v2842 = vrot.slane %v2820, %v2841
        %2844 = vbcast.lane.c.b16.xlu0 %v2842, 256
        %v2845 = vpop.permute.xlu0 %2844
        %v2846 = vlaneseq
        %v2847 = vshrl.u32 %v2846, 7
        %v2848 = vsub.s32 1, %v2847
        %v2849 = vrot.slane %v2830, %v2848
        %2851 = vbcast.lane.c.b16.xlu0 %v2849, 256
        %v2852 = vpop.permute.xlu0 %2851
        %v2853 = vlaneseq
        %v2854 = vshrl.u32 %v2853, 7
        %v2855 = vsub.s32 2, %v2854
        %v2856 = vrot.slane %v2820, %v2855
        %2858 = vbcast.lane.c.b16.xlu0 %v2856, 256
        %v2859 = vpop.permute.xlu0 %2858
        %v2860 = vlaneseq
        %v2861 = vshrl.u32 %v2860, 7
        %v2862 = vsub.s32 2, %v2861
        %v2863 = vrot.slane %v2830, %v2862
        %2865 = vbcast.lane.c.b16.xlu0 %v2863, 256
        %v2866 = vpop.permute.xlu0 %2865
        %v2867 = vlaneseq
        %v2868 = vshrl.u32 %v2867, 7
        %v2869 = vsub.s32 3, %v2868
        %v2870 = vrot.slane %v2820, %v2869
        %2872 = vbcast.lane.c.b16.xlu0 %v2870, 256
        %v2873 = vpop.permute.xlu0 %2872
        %v2874 = vlaneseq
        %v2875 = vshrl.u32 %v2874, 7
        %v2876 = vsub.s32 3, %v2875
        %v2877 = vrot.slane %v2830, %v2876
        %2879 = vbcast.lane.c.b16.xlu0 %v2877, 256
        %v2880 = vpop.permute.xlu0 %2879
        %v2881 = vlaneseq
        %v2882 = vshrl.u32 %v2881, 7
        %v2883 = vsub.s32 4, %v2882
        %v2884 = vrot.slane %v2820, %v2883
        %2886 = vbcast.lane.c.b16.xlu0 %v2884, 256
        %v2887 = vpop.permute.xlu0 %2886
        %v2888 = vlaneseq
        %v2889 = vshrl.u32 %v2888, 7
        %v2890 = vsub.s32 4, %v2889
        %v2891 = vrot.slane %v2830, %v2890
        %2893 = vbcast.lane.c.b16.xlu0 %v2891, 256
        %v2894 = vpop.permute.xlu0 %2893
        %v2895 = vlaneseq
        %v2896 = vshrl.u32 %v2895, 7
        %v2897 = vsub.s32 5, %v2896
        %v2898 = vrot.slane %v2820, %v2897
        %2900 = vbcast.lane.c.b16.xlu0 %v2898, 256
        %v2901 = vpop.permute.xlu0 %2900
        %v2902 = vlaneseq
        %v2903 = vshrl.u32 %v2902, 7
        %v2904 = vsub.s32 5, %v2903
        %v2905 = vrot.slane %v2830, %v2904
        %2907 = vbcast.lane.c.b16.xlu0 %v2905, 256
        %v2908 = vpop.permute.xlu0 %2907
        %v2909 = vlaneseq
        %v2910 = vshrl.u32 %v2909, 7
        %v2911 = vsub.s32 6, %v2910
        %v2912 = vrot.slane %v2820, %v2911
        %2914 = vbcast.lane.c.b16.xlu0 %v2912, 256
        %v2915 = vpop.permute.xlu0 %2914
        %v2916 = vlaneseq
        %v2917 = vshrl.u32 %v2916, 7
        %v2918 = vsub.s32 6, %v2917
        %v2919 = vrot.slane %v2830, %v2918
        %2921 = vbcast.lane.c.b16.xlu0 %v2919, 256
        %v2922 = vpop.permute.xlu0 %2921
        %v2923 = vlaneseq
        %v2924 = vshrl.u32 %v2923, 7
        %v2925 = vsub.s32 7, %v2924
        %v2926 = vrot.slane %v2820, %v2925
        %2928 = vbcast.lane.c.b16.xlu0 %v2926, 256
        %v2929 = vpop.permute.xlu0 %2928
        %v2930 = vlaneseq
        %v2931 = vshrl.u32 %v2930, 7
        %v2932 = vsub.s32 7, %v2931
        %v2933 = vrot.slane %v2830, %v2932
        %2935 = vbcast.lane.c.b16.xlu0 %v2933, 256
        %v2936 = vpop.permute.xlu0 %2935
        %v2937 = vmul.bf16 %v2790, %v2828
        %v2938 = vmul.bf16 %v2791, %v2838
        %v2939 = vmul.bf16 %v2792, %v2845
        %v2940 = vmul.bf16 %v2793, %v2852
        %v2941 = vmul.bf16 %v2794, %v2859
        %v2942 = vmul.bf16 %v2795, %v2866
        %v2943 = vmul.bf16 %v2796, %v2873
        %v2944 = vmul.bf16 %v2797, %v2880
        %v2945 = vmul.bf16 %v2798, %v2887
        %v2946 = vmul.bf16 %v2799, %v2894
        %v2947 = vmul.bf16 %v2800, %v2901
        %v2948 = vmul.bf16 %v2801, %v2908
        %v2949 = vmul.bf16 %v2802, %v2915
        %v2950 = vmul.bf16 %v2803, %v2922
        %v2951 = vmul.bf16 %v2804, %v2929
        %v2952 = vmul.bf16 %v2805, %v2936
        %v2953 = vunpack.c.l.bf16 %v2937
        %v2954 = vunpack.c.h.bf16 %v2937
        %v2955 = vunpack.c.l.bf16 %v2938
        %v2956 = vunpack.c.h.bf16 %v2938
        %v2957 = vunpack.c.l.bf16 %v2939
        %v2958 = vunpack.c.h.bf16 %v2939
        %v2959 = vunpack.c.l.bf16 %v2940
        %v2960 = vunpack.c.h.bf16 %v2940
        %v2961 = vunpack.c.l.bf16 %v2941
        %v2962 = vunpack.c.h.bf16 %v2941
        %v2963 = vunpack.c.l.bf16 %v2942
        %v2964 = vunpack.c.h.bf16 %v2942
        %v2965 = vunpack.c.l.bf16 %v2943
        %v2966 = vunpack.c.h.bf16 %v2943
        %v2967 = vunpack.c.l.bf16 %v2944
        %v2968 = vunpack.c.h.bf16 %v2944
        %v2969 = vunpack.c.l.bf16 %v2945
        %v2970 = vunpack.c.h.bf16 %v2945
        %v2971 = vunpack.c.l.bf16 %v2946
        %v2972 = vunpack.c.h.bf16 %v2946
        %v2973 = vunpack.c.l.bf16 %v2947
        %v2974 = vunpack.c.h.bf16 %v2947
        %v2975 = vunpack.c.l.bf16 %v2948
        %v2976 = vunpack.c.h.bf16 %v2948
        %v2977 = vunpack.c.l.bf16 %v2949
        %v2978 = vunpack.c.h.bf16 %v2949
        %v2979 = vunpack.c.l.bf16 %v2950
        %v2980 = vunpack.c.h.bf16 %v2950
        %v2981 = vunpack.c.l.bf16 %v2951
        %v2982 = vunpack.c.h.bf16 %v2951
        %v2983 = vunpack.c.l.bf16 %v2952
        %v2984 = vunpack.c.h.bf16 %v2952
        %v2985 = vsel %vm1249, %v2953, 0.0
        %v2986 = vsel %vm1249, %v2954, 0.0
        %v2987 = vadd.f32 %v2985, %v2986
        %v2988 = vrot.slane %v2987, 4
        %v2989 = vadd.f32 %v2987, %v2988
        %v2990 = vrot.slane %v2989, 2
        %v2991 = vadd.f32 %v2989, %v2990
        %v2992 = vrot.slane %v2991, 1
        %v2993 = vadd.f32 %v2991, %v2992
        %v2994 = vsel %vm1249, %v2955, 0.0
        %v2995 = vsel %vm1249, %v2956, 0.0
        %v2996 = vadd.f32 %v2994, %v2995
        %v2997 = vrot.slane %v2996, 4
        %v2998 = vadd.f32 %v2996, %v2997
        %v2999 = vrot.slane %v2998, 2
        %v3000 = vadd.f32 %v2998, %v2999
        %v3001 = vrot.slane %v3000, 1
        %v3002 = vadd.f32 %v3000, %v3001
        %v3003 = vsel %vm1249, %v2957, 0.0
        %v3004 = vsel %vm1249, %v2958, 0.0
        %v3005 = vadd.f32 %v3003, %v3004
        %v3006 = vrot.slane %v3005, 4
        %v3007 = vadd.f32 %v3005, %v3006
        %v3008 = vrot.slane %v3007, 2
        %v3009 = vadd.f32 %v3007, %v3008
        %v3010 = vrot.slane %v3009, 1
        %v3011 = vadd.f32 %v3009, %v3010
        %v3012 = vsel %vm1249, %v2959, 0.0
        %v3013 = vsel %vm1249, %v2960, 0.0
        %v3014 = vadd.f32 %v3012, %v3013
        %v3015 = vrot.slane %v3014, 4
        %v3016 = vadd.f32 %v3014, %v3015
        %v3017 = vrot.slane %v3016, 2
        %v3018 = vadd.f32 %v3016, %v3017
        %v3019 = vrot.slane %v3018, 1
        %v3020 = vadd.f32 %v3018, %v3019
        %v3021 = vsel %vm1249, %v2961, 0.0
        %v3022 = vsel %vm1249, %v2962, 0.0
        %v3023 = vadd.f32 %v3021, %v3022
        %v3024 = vrot.slane %v3023, 4
        %v3025 = vadd.f32 %v3023, %v3024
        %v3026 = vrot.slane %v3025, 2
        %v3027 = vadd.f32 %v3025, %v3026
        %v3028 = vrot.slane %v3027, 1
        %v3029 = vadd.f32 %v3027, %v3028
        %v3030 = vsel %vm1249, %v2963, 0.0
        %v3031 = vsel %vm1249, %v2964, 0.0
        %v3032 = vadd.f32 %v3030, %v3031
        %v3033 = vrot.slane %v3032, 4
        %v3034 = vadd.f32 %v3032, %v3033
        %v3035 = vrot.slane %v3034, 2
        %v3036 = vadd.f32 %v3034, %v3035
        %v3037 = vrot.slane %v3036, 1
        %v3038 = vadd.f32 %v3036, %v3037
        %v3039 = vsel %vm1249, %v2965, 0.0
        %v3040 = vsel %vm1249, %v2966, 0.0
        %v3041 = vadd.f32 %v3039, %v3040
        %v3042 = vrot.slane %v3041, 4
        %v3043 = vadd.f32 %v3041, %v3042
        %v3044 = vrot.slane %v3043, 2
        %v3045 = vadd.f32 %v3043, %v3044
        %v3046 = vrot.slane %v3045, 1
        %v3047 = vadd.f32 %v3045, %v3046
        %v3048 = vsel %vm1249, %v2967, 0.0
        %v3049 = vsel %vm1249, %v2968, 0.0
        %v3050 = vadd.f32 %v3048, %v3049
        %v3051 = vrot.slane %v3050, 4
        %v3052 = vadd.f32 %v3050, %v3051
        %v3053 = vrot.slane %v3052, 2
        %v3054 = vadd.f32 %v3052, %v3053
        %v3055 = vrot.slane %v3054, 1
        %v3056 = vadd.f32 %v3054, %v3055
        %v3057 = vsel %vm1249, %v2969, 0.0
        %v3058 = vsel %vm1249, %v2970, 0.0
        %v3059 = vadd.f32 %v3057, %v3058
        %v3060 = vrot.slane %v3059, 4
        %v3061 = vadd.f32 %v3059, %v3060
        %v3062 = vrot.slane %v3061, 2
        %v3063 = vadd.f32 %v3061, %v3062
        %v3064 = vrot.slane %v3063, 1
        %v3065 = vadd.f32 %v3063, %v3064
        %v3066 = vsel %vm1249, %v2971, 0.0
        %v3067 = vsel %vm1249, %v2972, 0.0
        %v3068 = vadd.f32 %v3066, %v3067
        %v3069 = vrot.slane %v3068, 4
        %v3070 = vadd.f32 %v3068, %v3069
        %v3071 = vrot.slane %v3070, 2
        %v3072 = vadd.f32 %v3070, %v3071
        %v3073 = vrot.slane %v3072, 1
        %v3074 = vadd.f32 %v3072, %v3073
        %v3075 = vsel %vm1249, %v2973, 0.0
        %v3076 = vsel %vm1249, %v2974, 0.0
        %v3077 = vadd.f32 %v3075, %v3076
        %v3078 = vrot.slane %v3077, 4
        %v3079 = vadd.f32 %v3077, %v3078
        %v3080 = vrot.slane %v3079, 2
        %v3081 = vadd.f32 %v3079, %v3080
        %v3082 = vrot.slane %v3081, 1
        %v3083 = vadd.f32 %v3081, %v3082
        %v3084 = vsel %vm1249, %v2975, 0.0
        %v3085 = vsel %vm1249, %v2976, 0.0
        %v3086 = vadd.f32 %v3084, %v3085
        %v3087 = vrot.slane %v3086, 4
        %v3088 = vadd.f32 %v3086, %v3087
        %v3089 = vrot.slane %v3088, 2
        %v3090 = vadd.f32 %v3088, %v3089
        %v3091 = vrot.slane %v3090, 1
        %v3092 = vadd.f32 %v3090, %v3091
        %v3093 = vsel %vm1249, %v2977, 0.0
        %v3094 = vsel %vm1249, %v2978, 0.0
        %v3095 = vadd.f32 %v3093, %v3094
        %v3096 = vrot.slane %v3095, 4
        %v3097 = vadd.f32 %v3095, %v3096
        %v3098 = vrot.slane %v3097, 2
        %v3099 = vadd.f32 %v3097, %v3098
        %v3100 = vrot.slane %v3099, 1
        %v3101 = vadd.f32 %v3099, %v3100
        %v3102 = vsel %vm1249, %v2979, 0.0
        %v3103 = vsel %vm1249, %v2980, 0.0
        %v3104 = vadd.f32 %v3102, %v3103
        %v3105 = vrot.slane %v3104, 4
        %v3106 = vadd.f32 %v3104, %v3105
        %v3107 = vrot.slane %v3106, 2
        %v3108 = vadd.f32 %v3106, %v3107
        %v3109 = vrot.slane %v3108, 1
        %v3110 = vadd.f32 %v3108, %v3109
        %v3111 = vsel %vm1249, %v2981, 0.0
        %v3112 = vsel %vm1249, %v2982, 0.0
        %v3113 = vadd.f32 %v3111, %v3112
        %v3114 = vrot.slane %v3113, 4
        %v3115 = vadd.f32 %v3113, %v3114
        %v3116 = vrot.slane %v3115, 2
        %v3117 = vadd.f32 %v3115, %v3116
        %v3118 = vrot.slane %v3117, 1
        %v3119 = vadd.f32 %v3117, %v3118
        %v3120 = vsel %vm1249, %v2983, 0.0
        %v3121 = vsel %vm1249, %v2984, 0.0
        %v3122 = vadd.f32 %v3120, %v3121
        %v3123 = vrot.slane %v3122, 4
        %v3124 = vadd.f32 %v3122, %v3123
        %v3125 = vrot.slane %v3124, 2
        %v3126 = vadd.f32 %v3124, %v3125
        %v3127 = vrot.slane %v3126, 1
        %v3128 = vadd.f32 %v3126, %v3127
        %s3129 = scalar_lea.vmem %s1079, 8
        %v3130 = vld [vmem:[%s3129] sm:$0xf]
        %v3131 = vld [vmem:[%s3129 + $0x4] sm:$0xf]
        %v3134 = vunpack.c.l.b16 %v3130
        %v3135 = vunpack.c.l.b16 %v3131
        %v3136 = vpack.c.b16 %v3135, %v3134
        %v3138 = vpack.i.b16 %v3136, %v3136
        %v3140 = vlaneseq
        %v3141 = vshrl.u32 %v3140, 7
        %v3142 = vsub.s32 0, %v3141
        %v3143 = vrot.slane %v3138, %v3142
        %3145 = vbcast.lane.c.b16.xlu0 %v3143, 256
        %v3146 = vpop.permute.xlu0 %3145
        %v3147 = vshrl.u32 %v3136, 16
        %v3148 = vpack.i.b16 %v3147, %v3147
        %v3150 = vlaneseq
        %v3151 = vshrl.u32 %v3150, 7
        %v3152 = vsub.s32 0, %v3151
        %v3153 = vrot.slane %v3148, %v3152
        %3155 = vbcast.lane.c.b16.xlu0 %v3153, 256
        %v3156 = vpop.permute.xlu0 %3155
        %v3157 = vlaneseq
        %v3158 = vshrl.u32 %v3157, 7
        %v3159 = vsub.s32 1, %v3158
        %v3160 = vrot.slane %v3138, %v3159
        %3162 = vbcast.lane.c.b16.xlu0 %v3160, 256
        %v3163 = vpop.permute.xlu0 %3162
        %v3164 = vlaneseq
        %v3165 = vshrl.u32 %v3164, 7
        %v3166 = vsub.s32 1, %v3165
        %v3167 = vrot.slane %v3148, %v3166
        %3169 = vbcast.lane.c.b16.xlu0 %v3167, 256
        %v3170 = vpop.permute.xlu0 %3169
        %v3171 = vlaneseq
        %v3172 = vshrl.u32 %v3171, 7
        %v3173 = vsub.s32 2, %v3172
        %v3174 = vrot.slane %v3138, %v3173
        %3176 = vbcast.lane.c.b16.xlu0 %v3174, 256
        %v3177 = vpop.permute.xlu0 %3176
        %v3178 = vlaneseq
        %v3179 = vshrl.u32 %v3178, 7
        %v3180 = vsub.s32 2, %v3179
        %v3181 = vrot.slane %v3148, %v3180
        %3183 = vbcast.lane.c.b16.xlu0 %v3181, 256
        %v3184 = vpop.permute.xlu0 %3183
        %v3185 = vlaneseq
        %v3186 = vshrl.u32 %v3185, 7
        %v3187 = vsub.s32 3, %v3186
        %v3188 = vrot.slane %v3138, %v3187
        %3190 = vbcast.lane.c.b16.xlu0 %v3188, 256
        %v3191 = vpop.permute.xlu0 %3190
        %v3192 = vlaneseq
        %v3193 = vshrl.u32 %v3192, 7
        %v3194 = vsub.s32 3, %v3193
        %v3195 = vrot.slane %v3148, %v3194
        %3197 = vbcast.lane.c.b16.xlu0 %v3195, 256
        %v3198 = vpop.permute.xlu0 %3197
        %v3199 = vlaneseq
        %v3200 = vshrl.u32 %v3199, 7
        %v3201 = vsub.s32 4, %v3200
        %v3202 = vrot.slane %v3138, %v3201
        %3204 = vbcast.lane.c.b16.xlu0 %v3202, 256
        %v3205 = vpop.permute.xlu0 %3204
        %v3206 = vlaneseq
        %v3207 = vshrl.u32 %v3206, 7
        %v3208 = vsub.s32 4, %v3207
        %v3209 = vrot.slane %v3148, %v3208
        %3211 = vbcast.lane.c.b16.xlu0 %v3209, 256
        %v3212 = vpop.permute.xlu0 %3211
        %v3213 = vlaneseq
        %v3214 = vshrl.u32 %v3213, 7
        %v3215 = vsub.s32 5, %v3214
        %v3216 = vrot.slane %v3138, %v3215
        %3218 = vbcast.lane.c.b16.xlu0 %v3216, 256
        %v3219 = vpop.permute.xlu0 %3218
        %v3220 = vlaneseq
        %v3221 = vshrl.u32 %v3220, 7
        %v3222 = vsub.s32 5, %v3221
        %v3223 = vrot.slane %v3148, %v3222
        %3225 = vbcast.lane.c.b16.xlu0 %v3223, 256
        %v3226 = vpop.permute.xlu0 %3225
        %v3227 = vlaneseq
        %v3228 = vshrl.u32 %v3227, 7
        %v3229 = vsub.s32 6, %v3228
        %v3230 = vrot.slane %v3138, %v3229
        %3232 = vbcast.lane.c.b16.xlu0 %v3230, 256
        %v3233 = vpop.permute.xlu0 %3232
        %v3234 = vlaneseq
        %v3235 = vshrl.u32 %v3234, 7
        %v3236 = vsub.s32 6, %v3235
        %v3237 = vrot.slane %v3148, %v3236
        %3239 = vbcast.lane.c.b16.xlu0 %v3237, 256
        %v3240 = vpop.permute.xlu0 %3239
        %v3241 = vlaneseq
        %v3242 = vshrl.u32 %v3241, 7
        %v3243 = vsub.s32 7, %v3242
        %v3244 = vrot.slane %v3138, %v3243
        %3246 = vbcast.lane.c.b16.xlu0 %v3244, 256
        %v3247 = vpop.permute.xlu0 %3246
        %v3248 = vlaneseq
        %v3249 = vshrl.u32 %v3248, 7
        %v3250 = vsub.s32 7, %v3249
        %v3251 = vrot.slane %v3148, %v3250
        %3253 = vbcast.lane.c.b16.xlu0 %v3251, 256
        %v3254 = vpop.permute.xlu0 %3253
        %v3255 = vmul.bf16 %v2790, %v3146
        %v3256 = vmul.bf16 %v2791, %v3156
        %v3257 = vmul.bf16 %v2792, %v3163
        %v3258 = vmul.bf16 %v2793, %v3170
        %v3259 = vmul.bf16 %v2794, %v3177
        %v3260 = vmul.bf16 %v2795, %v3184
        %v3261 = vmul.bf16 %v2796, %v3191
        %v3262 = vmul.bf16 %v2797, %v3198
        %v3263 = vmul.bf16 %v2798, %v3205
        %v3264 = vmul.bf16 %v2799, %v3212
        %v3265 = vmul.bf16 %v2800, %v3219
        %v3266 = vmul.bf16 %v2801, %v3226
        %v3267 = vmul.bf16 %v2802, %v3233
        %v3268 = vmul.bf16 %v2803, %v3240
        %v3269 = vmul.bf16 %v2804, %v3247
        %v3270 = vmul.bf16 %v2805, %v3254
        %v3271 = vunpack.c.l.bf16 %v3255
        %v3272 = vunpack.c.h.bf16 %v3255
        %v3273 = vunpack.c.l.bf16 %v3256
        %v3274 = vunpack.c.h.bf16 %v3256
        %v3275 = vunpack.c.l.bf16 %v3257
        %v3276 = vunpack.c.h.bf16 %v3257
        %v3277 = vunpack.c.l.bf16 %v3258
        %v3278 = vunpack.c.h.bf16 %v3258
        %v3279 = vunpack.c.l.bf16 %v3259
        %v3280 = vunpack.c.h.bf16 %v3259
        %v3281 = vunpack.c.l.bf16 %v3260
        %v3282 = vunpack.c.h.bf16 %v3260
        %v3283 = vunpack.c.l.bf16 %v3261
        %v3284 = vunpack.c.h.bf16 %v3261
        %v3285 = vunpack.c.l.bf16 %v3262
        %v3286 = vunpack.c.h.bf16 %v3262
        %v3287 = vunpack.c.l.bf16 %v3263
        %v3288 = vunpack.c.h.bf16 %v3263
        %v3289 = vunpack.c.l.bf16 %v3264
        %v3290 = vunpack.c.h.bf16 %v3264
        %v3291 = vunpack.c.l.bf16 %v3265
        %v3292 = vunpack.c.h.bf16 %v3265
        %v3293 = vunpack.c.l.bf16 %v3266
        %v3294 = vunpack.c.h.bf16 %v3266
        %v3295 = vunpack.c.l.bf16 %v3267
        %v3296 = vunpack.c.h.bf16 %v3267
        %v3297 = vunpack.c.l.bf16 %v3268
        %v3298 = vunpack.c.h.bf16 %v3268
        %v3299 = vunpack.c.l.bf16 %v3269
        %v3300 = vunpack.c.h.bf16 %v3269
        %v3301 = vunpack.c.l.bf16 %v3270
        %v3302 = vunpack.c.h.bf16 %v3270
        %v3303 = vsel %vm1249, %v3271, 0.0
        %v3304 = vsel %vm1249, %v3272, 0.0
        %v3305 = vadd.f32 %v3303, %v3304
        %v3306 = vrot.slane %v3305, 4
        %v3307 = vadd.f32 %v3305, %v3306
        %v3308 = vrot.slane %v3307, 2
        %v3309 = vadd.f32 %v3307, %v3308
        %v3310 = vrot.slane %v3309, 1
        %v3311 = vadd.f32 %v3309, %v3310
        %v3312 = vsel %vm1249, %v3273, 0.0
        %v3313 = vsel %vm1249, %v3274, 0.0
        %v3314 = vadd.f32 %v3312, %v3313
        %v3315 = vrot.slane %v3314, 4
        %v3316 = vadd.f32 %v3314, %v3315
        %v3317 = vrot.slane %v3316, 2
        %v3318 = vadd.f32 %v3316, %v3317
        %v3319 = vrot.slane %v3318, 1
        %v3320 = vadd.f32 %v3318, %v3319
        %v3321 = vsel %vm1249, %v3275, 0.0
        %v3322 = vsel %vm1249, %v3276, 0.0
        %v3323 = vadd.f32 %v3321, %v3322
        %v3324 = vrot.slane %v3323, 4
        %v3325 = vadd.f32 %v3323, %v3324
        %v3326 = vrot.slane %v3325, 2
        %v3327 = vadd.f32 %v3325, %v3326
        %v3328 = vrot.slane %v3327, 1
        %v3329 = vadd.f32 %v3327, %v3328
        %v3330 = vsel %vm1249, %v3277, 0.0
        %v3331 = vsel %vm1249, %v3278, 0.0
        %v3332 = vadd.f32 %v3330, %v3331
        %v3333 = vrot.slane %v3332, 4
        %v3334 = vadd.f32 %v3332, %v3333
        %v3335 = vrot.slane %v3334, 2
        %v3336 = vadd.f32 %v3334, %v3335
        %v3337 = vrot.slane %v3336, 1
        %v3338 = vadd.f32 %v3336, %v3337
        %v3339 = vsel %vm1249, %v3279, 0.0
        %v3340 = vsel %vm1249, %v3280, 0.0
        %v3341 = vadd.f32 %v3339, %v3340
        %v3342 = vrot.slane %v3341, 4
        %v3343 = vadd.f32 %v3341, %v3342
        %v3344 = vrot.slane %v3343, 2
        %v3345 = vadd.f32 %v3343, %v3344
        %v3346 = vrot.slane %v3345, 1
        %v3347 = vadd.f32 %v3345, %v3346
        %v3348 = vsel %vm1249, %v3281, 0.0
        %v3349 = vsel %vm1249, %v3282, 0.0
        %v3350 = vadd.f32 %v3348, %v3349
        %v3351 = vrot.slane %v3350, 4
        %v3352 = vadd.f32 %v3350, %v3351
        %v3353 = vrot.slane %v3352, 2
        %v3354 = vadd.f32 %v3352, %v3353
        %v3355 = vrot.slane %v3354, 1
        %v3356 = vadd.f32 %v3354, %v3355
        %v3357 = vsel %vm1249, %v3283, 0.0
        %v3358 = vsel %vm1249, %v3284, 0.0
        %v3359 = vadd.f32 %v3357, %v3358
        %v3360 = vrot.slane %v3359, 4
        %v3361 = vadd.f32 %v3359, %v3360
        %v3362 = vrot.slane %v3361, 2
        %v3363 = vadd.f32 %v3361, %v3362
        %v3364 = vrot.slane %v3363, 1
        %v3365 = vadd.f32 %v3363, %v3364
        %v3366 = vsel %vm1249, %v3285, 0.0
        %v3367 = vsel %vm1249, %v3286, 0.0
        %v3368 = vadd.f32 %v3366, %v3367
        %v3369 = vrot.slane %v3368, 4
        %v3370 = vadd.f32 %v3368, %v3369
        %v3371 = vrot.slane %v3370, 2
        %v3372 = vadd.f32 %v3370, %v3371
        %v3373 = vrot.slane %v3372, 1
        %v3374 = vadd.f32 %v3372, %v3373
        %v3375 = vsel %vm1249, %v3287, 0.0
        %v3376 = vsel %vm1249, %v3288, 0.0
        %v3377 = vadd.f32 %v3375, %v3376
        %v3378 = vrot.slane %v3377, 4
        %v3379 = vadd.f32 %v3377, %v3378
        %v3380 = vrot.slane %v3379, 2
        %v3381 = vadd.f32 %v3379, %v3380
        %v3382 = vrot.slane %v3381, 1
        %v3383 = vadd.f32 %v3381, %v3382
        %v3384 = vsel %vm1249, %v3289, 0.0
        %v3385 = vsel %vm1249, %v3290, 0.0
        %v3386 = vadd.f32 %v3384, %v3385
        %v3387 = vrot.slane %v3386, 4
        %v3388 = vadd.f32 %v3386, %v3387
        %v3389 = vrot.slane %v3388, 2
        %v3390 = vadd.f32 %v3388, %v3389
        %v3391 = vrot.slane %v3390, 1
        %v3392 = vadd.f32 %v3390, %v3391
        %v3393 = vsel %vm1249, %v3291, 0.0
        %v3394 = vsel %vm1249, %v3292, 0.0
        %v3395 = vadd.f32 %v3393, %v3394
        %v3396 = vrot.slane %v3395, 4
        %v3397 = vadd.f32 %v3395, %v3396
        %v3398 = vrot.slane %v3397, 2
        %v3399 = vadd.f32 %v3397, %v3398
        %v3400 = vrot.slane %v3399, 1
        %v3401 = vadd.f32 %v3399, %v3400
        %v3402 = vsel %vm1249, %v3293, 0.0
        %v3403 = vsel %vm1249, %v3294, 0.0
        %v3404 = vadd.f32 %v3402, %v3403
        %v3405 = vrot.slane %v3404, 4
        %v3406 = vadd.f32 %v3404, %v3405
        %v3407 = vrot.slane %v3406, 2
        %v3408 = vadd.f32 %v3406, %v3407
        %v3409 = vrot.slane %v3408, 1
        %v3410 = vadd.f32 %v3408, %v3409
        %v3411 = vsel %vm1249, %v3295, 0.0
        %v3412 = vsel %vm1249, %v3296, 0.0
        %v3413 = vadd.f32 %v3411, %v3412
        %v3414 = vrot.slane %v3413, 4
        %v3415 = vadd.f32 %v3413, %v3414
        %v3416 = vrot.slane %v3415, 2
        %v3417 = vadd.f32 %v3415, %v3416
        %v3418 = vrot.slane %v3417, 1
        %v3419 = vadd.f32 %v3417, %v3418
        %v3420 = vsel %vm1249, %v3297, 0.0
        %v3421 = vsel %vm1249, %v3298, 0.0
        %v3422 = vadd.f32 %v3420, %v3421
        %v3423 = vrot.slane %v3422, 4
        %v3424 = vadd.f32 %v3422, %v3423
        %v3425 = vrot.slane %v3424, 2
        %v3426 = vadd.f32 %v3424, %v3425
        %v3427 = vrot.slane %v3426, 1
        %v3428 = vadd.f32 %v3426, %v3427
        %v3429 = vsel %vm1249, %v3299, 0.0
        %v3430 = vsel %vm1249, %v3300, 0.0
        %v3431 = vadd.f32 %v3429, %v3430
        %v3432 = vrot.slane %v3431, 4
        %v3433 = vadd.f32 %v3431, %v3432
        %v3434 = vrot.slane %v3433, 2
        %v3435 = vadd.f32 %v3433, %v3434
        %v3436 = vrot.slane %v3435, 1
        %v3437 = vadd.f32 %v3435, %v3436
        %v3438 = vsel %vm1249, %v3301, 0.0
        %v3439 = vsel %vm1249, %v3302, 0.0
        %v3440 = vadd.f32 %v3438, %v3439
        %v3441 = vrot.slane %v3440, 4
        %v3442 = vadd.f32 %v3440, %v3441
        %v3443 = vrot.slane %v3442, 2
        %v3444 = vadd.f32 %v3442, %v3443
        %v3445 = vrot.slane %v3444, 1
        %v3446 = vadd.f32 %v3444, %v3445
        %s3447 = scalar_lea.vmem %s1079, 16
        %v3448 = vld [vmem:[%s3447] sm:$0xf]
        %v3449 = vld [vmem:[%s3447 + $0x4] sm:$0xf]
        %v3452 = vunpack.c.l.b16 %v3448
        %v3453 = vunpack.c.l.b16 %v3449
        %v3454 = vpack.c.b16 %v3453, %v3452
        %v3456 = vpack.i.b16 %v3454, %v3454
        %v3458 = vlaneseq
        %v3459 = vshrl.u32 %v3458, 7
        %v3460 = vsub.s32 0, %v3459
        %v3461 = vrot.slane %v3456, %v3460
        %3463 = vbcast.lane.c.b16.xlu0 %v3461, 256
        %v3464 = vpop.permute.xlu0 %3463
        %v3465 = vshrl.u32 %v3454, 16
        %v3466 = vpack.i.b16 %v3465, %v3465
        %v3468 = vlaneseq
        %v3469 = vshrl.u32 %v3468, 7
        %v3470 = vsub.s32 0, %v3469
        %v3471 = vrot.slane %v3466, %v3470
        %3473 = vbcast.lane.c.b16.xlu0 %v3471, 256
        %v3474 = vpop.permute.xlu0 %3473
        %v3475 = vlaneseq
        %v3476 = vshrl.u32 %v3475, 7
        %v3477 = vsub.s32 1, %v3476
        %v3478 = vrot.slane %v3456, %v3477
        %3480 = vbcast.lane.c.b16.xlu0 %v3478, 256
        %v3481 = vpop.permute.xlu0 %3480
        %v3482 = vlaneseq
        %v3483 = vshrl.u32 %v3482, 7
        %v3484 = vsub.s32 1, %v3483
        %v3485 = vrot.slane %v3466, %v3484
        %3487 = vbcast.lane.c.b16.xlu0 %v3485, 256
        %v3488 = vpop.permute.xlu0 %3487
        %v3489 = vlaneseq
        %v3490 = vshrl.u32 %v3489, 7
        %v3491 = vsub.s32 2, %v3490
        %v3492 = vrot.slane %v3456, %v3491
        %3494 = vbcast.lane.c.b16.xlu0 %v3492, 256
        %v3495 = vpop.permute.xlu0 %3494
        %v3496 = vlaneseq
        %v3497 = vshrl.u32 %v3496, 7
        %v3498 = vsub.s32 2, %v3497
        %v3499 = vrot.slane %v3466, %v3498
        %3501 = vbcast.lane.c.b16.xlu0 %v3499, 256
        %v3502 = vpop.permute.xlu0 %3501
        %v3503 = vlaneseq
        %v3504 = vshrl.u32 %v3503, 7
        %v3505 = vsub.s32 3, %v3504
        %v3506 = vrot.slane %v3456, %v3505
        %3508 = vbcast.lane.c.b16.xlu0 %v3506, 256
        %v3509 = vpop.permute.xlu0 %3508
        %v3510 = vlaneseq
        %v3511 = vshrl.u32 %v3510, 7
        %v3512 = vsub.s32 3, %v3511
        %v3513 = vrot.slane %v3466, %v3512
        %3515 = vbcast.lane.c.b16.xlu0 %v3513, 256
        %v3516 = vpop.permute.xlu0 %3515
        %v3517 = vlaneseq
        %v3518 = vshrl.u32 %v3517, 7
        %v3519 = vsub.s32 4, %v3518
        %v3520 = vrot.slane %v3456, %v3519
        %3522 = vbcast.lane.c.b16.xlu0 %v3520, 256
        %v3523 = vpop.permute.xlu0 %3522
        %v3524 = vlaneseq
        %v3525 = vshrl.u32 %v3524, 7
        %v3526 = vsub.s32 4, %v3525
        %v3527 = vrot.slane %v3466, %v3526
        %3529 = vbcast.lane.c.b16.xlu0 %v3527, 256
        %v3530 = vpop.permute.xlu0 %3529
        %v3531 = vlaneseq
        %v3532 = vshrl.u32 %v3531, 7
        %v3533 = vsub.s32 5, %v3532
        %v3534 = vrot.slane %v3456, %v3533
        %3536 = vbcast.lane.c.b16.xlu0 %v3534, 256
        %v3537 = vpop.permute.xlu0 %3536
        %v3538 = vlaneseq
        %v3539 = vshrl.u32 %v3538, 7
        %v3540 = vsub.s32 5, %v3539
        %v3541 = vrot.slane %v3466, %v3540
        %3543 = vbcast.lane.c.b16.xlu0 %v3541, 256
        %v3544 = vpop.permute.xlu0 %3543
        %v3545 = vlaneseq
        %v3546 = vshrl.u32 %v3545, 7
        %v3547 = vsub.s32 6, %v3546
        %v3548 = vrot.slane %v3456, %v3547
        %3550 = vbcast.lane.c.b16.xlu0 %v3548, 256
        %v3551 = vpop.permute.xlu0 %3550
        %v3552 = vlaneseq
        %v3553 = vshrl.u32 %v3552, 7
        %v3554 = vsub.s32 6, %v3553
        %v3555 = vrot.slane %v3466, %v3554
        %3557 = vbcast.lane.c.b16.xlu0 %v3555, 256
        %v3558 = vpop.permute.xlu0 %3557
        %v3559 = vlaneseq
        %v3560 = vshrl.u32 %v3559, 7
        %v3561 = vsub.s32 7, %v3560
        %v3562 = vrot.slane %v3456, %v3561
        %3564 = vbcast.lane.c.b16.xlu0 %v3562, 256
        %v3565 = vpop.permute.xlu0 %3564
        %v3566 = vlaneseq
        %v3567 = vshrl.u32 %v3566, 7
        %v3568 = vsub.s32 7, %v3567
        %v3569 = vrot.slane %v3466, %v3568
        %3571 = vbcast.lane.c.b16.xlu0 %v3569, 256
        %v3572 = vpop.permute.xlu0 %3571
        %v3573 = vmul.bf16 %v2790, %v3464
        %v3574 = vmul.bf16 %v2791, %v3474
        %v3575 = vmul.bf16 %v2792, %v3481
        %v3576 = vmul.bf16 %v2793, %v3488
        %v3577 = vmul.bf16 %v2794, %v3495
        %v3578 = vmul.bf16 %v2795, %v3502
        %v3579 = vmul.bf16 %v2796, %v3509
        %v3580 = vmul.bf16 %v2797, %v3516
        %v3581 = vmul.bf16 %v2798, %v3523
        %v3582 = vmul.bf16 %v2799, %v3530
        %v3583 = vmul.bf16 %v2800, %v3537
        %v3584 = vmul.bf16 %v2801, %v3544
        %v3585 = vmul.bf16 %v2802, %v3551
        %v3586 = vmul.bf16 %v2803, %v3558
        %v3587 = vmul.bf16 %v2804, %v3565
        %v3588 = vmul.bf16 %v2805, %v3572
        %v3589 = vunpack.c.l.bf16 %v3573
        %v3590 = vunpack.c.h.bf16 %v3573
        %v3591 = vunpack.c.l.bf16 %v3574
        %v3592 = vunpack.c.h.bf16 %v3574
        %v3593 = vunpack.c.l.bf16 %v3575
        %v3594 = vunpack.c.h.bf16 %v3575
        %v3595 = vunpack.c.l.bf16 %v3576
        %v3596 = vunpack.c.h.bf16 %v3576
        %v3597 = vunpack.c.l.bf16 %v3577
        %v3598 = vunpack.c.h.bf16 %v3577
        %v3599 = vunpack.c.l.bf16 %v3578
        %v3600 = vunpack.c.h.bf16 %v3578
        %v3601 = vunpack.c.l.bf16 %v3579
        %v3602 = vunpack.c.h.bf16 %v3579
        %v3603 = vunpack.c.l.bf16 %v3580
        %v3604 = vunpack.c.h.bf16 %v3580
        %v3605 = vunpack.c.l.bf16 %v3581
        %v3606 = vunpack.c.h.bf16 %v3581
        %v3607 = vunpack.c.l.bf16 %v3582
        %v3608 = vunpack.c.h.bf16 %v3582
        %v3609 = vunpack.c.l.bf16 %v3583
        %v3610 = vunpack.c.h.bf16 %v3583
        %v3611 = vunpack.c.l.bf16 %v3584
        %v3612 = vunpack.c.h.bf16 %v3584
        %v3613 = vunpack.c.l.bf16 %v3585
        %v3614 = vunpack.c.h.bf16 %v3585
        %v3615 = vunpack.c.l.bf16 %v3586
        %v3616 = vunpack.c.h.bf16 %v3586
        %v3617 = vunpack.c.l.bf16 %v3587
        %v3618 = vunpack.c.h.bf16 %v3587
        %v3619 = vunpack.c.l.bf16 %v3588
        %v3620 = vunpack.c.h.bf16 %v3588
        %v3621 = vsel %vm1249, %v3589, 0.0
        %v3622 = vsel %vm1249, %v3590, 0.0
        %v3623 = vadd.f32 %v3621, %v3622
        %v3624 = vrot.slane %v3623, 4
        %v3625 = vadd.f32 %v3623, %v3624
        %v3626 = vrot.slane %v3625, 2
        %v3627 = vadd.f32 %v3625, %v3626
        %v3628 = vrot.slane %v3627, 1
        %v3629 = vadd.f32 %v3627, %v3628
        %v3630 = vsel %vm1249, %v3591, 0.0
        %v3631 = vsel %vm1249, %v3592, 0.0
        %v3632 = vadd.f32 %v3630, %v3631
        %v3633 = vrot.slane %v3632, 4
        %v3634 = vadd.f32 %v3632, %v3633
        %v3635 = vrot.slane %v3634, 2
        %v3636 = vadd.f32 %v3634, %v3635
        %v3637 = vrot.slane %v3636, 1
        %v3638 = vadd.f32 %v3636, %v3637
        %v3639 = vsel %vm1249, %v3593, 0.0
        %v3640 = vsel %vm1249, %v3594, 0.0
        %v3641 = vadd.f32 %v3639, %v3640
        %v3642 = vrot.slane %v3641, 4
        %v3643 = vadd.f32 %v3641, %v3642
        %v3644 = vrot.slane %v3643, 2
        %v3645 = vadd.f32 %v3643, %v3644
        %v3646 = vrot.slane %v3645, 1
        %v3647 = vadd.f32 %v3645, %v3646
        %v3648 = vsel %vm1249, %v3595, 0.0
        %v3649 = vsel %vm1249, %v3596, 0.0
        %v3650 = vadd.f32 %v3648, %v3649
        %v3651 = vrot.slane %v3650, 4
        %v3652 = vadd.f32 %v3650, %v3651
        %v3653 = vrot.slane %v3652, 2
        %v3654 = vadd.f32 %v3652, %v3653
        %v3655 = vrot.slane %v3654, 1
        %v3656 = vadd.f32 %v3654, %v3655
        %v3657 = vsel %vm1249, %v3597, 0.0
        %v3658 = vsel %vm1249, %v3598, 0.0
        %v3659 = vadd.f32 %v3657, %v3658
        %v3660 = vrot.slane %v3659, 4
        %v3661 = vadd.f32 %v3659, %v3660
        %v3662 = vrot.slane %v3661, 2
        %v3663 = vadd.f32 %v3661, %v3662
        %v3664 = vrot.slane %v3663, 1
        %v3665 = vadd.f32 %v3663, %v3664
        %v3666 = vsel %vm1249, %v3599, 0.0
        %v3667 = vsel %vm1249, %v3600, 0.0
        %v3668 = vadd.f32 %v3666, %v3667
        %v3669 = vrot.slane %v3668, 4
        %v3670 = vadd.f32 %v3668, %v3669
        %v3671 = vrot.slane %v3670, 2
        %v3672 = vadd.f32 %v3670, %v3671
        %v3673 = vrot.slane %v3672, 1
        %v3674 = vadd.f32 %v3672, %v3673
        %v3675 = vsel %vm1249, %v3601, 0.0
        %v3676 = vsel %vm1249, %v3602, 0.0
        %v3677 = vadd.f32 %v3675, %v3676
        %v3678 = vrot.slane %v3677, 4
        %v3679 = vadd.f32 %v3677, %v3678
        %v3680 = vrot.slane %v3679, 2
        %v3681 = vadd.f32 %v3679, %v3680
        %v3682 = vrot.slane %v3681, 1
        %v3683 = vadd.f32 %v3681, %v3682
        %v3684 = vsel %vm1249, %v3603, 0.0
        %v3685 = vsel %vm1249, %v3604, 0.0
        %v3686 = vadd.f32 %v3684, %v3685
        %v3687 = vrot.slane %v3686, 4
        %v3688 = vadd.f32 %v3686, %v3687
        %v3689 = vrot.slane %v3688, 2
        %v3690 = vadd.f32 %v3688, %v3689
        %v3691 = vrot.slane %v3690, 1
        %v3692 = vadd.f32 %v3690, %v3691
        %v3693 = vsel %vm1249, %v3605, 0.0
        %v3694 = vsel %vm1249, %v3606, 0.0
        %v3695 = vadd.f32 %v3693, %v3694
        %v3696 = vrot.slane %v3695, 4
        %v3697 = vadd.f32 %v3695, %v3696
        %v3698 = vrot.slane %v3697, 2
        %v3699 = vadd.f32 %v3697, %v3698
        %v3700 = vrot.slane %v3699, 1
        %v3701 = vadd.f32 %v3699, %v3700
        %v3702 = vsel %vm1249, %v3607, 0.0
        %v3703 = vsel %vm1249, %v3608, 0.0
        %v3704 = vadd.f32 %v3702, %v3703
        %v3705 = vrot.slane %v3704, 4
        %v3706 = vadd.f32 %v3704, %v3705
        %v3707 = vrot.slane %v3706, 2
        %v3708 = vadd.f32 %v3706, %v3707
        %v3709 = vrot.slane %v3708, 1
        %v3710 = vadd.f32 %v3708, %v3709
        %v3711 = vsel %vm1249, %v3609, 0.0
        %v3712 = vsel %vm1249, %v3610, 0.0
        %v3713 = vadd.f32 %v3711, %v3712
        %v3714 = vrot.slane %v3713, 4
        %v3715 = vadd.f32 %v3713, %v3714
        %v3716 = vrot.slane %v3715, 2
        %v3717 = vadd.f32 %v3715, %v3716
        %v3718 = vrot.slane %v3717, 1
        %v3719 = vadd.f32 %v3717, %v3718
        %v3720 = vsel %vm1249, %v3611, 0.0
        %v3721 = vsel %vm1249, %v3612, 0.0
        %v3722 = vadd.f32 %v3720, %v3721
        %v3723 = vrot.slane %v3722, 4
        %v3724 = vadd.f32 %v3722, %v3723
        %v3725 = vrot.slane %v3724, 2
        %v3726 = vadd.f32 %v3724, %v3725
        %v3727 = vrot.slane %v3726, 1
        %v3728 = vadd.f32 %v3726, %v3727
        %v3729 = vsel %vm1249, %v3613, 0.0
        %v3730 = vsel %vm1249, %v3614, 0.0
        %v3731 = vadd.f32 %v3729, %v3730
        %v3732 = vrot.slane %v3731, 4
        %v3733 = vadd.f32 %v3731, %v3732
        %v3734 = vrot.slane %v3733, 2
        %v3735 = vadd.f32 %v3733, %v3734
        %v3736 = vrot.slane %v3735, 1
        %v3737 = vadd.f32 %v3735, %v3736
        %v3738 = vsel %vm1249, %v3615, 0.0
        %v3739 = vsel %vm1249, %v3616, 0.0
        %v3740 = vadd.f32 %v3738, %v3739
        %v3741 = vrot.slane %v3740, 4
        %v3742 = vadd.f32 %v3740, %v3741
        %v3743 = vrot.slane %v3742, 2
        %v3744 = vadd.f32 %v3742, %v3743
        %v3745 = vrot.slane %v3744, 1
        %v3746 = vadd.f32 %v3744, %v3745
        %v3747 = vsel %vm1249, %v3617, 0.0
        %v3748 = vsel %vm1249, %v3618, 0.0
        %v3749 = vadd.f32 %v3747, %v3748
        %v3750 = vrot.slane %v3749, 4
        %v3751 = vadd.f32 %v3749, %v3750
        %v3752 = vrot.slane %v3751, 2
        %v3753 = vadd.f32 %v3751, %v3752
        %v3754 = vrot.slane %v3753, 1
        %v3755 = vadd.f32 %v3753, %v3754
        %v3756 = vsel %vm1249, %v3619, 0.0
        %v3757 = vsel %vm1249, %v3620, 0.0
        %v3758 = vadd.f32 %v3756, %v3757
        %v3759 = vrot.slane %v3758, 4
        %v3760 = vadd.f32 %v3758, %v3759
        %v3761 = vrot.slane %v3760, 2
        %v3762 = vadd.f32 %v3760, %v3761
        %v3763 = vrot.slane %v3762, 1
        %v3764 = vadd.f32 %v3762, %v3763
        %v3813 = vrot.slane %v3002, 7
        %v3814 = vsel %vm2515, %v3813, %v2993
        %v3815 = vrot.slane %v3011, 6
        %v3816 = vsel %vm2517, %v3815, %v3814
        %v3817 = vrot.slane %v3020, 5
        %v3818 = vsel %vm2519, %v3817, %v3816
        %v3819 = vrot.slane %v3029, 4
        %v3820 = vsel %vm2521, %v3819, %v3818
        %v3821 = vrot.slane %v3038, 3
        %v3822 = vsel %vm2523, %v3821, %v3820
        %v3823 = vrot.slane %v3047, 2
        %v3824 = vsel %vm2525, %v3823, %v3822
        %v3825 = vrot.slane %v3056, 1
        %v3826 = vsel %vm2527, %v3825, %v3824
        %v3827 = vrot.slane %v3074, 7
        %v3828 = vsel %vm2515, %v3827, %v3065
        %v3829 = vrot.slane %v3083, 6
        %v3830 = vsel %vm2517, %v3829, %v3828
        %v3831 = vrot.slane %v3092, 5
        %v3832 = vsel %vm2519, %v3831, %v3830
        %v3833 = vrot.slane %v3101, 4
        %v3834 = vsel %vm2521, %v3833, %v3832
        %v3835 = vrot.slane %v3110, 3
        %v3836 = vsel %vm2523, %v3835, %v3834
        %v3837 = vrot.slane %v3119, 2
        %v3838 = vsel %vm2525, %v3837, %v3836
        %v3839 = vrot.slane %v3128, 1
        %v3840 = vsel %vm2527, %v3839, %v3838
        %v3841 = vrot.slane %v3320, 7
        %v3842 = vsel %vm2515, %v3841, %v3311
        %v3843 = vrot.slane %v3329, 6
        %v3844 = vsel %vm2517, %v3843, %v3842
        %v3845 = vrot.slane %v3338, 5
        %v3846 = vsel %vm2519, %v3845, %v3844
        %v3847 = vrot.slane %v3347, 4
        %v3848 = vsel %vm2521, %v3847, %v3846
        %v3849 = vrot.slane %v3356, 3
        %v3850 = vsel %vm2523, %v3849, %v3848
        %v3851 = vrot.slane %v3365, 2
        %v3852 = vsel %vm2525, %v3851, %v3850
        %v3853 = vrot.slane %v3374, 1
        %v3854 = vsel %vm2527, %v3853, %v3852
        %v3855 = vrot.slane %v3392, 7
        %v3856 = vsel %vm2515, %v3855, %v3383
        %v3857 = vrot.slane %v3401, 6
        %v3858 = vsel %vm2517, %v3857, %v3856
        %v3859 = vrot.slane %v3410, 5
        %v3860 = vsel %vm2519, %v3859, %v3858
        %v3861 = vrot.slane %v3419, 4
        %v3862 = vsel %vm2521, %v3861, %v3860
        %v3863 = vrot.slane %v3428, 3
        %v3864 = vsel %vm2523, %v3863, %v3862
        %v3865 = vrot.slane %v3437, 2
        %v3866 = vsel %vm2525, %v3865, %v3864
        %v3867 = vrot.slane %v3446, 1
        %v3868 = vsel %vm2527, %v3867, %v3866
        %v3869 = vrot.slane %v3638, 7
        %v3870 = vsel %vm2515, %v3869, %v3629
        %v3871 = vrot.slane %v3647, 6
        %v3872 = vsel %vm2517, %v3871, %v3870
        %v3873 = vrot.slane %v3656, 5
        %v3874 = vsel %vm2519, %v3873, %v3872
        %v3875 = vrot.slane %v3665, 4
        %v3876 = vsel %vm2521, %v3875, %v3874
        %v3877 = vrot.slane %v3674, 3
        %v3878 = vsel %vm2523, %v3877, %v3876
        %v3879 = vrot.slane %v3683, 2
        %v3880 = vsel %vm2525, %v3879, %v3878
        %v3881 = vrot.slane %v3692, 1
        %v3882 = vsel %vm2527, %v3881, %v3880
        %v3883 = vrot.slane %v3710, 7
        %v3884 = vsel %vm2515, %v3883, %v3701
        %v3885 = vrot.slane %v3719, 6
        %v3886 = vsel %vm2517, %v3885, %v3884
        %v3887 = vrot.slane %v3728, 5
        %v3888 = vsel %vm2519, %v3887, %v3886
        %v3889 = vrot.slane %v3737, 4
        %v3890 = vsel %vm2521, %v3889, %v3888
        %v3891 = vrot.slane %v3746, 3
        %v3892 = vsel %vm2523, %v3891, %v3890
        %v3893 = vrot.slane %v3755, 2
        %v3894 = vsel %vm2525, %v3893, %v3892
        %v3895 = vrot.slane %v3764, 1
        %v3896 = vsel %vm2527, %v3895, %v3894
        %v3903 = vadd.f32 %v2806, %v3826
        %v3904 = vadd.f32 %v2807, %v3840
        %v3905 = vadd.f32 %v2808, %v3854
        %v3906 = vadd.f32 %v2809, %v3868
        %v3907 = vadd.f32 %v2810, %v3882
        %v3908 = vadd.f32 %v2811, %v3896
        %3909 = vst.msk [vmem:[#allocation3] sm:$0xff] %vm1249, %v3903
        %3910 = vst.msk [vmem:[#allocation3 + $0x8] sm:$0xff] %vm1249, %v3904
        %3911 = vst.msk [vmem:[#allocation3 + $0x10] sm:$0xff] %vm1249, %v3905
        %3912 = vst.msk [vmem:[#allocation3 + $0x18] sm:$0xff] %vm1249, %v3906
        %3913 = vst.msk [vmem:[#allocation3 + $0x20] sm:$0xff] %vm1249, %v3907
        %3914 = vst.msk [vmem:[#allocation3 + $0x28] sm:$0xff] %vm1249, %v3908
        // Predicated region
        $region141: #{tpu_custom_call.1} parent=103 // pred_check
          %p3915 = pneg %p1085
        $region142: #{tpu_custom_call.1} parent=103 // pred_check_branch
          %3917 = sbr.rel (%p3915) target = $region144
        $region143: #{tpu_custom_call.1} parent=103 // pred_region
          %v3918 = vld [vmem:[#allocation2] sm:$0xff]
          %v3919 = vld [vmem:[#allocation2 + $0x8] sm:$0xff]
          %v3920 = vld [vmem:[#allocation3] sm:$0xff]
          %v3921 = vld [vmem:[#allocation3 + $0x8] sm:$0xff]
          %s3922 = scalar_lea.vmem [#allocation3], 16
          %v3923 = vld [vmem:[%s3922] sm:$0xff]
          %v3924 = vld [vmem:[%s3922 + $0x8] sm:$0xff]
          %s3925 = scalar_lea.vmem [#allocation3], 32
          %v3926 = vld [vmem:[%s3925] sm:$0xff]
          %v3927 = vld [vmem:[%s3925 + $0x8] sm:$0xff]
          %v3928 = vmul.f32 %v3920, %v3920
          %v3929 = vmul.f32 %v3921, %v3921
          %v3930 = vmul.f32 %v3923, %v3923
          %v3931 = vmul.f32 %v3924, %v3924
          %v3932 = vadd.f32 %v3928, %v3930
          %v3933 = vadd.f32 %v3929, %v3931
          %v3934 = vmul.f32 %v3926, %v3926
          %v3935 = vmul.f32 %v3927, %v3927
          %v3936 = vadd.f32 %v3932, %v3934
          %v3937 = vadd.f32 %v3933, %v3935
          %v3938 = vrsqrt.pop %v3936
          %v3939 = vmul.f32 %v3936, %v3938
          %vm3940 = vcmp.eq.f32.partialorder %v3936, inf
          %v3941 = vsel %vm3940, %v3936, %v3939
          %vm3942 = vcmp.eq.f32.partialorder %v3936, 0.0
          %v3943 = vand.u32 %v3936, 2147483648
          %v3944 = vsel %vm3942, %v3943, %v3941
          %v3945 = vrsqrt.pop %v3937
          %v3946 = vmul.f32 %v3937, %v3945
          %vm3947 = vcmp.eq.f32.partialorder %v3937, inf
          %v3948 = vsel %vm3947, %v3937, %v3946
          %vm3949 = vcmp.eq.f32.partialorder %v3937, 0.0
          %v3950 = vand.u32 %v3937, 2147483648
          %v3951 = vsel %vm3949, %v3950, %v3948
          %v3952 = vmax.f32 %v3944, 1e-12
          %v3953 = vmax.f32 %v3951, 1e-12
          %v3954 = vsel %vm1249, %v3952, -inf
          %3955 = vmax.xlane.f32.xlu0 %v3954
          %v3956 = vpop.xlane.xlu0 %3955
          %v3957 = vsel %vm1249, %v3953, -inf
          %3958 = vmax.xlane.f32.xlu0 %v3957
          %v3959 = vpop.xlane.xlu0 %3958
          %v3960 = vsel %vm1249, %v3952, inf
          %3961 = vmin.xlane.f32.xlu0 %v3960
          %v3962 = vpop.xlane.xlu0 %3961
          %v3963 = vsel %vm1249, %v3953, inf
          %3964 = vmin.xlane.f32.xlu0 %v3963
          %v3965 = vpop.xlane.xlu0 %3964
          %v3966 = vsub.f32 %v3956, %v3962
          %v3967 = vsub.f32 %v3959, %v3965
          %vm3968 = vcmp.eq.f32.partialorder %v3966, 0.0
          %vm3969 = vcmp.eq.f32.partialorder %v3967, 0.0
          %v3970 = vsel %vm3968, 1.0, %v3966
          %v3971 = vsel %vm3969, 1.0, %v3967
          %v3972 = vsub.f32 %v3952, %v3962
          %v3973 = vsub.f32 %v3953, %v3965
          %v3974 = vrcp.pop %v3970
          %v3975 = vmul.f32 %v3972, %v3974
          %v3976 = vrcp.pop %v3971
          %v3977 = vmul.f32 %v3973, %v3976
          %v3978 = vmax.f32 %v3975, 0.0
          %v3979 = vmax.f32 %v3977, 0.0
          %v3980 = vrcp.pop %v3952
          %v3981 = vmul.f32 %v3978, %v3980
          %v3982 = vrcp.pop %v3953
          %v3983 = vmul.f32 %v3979, %v3982
          %v3984 = vmul.f32 %v3920, %v3981
          %v3985 = vmul.f32 %v3921, %v3983
          %v3986 = vmul.f32 %v3923, %v3981
          %v3987 = vmul.f32 %v3924, %v3983
          %v3988 = vmul.f32 %v3926, %v3981
          %v3989 = vmul.f32 %v3927, %v3983
          %v3990 = vld [vmem:[%s12] sm:$0xff]
          %v3991 = vld [vmem:[%s12 + $0x8] sm:$0xff]
          %v3992 = vld [vmem:[%s12 + $0x10] sm:$0xff]
          %v3993 = vld [vmem:[%s12 + $0x18] sm:$0xff]
          %v3994 = vld [vmem:[%s12 + $0x20] sm:$0xff]
          %v3995 = vld [vmem:[%s12 + $0x28] sm:$0xff]
          %v3996 = vld [vmem:[%s12 + $0x30] sm:$0xff]
          %v3997 = vld [vmem:[%s12 + $0x38] sm:$0xff]
          %v3999 = vsel %vm1249, %v3984, 0
          %v4002 = vsel %vm1249, %v3985, 0
          %v4005 = vsel %vm1249, %v3986, 0
          %v4008 = vsel %vm1249, %v3987, 0
          %v4011 = vsel %vm1249, %v3988, 0
          %v4014 = vsel %vm1249, %v3989, 0
          %4016 = vmatprep.subr.mxu0 0.0
          %4017 = vmatpush1.msra.mxu0 0.0
          %4018 = vmatprep.subr.mxu0 0.0
          %4019 = vmatpush1.msra.mxu0 0.0
          %4020 = vmatprep.subr.mxu0 0.0
          %4021 = vmatpush1.msra.mxu0 0.0
          %4022 = vmatprep.subr.mxu0 0.0
          %4023 = vmatpush1.msra.mxu0 0.0
          %4024 = vmatprep.subr.mxu0 0.0
          %4025 = vmatpush1.msra.mxu0 0.0
          %4026 = vmatprep.subr.mxu0 0.0
          %4027 = vmatpush1.msra.mxu0 0.0
          %4028 = vmatprep.subr.mxu0 0.0
          %4029 = vmatpush1.msra.mxu0 0.0
          %4030 = vmatprep.subr.mxu0 0.0
          %4031 = vmatpush1.msra.mxu0 0.0
          %4032 = vmatprep.subr.mxu0 0.0
          %4033 = vmatpush1.msra.mxu0 %v3997
          %4034 = vmatprep.subr.mxu0 0.0
          %4035 = vmatpush1.msra.mxu0 %v3996
          %4036 = vmatprep.subr.mxu0 0.0
          %4037 = vmatpush1.msra.mxu0 %v3995
          %4038 = vmatprep.subr.mxu0 0.0
          %4039 = vmatpush1.msra.mxu0 %v3994
          %4040 = vmatprep.subr.mxu0 0.0
          %4041 = vmatpush1.msra.mxu0 %v3993
          %4042 = vmatprep.subr.mxu0 0.0
          %4043 = vmatpush1.msra.mxu0 %v3992
          %4044 = vmatprep.subr.mxu0 0.0
          %4045 = vmatpush1.msra.mxu0 %v3991
          %4046 = vmatprep.subr.mxu0 0.0
          %4047 = vmatpush1.msra.mxu0 %v3990
          %4048 = vmatprep.subr.mxu0 0.0
          %4049 = vmatpush2.msra.mxu0 0.0
          %4050 = vmatprep.subr.mxu0 0.0
          %4051 = vmatpush2.msra.mxu0 0.0
          %4052 = vmatprep.subr.mxu0 0.0
          %4053 = vmatpush2.msra.mxu0 0.0
          %4054 = vmatprep.subr.mxu0 0.0
          %4055 = vmatpush2.msra.mxu0 0.0
          %4056 = vmatprep.subr.mxu0 0.0
          %4057 = vmatpush2.msra.mxu0 0.0
          %4058 = vmatprep.subr.mxu0 0.0
          %4059 = vmatpush2.msra.mxu0 0.0
          %4060 = vmatprep.subr.mxu0 0.0
          %4061 = vmatpush2.msra.mxu0 0.0
          %4062 = vmatprep.subr.mxu0 0.0
          %4063 = vmatpush2.msra.mxu0 0.0
          %4064 = vmatprep.subr.mxu0 0.0
          %4065 = vmatpush2.msra.mxu0 0.0
          %4066 = vmatprep.subr.mxu0 0.0
          %4067 = vmatpush2.msra.mxu0 0.0
          %4068 = vmatprep.subr.mxu0 0.0
          %4069 = vmatpush2.msra.mxu0 0.0
          %4070 = vmatprep.subr.mxu0 0.0
          %4071 = vmatpush2.msra.mxu0 0.0
          %4072 = vmatprep.subr.mxu0 0.0
          %4073 = vmatpush2.msra.mxu0 0.0
          %4074 = vmatprep.subr.mxu0 0.0
          %4075 = vmatpush2.msra.mxu0 0.0
          %4076 = vmatprep.subr.mxu0 0.0
          %4077 = vmatpush2.msra.mxu0 0.0
          %4078 = vmatprep.subr.mxu0 0.0
          %4079 = vmatpush2.msra.mxu0 0.0
          %4080 = vmatprep.mubr.f32.mxu0 0.0
          %4081 = vmatmul.mubr.f32.gmra.mxu0 %v3999
          %v4082 = vpop.f32.mrf.mxu0
          %v4083 = vadd.f32 0.0, %v4082
          %v4084 = vpop.f32.mrf.mxu0
          %4085 = vmatprep.mubr.f32.mxu0 0.0
          %4086 = vmatmul.mubr.f32.gmra.mxu0 %v4002
          %v4087 = vpop.f32.mrf.mxu0
          %v4088 = vadd.f32 0.0, %v4087
          %v4089 = vpop.f32.mrf.mxu0
          %4090 = vmatprep.mubr.f32.mxu0 0.0
          %4091 = vmatmul.mubr.f32.gmra.mxu0 %v4005
          %v4092 = vpop.f32.mrf.mxu0
          %v4093 = vadd.f32 0.0, %v4092
          %v4094 = vpop.f32.mrf.mxu0
          %4095 = vmatprep.mubr.f32.mxu0 0.0
          %4096 = vmatmul.mubr.f32.gmra.mxu0 %v4008
          %v4097 = vpop.f32.mrf.mxu0
          %v4098 = vadd.f32 0.0, %v4097
          %v4099 = vpop.f32.mrf.mxu0
          %4100 = vmatprep.mubr.f32.mxu0 0.0
          %4101 = vmatmul.mubr.f32.gmra.mxu0 %v4011
          %v4102 = vpop.f32.mrf.mxu0
          %v4103 = vadd.f32 0.0, %v4102
          %v4104 = vpop.f32.mrf.mxu0
          %4105 = vmatprep.mubr.f32.mxu0 0.0
          %4106 = vmatmul.mubr.f32.gmra.mxu0 %v4014
          %v4107 = vpop.f32.mrf.mxu0
          %v4108 = vadd.f32 0.0, %v4107
          %v4109 = vpop.f32.mrf.mxu0
          %4110 = vdwg.mxu0
          %v4111 = vpack.c.bf16 %v4088, %v4083
          %v4112 = vpack.c.bf16 %v4098, %v4093
          %v4113 = vpack.c.bf16 %v4108, %v4103
          %v4117 = vunpack.c.l.b16 %v4111
          %v4118 = vunpack.c.h.b16 %v4111
          %v4119 = vunpack.c.l.b16 %v4112
          %v4120 = vunpack.c.h.b16 %v4112
          %v4121 = vunpack.c.l.b16 %v4113
          %v4122 = vunpack.c.h.b16 %v4113
          %v4123 = vpack.c.b16 %v4117, %v4117
          %v4124 = vpack.c.b16 %v4118, %v4118
          %v4125 = vpack.c.b16 %v4119, %v4119
          %v4126 = vpack.c.b16 %v4120, %v4120
          %v4127 = vpack.c.b16 %v4121, %v4121
          %v4128 = vpack.c.b16 %v4122, %v4122
          %vm4135 = vcmask 519168
          %4136 = vst.msk [vmem:[%s1053] sm:$0xf] %vm4135, %v4123
          %4137 = vst.msk [vmem:[%s1053 + $0x4] sm:$0xf] %vm4135, %v4124
          %4138 = vst.msk [vmem:[%s1053 + $0x8] sm:$0xf] %vm4135, %v4125
          %4139 = vst.msk [vmem:[%s1053 + $0xc] sm:$0xf] %vm4135, %v4126
          %4140 = vst.msk [vmem:[%s1053 + $0x10] sm:$0xf] %vm4135, %v4127
          %4141 = vst.msk [vmem:[%s1053 + $0x14] sm:$0xf] %vm4135, %v4128
          %4142 = vrot.lane.b32.xlu0 %v4123, 64
          %v4143 = vpop.permute.xlu0 %4142
          %4144 = vrot.lane.b32.xlu0 %v4124, 64
          %v4145 = vpop.permute.xlu0 %4144
          %4146 = vrot.lane.b32.xlu0 %v4125, 64
          %v4147 = vpop.permute.xlu0 %4146
          %4148 = vrot.lane.b32.xlu0 %v4126, 64
          %v4149 = vpop.permute.xlu0 %4148
          %4150 = vrot.lane.b32.xlu0 %v4127, 64
          %v4151 = vpop.permute.xlu0 %4150
          %4152 = vrot.lane.b32.xlu0 %v4128, 64
          %v4153 = vpop.permute.xlu0 %4152
          %4160 = vst.msk [vmem:[%s1060] sm:$0xf] %vm4135, %v4143
          %4161 = vst.msk [vmem:[%s1060 + $0x4] sm:$0xf] %vm4135, %v4145
          %4162 = vst.msk [vmem:[%s1060 + $0x8] sm:$0xf] %vm4135, %v4147
          %4163 = vst.msk [vmem:[%s1060 + $0xc] sm:$0xf] %vm4135, %v4149
          %4164 = vst.msk [vmem:[%s1060 + $0x10] sm:$0xf] %vm4135, %v4151
          %4165 = vst.msk [vmem:[%s1060 + $0x14] sm:$0xf] %vm4135, %v4153
          %v4166 = vld [vmem:[%s925] sm:$0xff]
          %v4167 = vld [vmem:[%s925 + $0x8] sm:$0xff]
          %v4168 = vadd.f32 %v3918, %v4166
          %v4169 = vadd.f32 %v3919, %v4167
          %v4170 = vsel %vm1249, %v4168, 0.0
          %4171 = vadd.xlane.f32.xlu0 %v4170
          %v4172 = vpop.xlane.xlu0 %4171
          %v4173 = vsel %vm1249, %v4169, 0.0
          %4174 = vadd.xlane.f32.xlu0 %v4173
          %v4175 = vpop.xlane.xlu0 %4174
          %v4176 = vrcp.pop 64.0
          %v4177 = vmul.f32 %v4172, %v4176
          %v4178 = vmul.f32 %v4175, %v4176
          %v4179 = vsub.f32 %v4168, %v4177
          %v4180 = vsub.f32 %v4169, %v4178
          %v4181 = vmul.f32 %v4179, %v4179
          %v4182 = vmul.f32 %v4180, %v4180
          %v4183 = vsel %vm1249, %v4181, 0.0
          %4184 = vadd.xlane.f32.xlu0 %v4183
          %v4185 = vpop.xlane.xlu0 %4184
          %v4186 = vsel %vm1249, %v4182, 0.0
          %4187 = vadd.xlane.f32.xlu0 %v4186
          %v4188 = vpop.xlane.xlu0 %4187
          %v4189 = vmul.f32 %v4185, %v4176
          %v4190 = vmul.f32 %v4188, %v4176
          %v4191 = vadd.f32 %v4189, 1e-05
          %v4192 = vadd.f32 %v4190, 1e-05
          %v4193 = vrsqrt.pop %v4191
          %v4194 = vrsqrt.pop %v4192
          %v4195 = vmul.f32 %v4179, %v4193
          %v4196 = vmul.f32 %v4180, %v4194
          %v4197 = vld [vmem:[%s17] sm:$0x1]
          %v4199 = vlaneseq
          %v4200 = vshrl.u32 %v4199, 7
          %v4201 = vsub.s32 0, %v4200
          %v4202 = vrot.slane %v4197, %v4201
          %v4204 = vmul.f32 %v4195, %v4202
          %v4205 = vmul.f32 %v4196, %v4202
          %v4206 = vld [vmem:[%s18] sm:$0x1]
          %v4208 = vlaneseq
          %v4209 = vshrl.u32 %v4208, 7
          %v4210 = vsub.s32 0, %v4209
          %v4211 = vrot.slane %v4206, %v4210
          %v4213 = vadd.f32 %v4204, %v4211
          %v4214 = vadd.f32 %v4205, %v4211
          %v4215 = vld [vmem:[%s13] sm:$0xff]
          %v4216 = vld [vmem:[%s13 + $0x8] sm:$0xff]
          %v4217 = vld [vmem:[%s13 + $0x10] sm:$0xff]
          %v4218 = vld [vmem:[%s13 + $0x18] sm:$0xff]
          %v4219 = vld [vmem:[%s13 + $0x20] sm:$0xff]
          %v4220 = vld [vmem:[%s13 + $0x28] sm:$0xff]
          %v4221 = vld [vmem:[%s13 + $0x30] sm:$0xff]
          %v4222 = vld [vmem:[%s13 + $0x38] sm:$0xff]
          %v4223 = vld [vmem:[%s14] sm:$0x1]
          %v4225 = vlaneseq
          %v4226 = vshrl.u32 %v4225, 7
          %v4227 = vsub.s32 0, %v4226
          %v4228 = vrot.slane %v4223, %v4227
          %v4231 = vsel %vm1249, %v4213, 0
          %v4234 = vsel %vm1249, %v4214, 0
          %4236 = vmatprep.subr.mxu0 0.0
          %4237 = vmatpush1.msra.mxu0 0.0
          %4238 = vmatprep.subr.mxu0 0.0
          %4239 = vmatpush1.msra.mxu0 0.0
          %4240 = vmatprep.subr.mxu0 0.0
          %4241 = vmatpush1.msra.mxu0 0.0
          %4242 = vmatprep.subr.mxu0 0.0
          %4243 = vmatpush1.msra.mxu0 0.0
          %4244 = vmatprep.subr.mxu0 0.0
          %4245 = vmatpush1.msra.mxu0 0.0
          %4246 = vmatprep.subr.mxu0 0.0
          %4247 = vmatpush1.msra.mxu0 0.0
          %4248 = vmatprep.subr.mxu0 0.0
          %4249 = vmatpush1.msra.mxu0 0.0
          %4250 = vmatprep.subr.mxu0 0.0
          %4251 = vmatpush1.msra.mxu0 0.0
          %4252 = vmatprep.subr.mxu0 0.0
          %4253 = vmatpush1.msra.mxu0 %v4222
          %4254 = vmatprep.subr.mxu0 0.0
          %4255 = vmatpush1.msra.mxu0 %v4221
          %4256 = vmatprep.subr.mxu0 0.0
          %4257 = vmatpush1.msra.mxu0 %v4220
          %4258 = vmatprep.subr.mxu0 0.0
          %4259 = vmatpush1.msra.mxu0 %v4219
          %4260 = vmatprep.subr.mxu0 0.0
          %4261 = vmatpush1.msra.mxu0 %v4218
          %4262 = vmatprep.subr.mxu0 0.0
          %4263 = vmatpush1.msra.mxu0 %v4217
          %4264 = vmatprep.subr.mxu0 0.0
          %4265 = vmatpush1.msra.mxu0 %v4216
          %4266 = vmatprep.subr.mxu0 0.0
          %4267 = vmatpush1.msra.mxu0 %v4215
          %4268 = vmatprep.subr.mxu0 0.0
          %4269 = vmatpush2.msra.mxu0 0.0
          %4270 = vmatprep.subr.mxu0 0.0
          %4271 = vmatpush2.msra.mxu0 0.0
          %4272 = vmatprep.subr.mxu0 0.0
          %4273 = vmatpush2.msra.mxu0 0.0
          %4274 = vmatprep.subr.mxu0 0.0
          %4275 = vmatpush2.msra.mxu0 0.0
          %4276 = vmatprep.subr.mxu0 0.0
          %4277 = vmatpush2.msra.mxu0 0.0
          %4278 = vmatprep.subr.mxu0 0.0
          %4279 = vmatpush2.msra.mxu0 0.0
          %4280 = vmatprep.subr.mxu0 0.0
          %4281 = vmatpush2.msra.mxu0 0.0
          %4282 = vmatprep.subr.mxu0 0.0
          %4283 = vmatpush2.msra.mxu0 0.0
          %4284 = vmatprep.subr.mxu0 0.0
          %4285 = vmatpush2.msra.mxu0 0.0
          %4286 = vmatprep.subr.mxu0 0.0
          %4287 = vmatpush2.msra.mxu0 0.0
          %4288 = vmatprep.subr.mxu0 0.0
          %4289 = vmatpush2.msra.mxu0 0.0
          %4290 = vmatprep.subr.mxu0 0.0
          %4291 = vmatpush2.msra.mxu0 0.0
          %4292 = vmatprep.subr.mxu0 0.0
          %4293 = vmatpush2.msra.mxu0 0.0
          %4294 = vmatprep.subr.mxu0 0.0
          %4295 = vmatpush2.msra.mxu0 0.0
          %4296 = vmatprep.subr.mxu0 0.0
          %4297 = vmatpush2.msra.mxu0 0.0
          %4298 = vmatprep.subr.mxu0 0.0
          %4299 = vmatpush2.msra.mxu0 0.0
          %4300 = vmatprep.mubr.f32.mxu0 0.0
          %4301 = vmatmul.mubr.f32.gmra.mxu0 %v4231
          %v4302 = vpop.f32.mrf.mxu0
          %v4303 = vadd.f32 %v4228, %v4302
          %v4304 = vpop.f32.mrf.mxu0
          %4305 = vmatprep.mubr.f32.mxu0 0.0
          %4306 = vmatmul.mubr.f32.gmra.mxu0 %v4234
          %v4307 = vpop.f32.mrf.mxu0
          %v4308 = vadd.f32 %v4228, %v4307
          %v4309 = vpop.f32.mrf.mxu0
          %4310 = vdwg.mxu0
          %v4311 = vmax.f32 %v4303, 0.0
          %v4312 = vmax.f32 %v4308, 0.0
          %v4313 = vld [vmem:[%s15] sm:$0xff]
          %v4314 = vld [vmem:[%s15 + $0x8] sm:$0xff]
          %v4315 = vld [vmem:[%s15 + $0x10] sm:$0xff]
          %v4316 = vld [vmem:[%s15 + $0x18] sm:$0xff]
          %v4317 = vld [vmem:[%s15 + $0x20] sm:$0xff]
          %v4318 = vld [vmem:[%s15 + $0x28] sm:$0xff]
          %v4319 = vld [vmem:[%s15 + $0x30] sm:$0xff]
          %v4320 = vld [vmem:[%s15 + $0x38] sm:$0xff]
          %v4321 = vld [vmem:[%s15 + $0x40] sm:$0xff]
          %v4322 = vld [vmem:[%s15 + $0x48] sm:$0xff]
          %v4323 = vld [vmem:[%s15 + $0x50] sm:$0xff]
          %v4324 = vld [vmem:[%s15 + $0x58] sm:$0xff]
          %v4325 = vld [vmem:[%s15 + $0x60] sm:$0xff]
          %v4326 = vld [vmem:[%s15 + $0x68] sm:$0xff]
          %v4327 = vld [vmem:[%s15 + $0x70] sm:$0xff]
          %v4328 = vld [vmem:[%s15 + $0x78] sm:$0xff]
          %v4329 = vld [vmem:[%s16] sm:$0x1]
          %v4331 = vlaneseq
          %v4332 = vshrl.u32 %v4331, 7
          %v4333 = vsub.s32 0, %v4332
          %v4334 = vrot.slane %v4329, %v4333
          %4336 = vmatprep.subr.mxu0 0.0
          %4337 = vmatpush1.msra.mxu0 %v4328
          %4338 = vmatprep.subr.mxu0 0.0
          %4339 = vmatpush1.msra.mxu0 %v4327
          %4340 = vmatprep.subr.mxu0 0.0
          %4341 = vmatpush1.msra.mxu0 %v4326
          %4342 = vmatprep.subr.mxu0 0.0
          %4343 = vmatpush1.msra.mxu0 %v4325
          %4344 = vmatprep.subr.mxu0 0.0
          %4345 = vmatpush1.msra.mxu0 %v4324
          %4346 = vmatprep.subr.mxu0 0.0
          %4347 = vmatpush1.msra.mxu0 %v4323
          %4348 = vmatprep.subr.mxu0 0.0
          %4349 = vmatpush1.msra.mxu0 %v4322
          %4350 = vmatprep.subr.mxu0 0.0
          %4351 = vmatpush1.msra.mxu0 %v4321
          %4352 = vmatprep.subr.mxu0 0.0
          %4353 = vmatpush1.msra.mxu0 %v4320
          %4354 = vmatprep.subr.mxu0 0.0
          %4355 = vmatpush1.msra.mxu0 %v4319
          %4356 = vmatprep.subr.mxu0 0.0
          %4357 = vmatpush1.msra.mxu0 %v4318
          %4358 = vmatprep.subr.mxu0 0.0
          %4359 = vmatpush1.msra.mxu0 %v4317
          %4360 = vmatprep.subr.mxu0 0.0
          %4361 = vmatpush1.msra.mxu0 %v4316
          %4362 = vmatprep.subr.mxu0 0.0
          %4363 = vmatpush1.msra.mxu0 %v4315
          %4364 = vmatprep.subr.mxu0 0.0
          %4365 = vmatpush1.msra.mxu0 %v4314
          %4366 = vmatprep.subr.mxu0 0.0
          %4367 = vmatpush1.msra.mxu0 %v4313
          %4368 = vmatprep.subr.mxu0 0.0
          %4369 = vmatpush2.msra.mxu0 0.0
          %4370 = vmatprep.subr.mxu0 0.0
          %4371 = vmatpush2.msra.mxu0 0.0
          %4372 = vmatprep.subr.mxu0 0.0
          %4373 = vmatpush2.msra.mxu0 0.0
          %4374 = vmatprep.subr.mxu0 0.0
          %4375 = vmatpush2.msra.mxu0 0.0
          %4376 = vmatprep.subr.mxu0 0.0
          %4377 = vmatpush2.msra.mxu0 0.0
          %4378 = vmatprep.subr.mxu0 0.0
          %4379 = vmatpush2.msra.mxu0 0.0
          %4380 = vmatprep.subr.mxu0 0.0
          %4381 = vmatpush2.msra.mxu0 0.0
          %4382 = vmatprep.subr.mxu0 0.0
          %4383 = vmatpush2.msra.mxu0 0.0
          %4384 = vmatprep.subr.mxu0 0.0
          %4385 = vmatpush2.msra.mxu0 0.0
          %4386 = vmatprep.subr.mxu0 0.0
          %4387 = vmatpush2.msra.mxu0 0.0
          %4388 = vmatprep.subr.mxu0 0.0
          %4389 = vmatpush2.msra.mxu0 0.0
          %4390 = vmatprep.subr.mxu0 0.0
          %4391 = vmatpush2.msra.mxu0 0.0
          %4392 = vmatprep.subr.mxu0 0.0
          %4393 = vmatpush2.msra.mxu0 0.0
          %4394 = vmatprep.subr.mxu0 0.0
          %4395 = vmatpush2.msra.mxu0 0.0
          %4396 = vmatprep.subr.mxu0 0.0
          %4397 = vmatpush2.msra.mxu0 0.0
          %4398 = vmatprep.subr.mxu0 0.0
          %4399 = vmatpush2.msra.mxu0 0.0
          %4400 = vmatprep.mubr.f32.mxu0 0.0
          %4401 = vmatmul.mubr.f32.gmra.mxu0 %v4311
          %v4402 = vpop.f32.mrf.mxu0
          %v4403 = vadd.f32 %v4334, %v4402
          %v4404 = vpop.f32.mrf.mxu0
          %4405 = vmatprep.mubr.f32.mxu0 0.0
          %4406 = vmatmul.mubr.f32.gmra.mxu0 %v4312
          %v4407 = vpop.f32.mrf.mxu0
          %v4408 = vadd.f32 %v4334, %v4407
          %v4409 = vpop.f32.mrf.mxu0
          %4410 = vdwg.mxu0
          %v4411 = vadd.f32 %v4403, %v4213
          %v4412 = vadd.f32 %v4408, %v4214
          %v4413 = vsel %vm1249, %v4411, 0.0
          %4414 = vadd.xlane.f32.xlu0 %v4413
          %v4415 = vpop.xlane.xlu0 %4414
          %v4416 = vsel %vm1249, %v4412, 0.0
          %4417 = vadd.xlane.f32.xlu0 %v4416
          %v4418 = vpop.xlane.xlu0 %4417
          %v4419 = vmul.f32 %v4415, %v4176
          %v4420 = vmul.f32 %v4418, %v4176
          %v4421 = vsub.f32 %v4411, %v4419
          %v4422 = vsub.f32 %v4412, %v4420
          %v4423 = vmul.f32 %v4421, %v4421
          %v4424 = vmul.f32 %v4422, %v4422
          %v4425 = vsel %vm1249, %v4423, 0.0
          %4426 = vadd.xlane.f32.xlu0 %v4425
          %v4427 = vpop.xlane.xlu0 %4426
          %v4428 = vsel %vm1249, %v4424, 0.0
          %4429 = vadd.xlane.f32.xlu0 %v4428
          %v4430 = vpop.xlane.xlu0 %4429
          %v4431 = vmul.f32 %v4427, %v4176
          %v4432 = vmul.f32 %v4430, %v4176
          %v4433 = vadd.f32 %v4431, 1e-05
          %v4434 = vadd.f32 %v4432, 1e-05
          %v4435 = vrsqrt.pop %v4433
          %v4436 = vrsqrt.pop %v4434
          %v4437 = vmul.f32 %v4421, %v4435
          %v4438 = vmul.f32 %v4422, %v4436
          %v4439 = vld [vmem:[%s19] sm:$0x1]
          %v4441 = vlaneseq
          %v4442 = vshrl.u32 %v4441, 7
          %v4443 = vsub.s32 0, %v4442
          %v4444 = vrot.slane %v4439, %v4443
          %v4446 = vmul.f32 %v4437, %v4444
          %v4447 = vmul.f32 %v4438, %v4444
          %v4448 = vld [vmem:[%s20] sm:$0x1]
          %v4450 = vlaneseq
          %v4451 = vshrl.u32 %v4450, 7
          %v4452 = vsub.s32 0, %v4451
          %v4453 = vrot.slane %v4448, %v4452
          %v4455 = vadd.f32 %v4446, %v4453
          %v4456 = vadd.f32 %v4447, %v4453
          %4457 = vst.msk [vmem:[%s1046] sm:$0xff] %vm1249, %v4455
          %4458 = vst.msk [vmem:[%s1046 + $0x8] sm:$0xff] %vm1249, %v4456
        $region144: #{tpu_custom_call.1} parent=103 // pred_fallthru
          _
        %s4459 = sand.u32 %s579, 1
        %s4460 = scalar_lea.sflag [#allocation6], %s4459
        %s4461 = sand.u32 %s579, 1
        %s4462 = smul.addr %s4461, 16
        %s4463 = scalar_lea.vmem [#allocation18], %s4462
        %s4464 = sand.u32 %s54, 1
        %s4465 = scalar_lea.sflag [#allocation20], %s4464
        %s4466 = sand.u32 %s607, 1
        %s4467 = smul.addr %s4466, 24
        %s4468 = scalar_lea.vmem [#allocation19], %s4467
        %s4469 = sand.u32 %s54, 1
        %s4470 = scalar_lea.sflag [#allocation20], %s4469
        %s4471 = sand.u32 %s635, 1
        %s4472 = smul.addr %s4471, 24
        %s4473 = scalar_lea.vmem [#allocation21], %s4472
        // Predicated region
        $region145: #{tpu_custom_call.1} parent=103 // pred_check
          %p4474 = pneg %p589
        $region146: #{tpu_custom_call.1} parent=103 // pred_check_branch
          %4476 = sbr.rel (%p4474) target = $region148
        $region147: #{tpu_custom_call.1} parent=103 // pred_region
          %s4477 = smul.u32 2, %s60
          %s4479 = ssub.s32 256, 256
          %4480 = vsyncadd %s4460, %s4479
          %s4481 = smul.addr %s59, 2
          %s4482 = sadd.s32 %s4477, %s4481
          %s4483 = smul.addr %s4482, 128
          %s4484 = scalar_lea.hbm %s21, %s4483
          %s4485 = sshll.u32 %s4463, 4
          %s4486 = int_to_ptr.vmem [resolvable:$true] %s4485
          %4491 = dma.vmem_to_hbm [thread:$0]  %s4486, 256, %s4484, %s4460, 128, 128, 8
        $region148: #{tpu_custom_call.1} parent=103 // pred_fallthru
          _
        // Predicated region
        $region149: #{tpu_custom_call.1} parent=103 // pred_check
          %p4492 = pneg %p617
        $region150: #{tpu_custom_call.1} parent=103 // pred_check_branch
          %4494 = sbr.rel (%p4492) target = $region152
        $region151: #{tpu_custom_call.1} parent=103 // pred_region
          %s4495 = smul.u32 2, %s60
          %s4497 = ssub.s32 384, 384
          %4498 = vsyncadd %s4465, %s4497
          %s4499 = smul.addr %s59, 6
          %s4500 = sadd.s32 %s4495, %s4499
          %s4501 = smul.addr %s4500, 64
          %s4502 = scalar_lea.hbm %s22, %s4501
          %s4503 = sshll.u32 %s4468, 4
          %s4504 = int_to_ptr.vmem [resolvable:$true] %s4503
          %4509 = dma.vmem_to_hbm [thread:$0]  %s4504, 384, %s4502, %s4465, 64, 64, 4
        $region152: #{tpu_custom_call.1} parent=103 // pred_fallthru
          _
        // Predicated region
        $region153: #{tpu_custom_call.1} parent=103 // pred_check
          %p4510 = pneg %p645
        $region154: #{tpu_custom_call.1} parent=103 // pred_check_branch
          %4512 = sbr.rel (%p4510) target = $region156
        $region155: #{tpu_custom_call.1} parent=103 // pred_region
          %s4513 = smul.u32 2, %s60
          %s4515 = ssub.s32 384, 384
          %4516 = vsyncadd %s4470, %s4515
          %s4517 = smul.addr %s59, 6
          %s4518 = sadd.s32 %s4513, %s4517
          %s4519 = smul.addr %s4518, 64
          %s4520 = scalar_lea.hbm %s23, %s4519
          %s4521 = sshll.u32 %s4473, 4
          %s4522 = int_to_ptr.vmem [resolvable:$true] %s4521
          %4527 = dma.vmem_to_hbm [thread:$0]  %s4522, 384, %s4520, %s4470, 64, 64, 4
        $region156: #{tpu_custom_call.1} parent=103 // pred_fallthru
          _
      $region104: #{tpu_custom_call.1} parent=5 // pred_fallthru
        _
      %p4528 = scmp.le.s32.totalorder 2, %s49
      // Predicated region
      $region157: #{tpu_custom_call.1} parent=5 // pred_check
        %p4529 = pneg %p4528
      $region158: #{tpu_custom_call.1} parent=5 // pred_check_branch
        %4531 = sbr.rel (%p4529) target = $region160
      $region159: #{tpu_custom_call.1} parent=5 // pred_region
        %s4532 = ssub.s32 %s49, 2
        // Predicated region
        $region161: #{tpu_custom_call.1} parent=159 // pred_check
          %p4533 = pneg %p595
        $region162: #{tpu_custom_call.1} parent=159 // pred_check_branch
          %4535 = sbr.rel (%p4533) target = $region164
        $region163: #{tpu_custom_call.1} parent=159 // pred_region
          %s4536 = sand.u32 %s580, 1
          %s4537 = scalar_lea.sflag [#allocation6], %s4536
          %s4538 = sand.u32 %s580, 1
          %s4539 = smul.addr %s4538, 16
          %s4540 = scalar_lea.vmem [#allocation18], %s4539
          %4541 = dma.done %s4537, 256
        $region164: #{tpu_custom_call.1} parent=159 // pred_fallthru
          _
        // Predicated region
        $region165: #{tpu_custom_call.1} parent=159 // pred_check
          %p4542 = pneg %p623
        $region166: #{tpu_custom_call.1} parent=159 // pred_check_branch
          %4544 = sbr.rel (%p4542) target = $region168
        $region167: #{tpu_custom_call.1} parent=159 // pred_region
          %s4545 = sand.u32 %s55, 1
          %s4546 = scalar_lea.sflag [#allocation20], %s4545
          %s4547 = sand.u32 %s608, 1
          %s4548 = smul.addr %s4547, 24
          %s4549 = scalar_lea.vmem [#allocation19], %s4548
          %4550 = dma.done %s4546, 384
        $region168: #{tpu_custom_call.1} parent=159 // pred_fallthru
          _
        // Predicated region
        $region169: #{tpu_custom_call.1} parent=159 // pred_check
          %p4551 = pneg %p651
        $region170: #{tpu_custom_call.1} parent=159 // pred_check_branch
          %4553 = sbr.rel (%p4551) target = $region172
        $region171: #{tpu_custom_call.1} parent=159 // pred_region
          %s4554 = sand.u32 %s55, 1
          %s4555 = scalar_lea.sflag [#allocation20], %s4554
          %s4556 = sand.u32 %s636, 1
          %s4557 = smul.addr %s4556, 24
          %s4558 = scalar_lea.vmem [#allocation21], %s4557
          %4559 = dma.done %s4555, 384
        $region172: #{tpu_custom_call.1} parent=159 // pred_fallthru
          _
      $region160: #{tpu_custom_call.1} parent=5 // pred_fallthru
        _
    $region6: #{tpu_custom_call.1} parent=1 // loop_footer
      %s53 = sadd.s32 1, %s49
    $region7: #{tpu_custom_call.1} parent=1 // loop_footer_branch
      %48 = sbr.rel target = $region3
    $region8: #{tpu_custom_call.1} parent=1 // loop_exit
      _
    %4560 = vsyncpa [#allocation5], 1
    %s4561 = scalar_lea.sflag [#allocation5], 1
    %4562 = vsyncpa %s4561, 1
    %4563 = vsyncpa [#allocation8], 1
    %s4564 = scalar_lea.sflag [#allocation8], 1
    %4565 = vsyncpa %s4564, 1
    %4566 = vsyncpa [#allocation11], 1
    %s4567 = scalar_lea.sflag [#allocation11], 1
    %4568 = vsyncpa %s4567, 1
    %4569 = vsyncpa [#allocation14], 1
    %s4570 = scalar_lea.sflag [#allocation14], 1
    %4571 = vsyncpa %s4570, 1
    %4572 = vsyncpa [#allocation17], 1
    %4573 = vsyncpa [#allocation6], 1
    %s4574 = scalar_lea.sflag [#allocation6], 1
    %4575 = vsyncpa %s4574, 1
    %4576 = vsyncpa [#allocation20], 1
    %s4577 = scalar_lea.sflag [#allocation20], 1
    %4578 = vsyncpa %s4577, 1

</llo_original>
